<compile_context>
chip_gen: v6e
topology: v6e:2x2x1
jax: 0.10.0
libtpu: 0.0.40
codegen_flags: <defaults>
</compile_context>

<pallas_src>
import jax
import jax.numpy as jnp
from jax.experimental import pallas as pl
from jax.experimental.pallas import tpu as pltpu

_LANE = 128
_SUBLANE = 8


def _round_up(v, m):
    return ((v + m - 1) // m) * m


def _conv3x3_accum(pad_ref, w_ref, H, W, C):
    """3x3 conv over the zero-haloed padded tile, shift-and-accumulate on the MXU.

    pad_ref : (H+2, Wp, C) VMEM scratch; rows 0 / H+1 and cols 0 / W+1 are zero.
    w_ref   : (9, C, C) resident weights, tap order kh*3 + kw, layout (cin, cout).
    Returns (H, W, C) float32.
    """
    Wp = pad_ref.shape[1]
    xp = pad_ref[...]                                     # (H+2, Wp, C), input dtype
    acc = jnp.zeros((H * W, C), jnp.float32)
    for kw in range(3):
        # Column shift via XLU rotate + aligned crop (no unaligned sublane slice).
        xs = xp if kw == 0 else pltpu.roll(xp, shift=Wp - kw, axis=1)
        xs = xs[:, :W, :].reshape((H + 2) * W, C)         # kh taps become aligned row slices
        for kh in range(3):
            tap = xs[kh * W:kh * W + H * W, :]            # (H*W, C)
            acc = acc + jnp.dot(tap, w_ref[kh * 3 + kw],
                                preferred_element_type=jnp.float32)
    return acc.reshape(H, W, C)


def _residual_unit_kernel(x_ref, w1_ref, w2_ref, o_ref, pad_ref):
    """Fused o = relu(conv2(relu(conv1(x))) + x) for one image (NHWC, C lane-padded)."""
    H, W, C = o_ref.shape
    dt = x_ref.dtype
    Wp = pad_ref.shape[1]

    # Zero ONLY the 1-pixel halo, every grid step (interior is fully overwritten;
    # alignment columns >= W+2 are never read by the taps).
    zrow = jnp.zeros((1, Wp, C), dt)
    zcol = jnp.zeros((H + 2, 1, C), dt)
    pad_ref[0:1, :, :] = zrow
    pad_ref[H + 1:H + 2, :, :] = zrow
    pad_ref[:, 0:1, :] = zcol
    pad_ref[:, W + 1:W + 2, :] = zcol

    # conv1 + relu  (MXU in the input dtype, f32 accumulation)
    pad_ref[1:H + 1, 1:W + 1, :] = x_ref[...]
    y = jnp.maximum(_conv3x3_accum(pad_ref, w1_ref, H, W, C), 0.0)

    # conv2 + identity add + relu: reuse the SAME pad scratch for y; x is re-read here
    # instead of being kept live across both convs.
    pad_ref[1:H + 1, 1:W + 1, :] = y.astype(dt)
    z = _conv3x3_accum(pad_ref, w2_ref, H, W, C) + x_ref[...].astype(jnp.float32)
    o_ref[...] = jnp.maximum(z, 0.0).astype(o_ref.dtype)


def residual_unit(x_nchw, w1_oihw, w2_oihw):
    """ResidualUnit.forward with stride=1 and shortcut=None (identity skip). NCHW in/out."""
    N, C, H, W = x_nchw.shape
    Cout, Cin, KH, KW = w1_oihw.shape
    assert (KH, KW) == (3, 3) and Cin == C and Cout == C, \
        "identity-shortcut residual unit requires in_channels == out_channels"

    Cp = _round_up(C, _LANE)
    Wp = _round_up(W + 2, _SUBLANE)   # sublane-aligned scratch width for rolls/reshapes

    # Layout glue (XLA): NCHW -> NHWC, channels zero-padded to the lane width.
    # TODO(synk): accept/produce NHWC directly when callers allow, to drop this glue.
    x = jnp.transpose(x_nchw, (0, 2, 3, 1))
    if Cp != C:
        x = jnp.pad(x, ((0, 0), (0, 0), (0, 0), (0, Cp - C)))

    def prep_w(w):
        w = jnp.transpose(w, (2, 3, 1, 0))               # OIHW -> (kh, kw, cin, cout)
        if Cp != C:
            w = jnp.pad(w, ((0, 0), (0, 0), (0, Cp - C), (0, Cp - C)))
        return w.reshape(9, Cp, Cp)

    w1 = prep_w(w1_oihw)
    w2 = prep_w(w2_oihw)

    xbytes = x.dtype.itemsize
    wbytes = w1.dtype.itemsize
    cost = pl.CostEstimate(
        flops=2 * (2 * N * H * W * 9 * Cp * Cp),
        transcendentals=0,
        bytes_accessed=2 * N * H * W * Cp * xbytes + 2 * 9 * Cp * Cp * wbytes,
    )

    # VMEM: double-buffered x/out tiles + single resident weight copies + one shared
    # pad scratch + rolled-tile / f32-accumulator temporaries.
    vmem_need = (
        2 * 2 * H * W * Cp * xbytes
        + 2 * 9 * Cp * Cp * wbytes
        + (H + 2) * Wp * Cp * xbytes
        + (H + 2) * Wp * Cp * max(xbytes, 4)
        + 2 * H * W * Cp * 4
    )
    try:
        vmem_cap = pltpu.get_tpu_info().vmem_capacity_bytes
    except Exception:
        vmem_cap = 64 * 1024 * 1024          # v7x per-core floor
    vmem_limit = min(int(0.6 * vmem_cap), max(32 * 1024 * 1024, 2 * vmem_need))

    out = pl.pallas_call(
        _residual_unit_kernel,
        out_shape=jax.ShapeDtypeStruct((N, H, W, Cp), x.dtype),
        grid_spec=pltpu.PrefetchScalarGridSpec(
            num_scalar_prefetch=0,
            grid=(N,),
            in_specs=[
                pl.BlockSpec((pl.Squeezed(), H, W, Cp), lambda n: (n, 0, 0, 0)),
                # whole-array VMEM residency: one copy, no per-step double buffering
                pl.BlockSpec(memory_space=pltpu.MemorySpace.VMEM),
                pl.BlockSpec(memory_space=pltpu.MemorySpace.VMEM),
            ],
            out_specs=pl.BlockSpec((pl.Squeezed(), H, W, Cp),
                                   lambda n: (n, 0, 0, 0)),
            scratch_shapes=[pltpu.VMEM((H + 2, Wp, Cp), x.dtype)],
        ),
        compiler_params=pltpu.CompilerParams(
            dimension_semantics=("parallel",),   # batch axis -> both TCs on v7x
            vmem_limit_bytes=vmem_limit,
        ),
        cost_estimate=cost,
    )(x, w1, w2)

    # Drop channel padding, NHWC -> NCHW to match the PyTorch convention.
    return jnp.transpose(out[..., :C], (0, 3, 1, 2))


def _reference(x, w1, w2):
    """Pure-JAX reference (matches torch semantics for this block)."""
    dn = ("NCHW", "OIHW", "NCHW")
    p = jax.lax.Precision.HIGHEST
    y = jax.lax.conv_general_dilated(x, w1, (1, 1), ((1, 1), (1, 1)),
                                     dimension_numbers=dn, precision=p)
    y = jnp.maximum(y, 0.0)
    y = jax.lax.conv_general_dilated(y, w2, (1, 1), ((1, 1), (1, 1)),
                                     dimension_numbers=dn, precision=p)
    return jnp.maximum(y + x, 0.0)


def _run_case(key, N, C, H, W, tol):
    kx, k1, k2 = jax.random.split(key, 3)
    x = jax.random.normal(kx, (N, C, H, W), jnp.float32)
    fan_in = C * 3 * 3
    std = (2.0 / fan_in) ** 0.5
    w1 = jax.random.normal(k1, (C, C, 3, 3), jnp.float32) * std
    w2 = jax.random.normal(k2, (C, C, 3, 3), jnp.float32) * std

    out = jax.block_until_ready(jax.jit(residual_unit)(x, w1, w2))
    ref = _reference(x, w1, w2)
    assert out.shape == ref.shape == (N, C, H, W)
    assert jnp.allclose(out, ref, rtol=tol, atol=tol), f"mismatch vs reference (C={C})"


if __name__ == "__main__":
    key = jax.random.PRNGKey(0)
    k_a, k_b = jax.random.split(key)
    # Small shape implied by the module spec (functional smoke test; C << 128 pads lanes).
    _run_case(k_a, N=2, C=4, H=16, W=16, tol=1e-4)
    # Lane-dense channel count: the regime this kernel is actually designed for.
    _run_case(k_b, N=2, C=128, H=8, W=8, tol=1e-3)
    print("KERNEL_OK")
</pallas_src>

<mosaic_0001>
module attributes {stable_mosaic.version = 11 : i64} {
  func.func @_residual_unit_kernel(%arg0: i32, %arg1: memref<1x16x16x128xf32, #tpu.memory_space<vmem>>, %arg2: memref<9x128x128xf32, #tpu.memory_space<vmem>>, %arg3: memref<9x128x128xf32, #tpu.memory_space<vmem>>, %arg4: memref<1x16x16x128xf32, #tpu.memory_space<vmem>>, %arg5: memref<18x24x128xf32, #tpu.memory_space<vmem>>) attributes {dimension_semantics = [#tpu.dimension_semantics<parallel>], iteration_bounds = array<i64: 2>, scalar_prefetch = 0 : i64, scratch_operands = 1 : i64, tpu.core_type = #tpu.core_type<tc>, window_params = [{transform_indices = @transform_0, window_bounds = array<i64: 1, 16, 16, 128>}, {pipeline_mode = #tpu.pipeline_mode<synchronous>, transform_indices = @transform_1, window_bounds = array<i64: 9, 128, 128>}, {pipeline_mode = #tpu.pipeline_mode<synchronous>, transform_indices = @transform_2, window_bounds = array<i64: 9, 128, 128>}, {transform_indices = @transform_3, window_bounds = array<i64: 1, 16, 16, 128>}]} {
    %cst = arith.constant 0.000000e+00 : f32
    %0 = vector.broadcast %cst : f32 to vector<1x24x128xf32>
    %cst_0 = arith.constant 0.000000e+00 : f32
    %1 = vector.broadcast %cst_0 : f32 to vector<18x1x128xf32>
    %c0 = arith.constant 0 : index
    %c0_1 = arith.constant 0 : index
    %c0_2 = arith.constant 0 : index
    %2 = vector.load %arg5[%c0, %c0_1, %c0_2] : memref<18x24x128xf32, #tpu.memory_space<vmem>>, vector<1x24x128xf32>
    tpu.vector_store %arg5[%c0, %c0_1, %c0_2], %0 {strides = array<i32>} : memref<18x24x128xf32, #tpu.memory_space<vmem>>, vector<1x24x128xf32>,
    %c17 = arith.constant 17 : index
    %c0_3 = arith.constant 0 : index
    %c0_4 = arith.constant 0 : index
    %3 = vector.load %arg5[%c17, %c0_3, %c0_4] : memref<18x24x128xf32, #tpu.memory_space<vmem>>, vector<1x24x128xf32>
    tpu.vector_store %arg5[%c17, %c0_3, %c0_4], %0 {strides = array<i32>} : memref<18x24x128xf32, #tpu.memory_space<vmem>>, vector<1x24x128xf32>,
    %c0_5 = arith.constant 0 : index
    %c0_6 = arith.constant 0 : index
    %c0_7 = arith.constant 0 : index
    %4 = vector.load %arg5[%c0_5, %c0_6, %c0_7] : memref<18x24x128xf32, #tpu.memory_space<vmem>>, vector<18x1x128xf32>
    tpu.vector_store %arg5[%c0_5, %c0_6, %c0_7], %1 {strides = array<i32>} : memref<18x24x128xf32, #tpu.memory_space<vmem>>, vector<18x1x128xf32>,
    %c0_8 = arith.constant 0 : index
    %c17_9 = arith.constant 17 : index
    %c0_10 = arith.constant 0 : index
    %5 = vector.load %arg5[%c0_8, %c17_9, %c0_10] : memref<18x24x128xf32, #tpu.memory_space<vmem>>, vector<18x1x128xf32>
    tpu.vector_store %arg5[%c0_8, %c17_9, %c0_10], %1 {strides = array<i32>} : memref<18x24x128xf32, #tpu.memory_space<vmem>>, vector<18x1x128xf32>,
    %c0_11 = arith.constant 0 : index
    %c0_12 = arith.constant 0 : index
    %c0_13 = arith.constant 0 : index
    %c0_14 = arith.constant 0 : index
    %6 = vector.load %arg1[%c0_11, %c0_12, %c0_13, %c0_14] : memref<1x16x16x128xf32, #tpu.memory_space<vmem>>, vector<1x16x16x128xf32>
    %7 = vector.shape_cast %6 : vector<1x16x16x128xf32> to vector<16x16x128xf32>
    %c1 = arith.constant 1 : index
    %c1_15 = arith.constant 1 : index
    %c0_16 = arith.constant 0 : index
    %8 = vector.load %arg5[%c1, %c1_15, %c0_16] : memref<18x24x128xf32, #tpu.memory_space<vmem>>, vector<16x16x128xf32>
    tpu.vector_store %arg5[%c1, %c1_15, %c0_16], %7 {strides = array<i32>} : memref<18x24x128xf32, #tpu.memory_space<vmem>>, vector<16x16x128xf32>,
    %c0_17 = arith.constant 0 : index
    %c0_18 = arith.constant 0 : index
    %c0_19 = arith.constant 0 : index
    %9 = vector.load %arg5[%c0_17, %c0_18, %c0_19] : memref<18x24x128xf32, #tpu.memory_space<vmem>>, vector<18x24x128xf32>
    %cst_20 = arith.constant 0.000000e+00 : f32
    %10 = vector.broadcast %cst_20 : f32 to vector<256x128xf32>
    %11 = vector.extract_strided_slice %9 {offsets = [0, 0, 0], sizes = [18, 16, 128], strides = [1, 1, 1]} : vector<18x24x128xf32> to vector<18x16x128xf32>
    %12 = vector.shape_cast %11 : vector<18x16x128xf32> to vector<288x128xf32>
    %13 = vector.extract_strided_slice %12 {offsets = [0, 0], sizes = [256, 128], strides = [1, 1]} : vector<288x128xf32> to vector<256x128xf32>
    %c0_21 = arith.constant 0 : index
    %c0_22 = arith.constant 0 : index
    %c0_23 = arith.constant 0 : index
    %14 = vector.load %arg2[%c0_21, %c0_22, %c0_23] : memref<9x128x128xf32, #tpu.memory_space<vmem>>, vector<1x128x128xf32>
    %15 = vector.shape_cast %14 : vector<1x128x128xf32> to vector<128x128xf32>
    %cst_24 = arith.constant dense<0.000000e+00> : vector<256x128xf32>
    %16 = tpu.matmul %13, %15, %cst_24 {dimension_numbers = #tpu.dot_dimension_numbers<[1], [0], [0], [1], [0, 0, 1, 1], [], []>} : vector<256x128xf32>, vector<128x128xf32>, vector<256x128xf32> -> vector<256x128xf32>
    %17 = arith.addf %10, %16 : vector<256x128xf32>
    %18 = vector.extract_strided_slice %12 {offsets = [16, 0], sizes = [256, 128], strides = [1, 1]} : vector<288x128xf32> to vector<256x128xf32>
    %c3 = arith.constant 3 : index
    %c0_25 = arith.constant 0 : index
    %c0_26 = arith.constant 0 : index
    %19 = vector.load %arg2[%c3, %c0_25, %c0_26] : memref<9x128x128xf32, #tpu.memory_space<vmem>>, vector<1x128x128xf32>
    %20 = vector.shape_cast %19 : vector<1x128x128xf32> to vector<128x128xf32>
    %cst_27 = arith.constant dense<0.000000e+00> : vector<256x128xf32>
    %21 = tpu.matmul %18, %20, %cst_27 {dimension_numbers = #tpu.dot_dimension_numbers<[1], [0], [0], [1], [0, 0, 1, 1], [], []>} : vector<256x128xf32>, vector<128x128xf32>, vector<256x128xf32> -> vector<256x128xf32>
    %22 = arith.addf %17, %21 : vector<256x128xf32>
    %23 = vector.extract_strided_slice %12 {offsets = [32, 0], sizes = [256, 128], strides = [1, 1]} : vector<288x128xf32> to vector<256x128xf32>
    %c6 = arith.constant 6 : index
    %c0_28 = arith.constant 0 : index
    %c0_29 = arith.constant 0 : index
    %24 = vector.load %arg2[%c6, %c0_28, %c0_29] : memref<9x128x128xf32, #tpu.memory_space<vmem>>, vector<1x128x128xf32>
    %25 = vector.shape_cast %24 : vector<1x128x128xf32> to vector<128x128xf32>
    %cst_30 = arith.constant dense<0.000000e+00> : vector<256x128xf32>
    %26 = tpu.matmul %23, %25, %cst_30 {dimension_numbers = #tpu.dot_dimension_numbers<[1], [0], [0], [1], [0, 0, 1, 1], [], []>} : vector<256x128xf32>, vector<128x128xf32>, vector<256x128xf32> -> vector<256x128xf32>
    %27 = arith.addf %22, %26 : vector<256x128xf32>
    %c23_i32 = arith.constant 23 : i32
    %28 = tpu.dynamic_rotate %9 by %c23_i32 dim 1 : vector<18x24x128xf32>, i32 -> vector<18x24x128xf32>
    %29 = vector.extract_strided_slice %28 {offsets = [0, 0, 0], sizes = [18, 16, 128], strides = [1, 1, 1]} : vector<18x24x128xf32> to vector<18x16x128xf32>
    %30 = vector.shape_cast %29 : vector<18x16x128xf32> to vector<288x128xf32>
    %31 = vector.extract_strided_slice %30 {offsets = [0, 0], sizes = [256, 128], strides = [1, 1]} : vector<288x128xf32> to vector<256x128xf32>
    %c1_31 = arith.constant 1 : index
    %c0_32 = arith.constant 0 : index
    %c0_33 = arith.constant 0 : index
    %32 = vector.load %arg2[%c1_31, %c0_32, %c0_33] : memref<9x128x128xf32, #tpu.memory_space<vmem>>, vector<1x128x128xf32>
    %33 = vector.shape_cast %32 : vector<1x128x128xf32> to vector<128x128xf32>
    %cst_34 = arith.constant dense<0.000000e+00> : vector<256x128xf32>
    %34 = tpu.matmul %31, %33, %cst_34 {dimension_numbers = #tpu.dot_dimension_numbers<[1], [0], [0], [1], [0, 0, 1, 1], [], []>} : vector<256x128xf32>, vector<128x128xf32>, vector<256x128xf32> -> vector<256x128xf32>
    %35 = arith.addf %27, %34 : vector<256x128xf32>
    %36 = vector.extract_strided_slice %30 {offsets = [16, 0], sizes = [256, 128], strides = [1, 1]} : vector<288x128xf32> to vector<256x128xf32>
    %c4 = arith.constant 4 : index
    %c0_35 = arith.constant 0 : index
    %c0_36 = arith.constant 0 : index
    %37 = vector.load %arg2[%c4, %c0_35, %c0_36] : memref<9x128x128xf32, #tpu.memory_space<vmem>>, vector<1x128x128xf32>
    %38 = vector.shape_cast %37 : vector<1x128x128xf32> to vector<128x128xf32>
    %cst_37 = arith.constant dense<0.000000e+00> : vector<256x128xf32>
    %39 = tpu.matmul %36, %38, %cst_37 {dimension_numbers = #tpu.dot_dimension_numbers<[1], [0], [0], [1], [0, 0, 1, 1], [], []>} : vector<256x128xf32>, vector<128x128xf32>, vector<256x128xf32> -> vector<256x128xf32>
    %40 = arith.addf %35, %39 : vector<256x128xf32>
    %41 = vector.extract_strided_slice %30 {offsets = [32, 0], sizes = [256, 128], strides = [1, 1]} : vector<288x128xf32> to vector<256x128xf32>
    %c7 = arith.constant 7 : index
    %c0_38 = arith.constant 0 : index
    %c0_39 = arith.constant 0 : index
    %42 = vector.load %arg2[%c7, %c0_38, %c0_39] : memref<9x128x128xf32, #tpu.memory_space<vmem>>, vector<1x128x128xf32>
    %43 = vector.shape_cast %42 : vector<1x128x128xf32> to vector<128x128xf32>
    %cst_40 = arith.constant dense<0.000000e+00> : vector<256x128xf32>
    %44 = tpu.matmul %41, %43, %cst_40 {dimension_numbers = #tpu.dot_dimension_numbers<[1], [0], [0], [1], [0, 0, 1, 1], [], []>} : vector<256x128xf32>, vector<128x128xf32>, vector<256x128xf32> -> vector<256x128xf32>
    %45 = arith.addf %40, %44 : vector<256x128xf32>
    %c22_i32 = arith.constant 22 : i32
    %46 = tpu.dynamic_rotate %9 by %c22_i32 dim 1 : vector<18x24x128xf32>, i32 -> vector<18x24x128xf32>
    %47 = vector.extract_strided_slice %46 {offsets = [0, 0, 0], sizes = [18, 16, 128], strides = [1, 1, 1]} : vector<18x24x128xf32> to vector<18x16x128xf32>
    %48 = vector.shape_cast %47 : vector<18x16x128xf32> to vector<288x128xf32>
    %49 = vector.extract_strided_slice %48 {offsets = [0, 0], sizes = [256, 128], strides = [1, 1]} : vector<288x128xf32> to vector<256x128xf32>
    %c2 = arith.constant 2 : index
    %c0_41 = arith.constant 0 : index
    %c0_42 = arith.constant 0 : index
    %50 = vector.load %arg2[%c2, %c0_41, %c0_42] : memref<9x128x128xf32, #tpu.memory_space<vmem>>, vector<1x128x128xf32>
    %51 = vector.shape_cast %50 : vector<1x128x128xf32> to vector<128x128xf32>
    %cst_43 = arith.constant dense<0.000000e+00> : vector<256x128xf32>
    %52 = tpu.matmul %49, %51, %cst_43 {dimension_numbers = #tpu.dot_dimension_numbers<[1], [0], [0], [1], [0, 0, 1, 1], [], []>} : vector<256x128xf32>, vector<128x128xf32>, vector<256x128xf32> -> vector<256x128xf32>
    %53 = arith.addf %45, %52 : vector<256x128xf32>
    %54 = vector.extract_strided_slice %48 {offsets = [16, 0], sizes = [256, 128], strides = [1, 1]} : vector<288x128xf32> to vector<256x128xf32>
    %c5 = arith.constant 5 : index
    %c0_44 = arith.constant 0 : index
    %c0_45 = arith.constant 0 : index
    %55 = vector.load %arg2[%c5, %c0_44, %c0_45] : memref<9x128x128xf32, #tpu.memory_space<vmem>>, vector<1x128x128xf32>
    %56 = vector.shape_cast %55 : vector<1x128x128xf32> to vector<128x128xf32>
    %cst_46 = arith.constant dense<0.000000e+00> : vector<256x128xf32>
    %57 = tpu.matmul %54, %56, %cst_46 {dimension_numbers = #tpu.dot_dimension_numbers<[1], [0], [0], [1], [0, 0, 1, 1], [], []>} : vector<256x128xf32>, vector<128x128xf32>, vector<256x128xf32> -> vector<256x128xf32>
    %58 = arith.addf %53, %57 : vector<256x128xf32>
    %59 = vector.extract_strided_slice %48 {offsets = [32, 0], sizes = [256, 128], strides = [1, 1]} : vector<288x128xf32> to vector<256x128xf32>
    %c8 = arith.constant 8 : index
    %c0_47 = arith.constant 0 : index
    %c0_48 = arith.constant 0 : index
    %60 = vector.load %arg2[%c8, %c0_47, %c0_48] : memref<9x128x128xf32, #tpu.memory_space<vmem>>, vector<1x128x128xf32>
    %61 = vector.shape_cast %60 : vector<1x128x128xf32> to vector<128x128xf32>
    %cst_49 = arith.constant dense<0.000000e+00> : vector<256x128xf32>
    %62 = tpu.matmul %59, %61, %cst_49 {dimension_numbers = #tpu.dot_dimension_numbers<[1], [0], [0], [1], [0, 0, 1, 1], [], []>} : vector<256x128xf32>, vector<128x128xf32>, vector<256x128xf32> -> vector<256x128xf32>
    %63 = arith.addf %58, %62 : vector<256x128xf32>
    %64 = vector.shape_cast %63 : vector<256x128xf32> to vector<16x16x128xf32>
    %cst_50 = arith.constant 0.000000e+00 : f32
    %65 = vector.broadcast %cst_50 : f32 to vector<16x16x128xf32>
    %66 = arith.maximumf %64, %65 : vector<16x16x128xf32>
    %c1_51 = arith.constant 1 : index
    %c1_52 = arith.constant 1 : index
    %c0_53 = arith.constant 0 : index
    %67 = vector.load %arg5[%c1_51, %c1_52, %c0_53] : memref<18x24x128xf32, #tpu.memory_space<vmem>>, vector<16x16x128xf32>
    tpu.vector_store %arg5[%c1_51, %c1_52, %c0_53], %66 {strides = array<i32>} : memref<18x24x128xf32, #tpu.memory_space<vmem>>, vector<16x16x128xf32>,
    %c0_54 = arith.constant 0 : index
    %c0_55 = arith.constant 0 : index
    %c0_56 = arith.constant 0 : index
    %68 = vector.load %arg5[%c0_54, %c0_55, %c0_56] : memref<18x24x128xf32, #tpu.memory_space<vmem>>, vector<18x24x128xf32>
    %cst_57 = arith.constant 0.000000e+00 : f32
    %69 = vector.broadcast %cst_57 : f32 to vector<256x128xf32>
    %70 = vector.extract_strided_slice %68 {offsets = [0, 0, 0], sizes = [18, 16, 128], strides = [1, 1, 1]} : vector<18x24x128xf32> to vector<18x16x128xf32>
    %71 = vector.shape_cast %70 : vector<18x16x128xf32> to vector<288x128xf32>
    %72 = vector.extract_strided_slice %71 {offsets = [0, 0], sizes = [256, 128], strides = [1, 1]} : vector<288x128xf32> to vector<256x128xf32>
    %c0_58 = arith.constant 0 : index
    %c0_59 = arith.constant 0 : index
    %c0_60 = arith.constant 0 : index
    %73 = vector.load %arg3[%c0_58, %c0_59, %c0_60] : memref<9x128x128xf32, #tpu.memory_space<vmem>>, vector<1x128x128xf32>
    %74 = vector.shape_cast %73 : vector<1x128x128xf32> to vector<128x128xf32>
    %cst_61 = arith.constant dense<0.000000e+00> : vector<256x128xf32>
    %75 = tpu.matmul %72, %74, %cst_61 {dimension_numbers = #tpu.dot_dimension_numbers<[1], [0], [0], [1], [0, 0, 1, 1], [], []>} : vector<256x128xf32>, vector<128x128xf32>, vector<256x128xf32> -> vector<256x128xf32>
    %76 = arith.addf %69, %75 : vector<256x128xf32>
    %77 = vector.extract_strided_slice %71 {offsets = [16, 0], sizes = [256, 128], strides = [1, 1]} : vector<288x128xf32> to vector<256x128xf32>
    %c3_62 = arith.constant 3 : index
    %c0_63 = arith.constant 0 : index
    %c0_64 = arith.constant 0 : index
    %78 = vector.load %arg3[%c3_62, %c0_63, %c0_64] : memref<9x128x128xf32, #tpu.memory_space<vmem>>, vector<1x128x128xf32>
    %79 = vector.shape_cast %78 : vector<1x128x128xf32> to vector<128x128xf32>
    %cst_65 = arith.constant dense<0.000000e+00> : vector<256x128xf32>
    %80 = tpu.matmul %77, %79, %cst_65 {dimension_numbers = #tpu.dot_dimension_numbers<[1], [0], [0], [1], [0, 0, 1, 1], [], []>} : vector<256x128xf32>, vector<128x128xf32>, vector<256x128xf32> -> vector<256x128xf32>
    %81 = arith.addf %76, %80 : vector<256x128xf32>
    %82 = vector.extract_strided_slice %71 {offsets = [32, 0], sizes = [256, 128], strides = [1, 1]} : vector<288x128xf32> to vector<256x128xf32>
    %c6_66 = arith.constant 6 : index
    %c0_67 = arith.constant 0 : index
    %c0_68 = arith.constant 0 : index
    %83 = vector.load %arg3[%c6_66, %c0_67, %c0_68] : memref<9x128x128xf32, #tpu.memory_space<vmem>>, vector<1x128x128xf32>
    %84 = vector.shape_cast %83 : vector<1x128x128xf32> to vector<128x128xf32>
    %cst_69 = arith.constant dense<0.000000e+00> : vector<256x128xf32>
    %85 = tpu.matmul %82, %84, %cst_69 {dimension_numbers = #tpu.dot_dimension_numbers<[1], [0], [0], [1], [0, 0, 1, 1], [], []>} : vector<256x128xf32>, vector<128x128xf32>, vector<256x128xf32> -> vector<256x128xf32>
    %86 = arith.addf %81, %85 : vector<256x128xf32>
    %c23_i32_70 = arith.constant 23 : i32
    %87 = tpu.dynamic_rotate %68 by %c23_i32_70 dim 1 : vector<18x24x128xf32>, i32 -> vector<18x24x128xf32>
    %88 = vector.extract_strided_slice %87 {offsets = [0, 0, 0], sizes = [18, 16, 128], strides = [1, 1, 1]} : vector<18x24x128xf32> to vector<18x16x128xf32>
    %89 = vector.shape_cast %88 : vector<18x16x128xf32> to vector<288x128xf32>
    %90 = vector.extract_strided_slice %89 {offsets = [0, 0], sizes = [256, 128], strides = [1, 1]} : vector<288x128xf32> to vector<256x128xf32>
    %c1_71 = arith.constant 1 : index
    %c0_72 = arith.constant 0 : index
    %c0_73 = arith.constant 0 : index
    %91 = vector.load %arg3[%c1_71, %c0_72, %c0_73] : memref<9x128x128xf32, #tpu.memory_space<vmem>>, vector<1x128x128xf32>
    %92 = vector.shape_cast %91 : vector<1x128x128xf32> to vector<128x128xf32>
    %cst_74 = arith.constant dense<0.000000e+00> : vector<256x128xf32>
    %93 = tpu.matmul %90, %92, %cst_74 {dimension_numbers = #tpu.dot_dimension_numbers<[1], [0], [0], [1], [0, 0, 1, 1], [], []>} : vector<256x128xf32>, vector<128x128xf32>, vector<256x128xf32> -> vector<256x128xf32>
    %94 = arith.addf %86, %93 : vector<256x128xf32>
    %95 = vector.extract_strided_slice %89 {offsets = [16, 0], sizes = [256, 128], strides = [1, 1]} : vector<288x128xf32> to vector<256x128xf32>
    %c4_75 = arith.constant 4 : index
    %c0_76 = arith.constant 0 : index
    %c0_77 = arith.constant 0 : index
    %96 = vector.load %arg3[%c4_75, %c0_76, %c0_77] : memref<9x128x128xf32, #tpu.memory_space<vmem>>, vector<1x128x128xf32>
    %97 = vector.shape_cast %96 : vector<1x128x128xf32> to vector<128x128xf32>
    %cst_78 = arith.constant dense<0.000000e+00> : vector<256x128xf32>
    %98 = tpu.matmul %95, %97, %cst_78 {dimension_numbers = #tpu.dot_dimension_numbers<[1], [0], [0], [1], [0, 0, 1, 1], [], []>} : vector<256x128xf32>, vector<128x128xf32>, vector<256x128xf32> -> vector<256x128xf32>
    %99 = arith.addf %94, %98 : vector<256x128xf32>
    %100 = vector.extract_strided_slice %89 {offsets = [32, 0], sizes = [256, 128], strides = [1, 1]} : vector<288x128xf32> to vector<256x128xf32>
    %c7_79 = arith.constant 7 : index
    %c0_80 = arith.constant 0 : index
    %c0_81 = arith.constant 0 : index
    %101 = vector.load %arg3[%c7_79, %c0_80, %c0_81] : memref<9x128x128xf32, #tpu.memory_space<vmem>>, vector<1x128x128xf32>
    %102 = vector.shape_cast %101 : vector<1x128x128xf32> to vector<128x128xf32>
    %cst_82 = arith.constant dense<0.000000e+00> : vector<256x128xf32>
    %103 = tpu.matmul %100, %102, %cst_82 {dimension_numbers = #tpu.dot_dimension_numbers<[1], [0], [0], [1], [0, 0, 1, 1], [], []>} : vector<256x128xf32>, vector<128x128xf32>, vector<256x128xf32> -> vector<256x128xf32>
    %104 = arith.addf %99, %103 : vector<256x128xf32>
    %c22_i32_83 = arith.constant 22 : i32
    %105 = tpu.dynamic_rotate %68 by %c22_i32_83 dim 1 : vector<18x24x128xf32>, i32 -> vector<18x24x128xf32>
    %106 = vector.extract_strided_slice %105 {offsets = [0, 0, 0], sizes = [18, 16, 128], strides = [1, 1, 1]} : vector<18x24x128xf32> to vector<18x16x128xf32>
    %107 = vector.shape_cast %106 : vector<18x16x128xf32> to vector<288x128xf32>
    %108 = vector.extract_strided_slice %107 {offsets = [0, 0], sizes = [256, 128], strides = [1, 1]} : vector<288x128xf32> to vector<256x128xf32>
    %c2_84 = arith.constant 2 : index
    %c0_85 = arith.constant 0 : index
    %c0_86 = arith.constant 0 : index
    %109 = vector.load %arg3[%c2_84, %c0_85, %c0_86] : memref<9x128x128xf32, #tpu.memory_space<vmem>>, vector<1x128x128xf32>
    %110 = vector.shape_cast %109 : vector<1x128x128xf32> to vector<128x128xf32>
    %cst_87 = arith.constant dense<0.000000e+00> : vector<256x128xf32>
    %111 = tpu.matmul %108, %110, %cst_87 {dimension_numbers = #tpu.dot_dimension_numbers<[1], [0], [0], [1], [0, 0, 1, 1], [], []>} : vector<256x128xf32>, vector<128x128xf32>, vector<256x128xf32> -> vector<256x128xf32>
    %112 = arith.addf %104, %111 : vector<256x128xf32>
    %113 = vector.extract_strided_slice %107 {offsets = [16, 0], sizes = [256, 128], strides = [1, 1]} : vector<288x128xf32> to vector<256x128xf32>
    %c5_88 = arith.constant 5 : index
    %c0_89 = arith.constant 0 : index
    %c0_90 = arith.constant 0 : index
    %114 = vector.load %arg3[%c5_88, %c0_89, %c0_90] : memref<9x128x128xf32, #tpu.memory_space<vmem>>, vector<1x128x128xf32>
    %115 = vector.shape_cast %114 : vector<1x128x128xf32> to vector<128x128xf32>
    %cst_91 = arith.constant dense<0.000000e+00> : vector<256x128xf32>
    %116 = tpu.matmul %113, %115, %cst_91 {dimension_numbers = #tpu.dot_dimension_numbers<[1], [0], [0], [1], [0, 0, 1, 1], [], []>} : vector<256x128xf32>, vector<128x128xf32>, vector<256x128xf32> -> vector<256x128xf32>
    %117 = arith.addf %112, %116 : vector<256x128xf32>
    %118 = vector.extract_strided_slice %107 {offsets = [32, 0], sizes = [256, 128], strides = [1, 1]} : vector<288x128xf32> to vector<256x128xf32>
    %c8_92 = arith.constant 8 : index
    %c0_93 = arith.constant 0 : index
    %c0_94 = arith.constant 0 : index
    %119 = vector.load %arg3[%c8_92, %c0_93, %c0_94] : memref<9x128x128xf32, #tpu.memory_space<vmem>>, vector<1x128x128xf32>
    %120 = vector.shape_cast %119 : vector<1x128x128xf32> to vector<128x128xf32>
    %cst_95 = arith.constant dense<0.000000e+00> : vector<256x128xf32>
    %121 = tpu.matmul %118, %120, %cst_95 {dimension_numbers = #tpu.dot_dimension_numbers<[1], [0], [0], [1], [0, 0, 1, 1], [], []>} : vector<256x128xf32>, vector<128x128xf32>, vector<256x128xf32> -> vector<256x128xf32>
    %122 = arith.addf %117, %121 : vector<256x128xf32>
    %123 = vector.shape_cast %122 : vector<256x128xf32> to vector<16x16x128xf32>
    %c0_96 = arith.constant 0 : index
    %c0_97 = arith.constant 0 : index
    %c0_98 = arith.constant 0 : index
    %c0_99 = arith.constant 0 : index
    %124 = vector.load %arg1[%c0_96, %c0_97, %c0_98, %c0_99] : memref<1x16x16x128xf32, #tpu.memory_space<vmem>>, vector<1x16x16x128xf32>
    %125 = vector.shape_cast %124 : vector<1x16x16x128xf32> to vector<16x16x128xf32>
    %126 = arith.addf %123, %125 : vector<16x16x128xf32>
    %cst_100 = arith.constant 0.000000e+00 : f32
    %127 = vector.broadcast %cst_100 : f32 to vector<16x16x128xf32>
    %128 = arith.maximumf %126, %127 : vector<16x16x128xf32>
    %c0_101 = arith.constant 0 : index
    %c0_102 = arith.constant 0 : index
    %c0_103 = arith.constant 0 : index
    %c0_104 = arith.constant 0 : index
    %129 = vector.load %arg4[%c0_101, %c0_102, %c0_103, %c0_104] : memref<1x16x16x128xf32, #tpu.memory_space<vmem>>, vector<1x16x16x128xf32>
    %130 = vector.shape_cast %129 : vector<1x16x16x128xf32> to vector<16x16x128xf32>
    %131 = vector.shape_cast %128 : vector<16x16x128xf32> to vector<1x16x16x128xf32>
    tpu.vector_store %arg4[%c0_101, %c0_102, %c0_103, %c0_104], %131 {strides = array<i32>} : memref<1x16x16x128xf32, #tpu.memory_space<vmem>>, vector<1x16x16x128xf32>,
    return
  }
  func.func @transform_0(%arg0: i32) -> (i32, i32, i32, i32) {
    %c0_i32 = arith.constant 0 : i32
    %c0_i32_0 = arith.constant 0 : i32
    %c0_i32_1 = arith.constant 0 : i32
    %c0_i32_2 = arith.constant 0 : i32
    return %arg0, %c0_i32, %c0_i32_0, %c0_i32_1 : i32, i32, i32, i32
  }
  func.func @transform_1(%arg0: i32) -> (i32, i32, i32) {
    %c0_i32 = arith.constant 0 : i32
    %c0_i32_0 = arith.constant 0 : i32
    %c0_i32_1 = arith.constant 0 : i32
    %c0_i32_2 = arith.constant 0 : i32
    return %c0_i32, %c0_i32_0, %c0_i32_1 : i32, i32, i32
  }
  func.func @transform_2(%arg0: i32) -> (i32, i32, i32) {
    %c0_i32 = arith.constant 0 : i32
    %c0_i32_0 = arith.constant 0 : i32
    %c0_i32_1 = arith.constant 0 : i32
    %c0_i32_2 = arith.constant 0 : i32
    return %c0_i32, %c0_i32_0, %c0_i32_1 : i32, i32, i32
  }
  func.func @transform_3(%arg0: i32) -> (i32, i32, i32, i32) {
    %c0_i32 = arith.constant 0 : i32
    %c0_i32_0 = arith.constant 0 : i32
    %c0_i32_1 = arith.constant 0 : i32
    %c0_i32_2 = arith.constant 0 : i32
    return %arg0, %c0_i32, %c0_i32_0, %c0_i32_1 : i32, i32, i32, i32
  }
}

</mosaic_0001>

<llo_original>
// kernel: residual_unit.1
$region0: #{residual_unit.1}
  #allocation0 [shape = 'u32[]', space=smem, size = 0x4, offset = 0x4, fixed_abs, tag = 'smem constant byte address 0x4 - core index']
  #allocation1 [shape = 'u32[144,128]{1,0:T(1,128)}', space=vmem, size = 0x12000, scoped, tag = 'internal scratch']
  #allocation2 [shape = 'f32[18,24,128]{2,1,0:T(8,128)}', space=vmem, size = 0x36000, scoped, tag = 'scratch operand']
  %s0 = inlined_call_operand.vmem [shape: f32[2,16,16,128], index: 0, kind: input, shape index: {}]
  %s1 = inlined_call_operand.vmem [shape: f32[9,128,128], index: 1, kind: input, shape index: {}]
  %s2 = inlined_call_operand.vmem [shape: f32[9,128,128], index: 2, kind: input, shape index: {}]
  %s3 = inlined_call_operand.vmem [shape: f32[2,16,16,128], index: 3, kind: output, shape index: {}]
  %s4 = sld [smem:[#allocation0]]
  $region45: #{residual_unit.1} parent=0
    _
  %s6 = ssub.s32 1, %s4
  %s7 = scalar_select 0, %s6, %s4
  loop: start=0, step=1, limit=4
  $region2: #{residual_unit.1} parent=0 // loop_pre_header
    _
  $region3: #{residual_unit.1} parent=0 // loop_header
    %s9 = sphi 0, %s13
    %p10 = scmp.ge.s32.totalorder %s9, 4
    %s19 = sphi 0, %s21
    %s22 = sphi 0, %s19
    %s23 = sphi 0, %s22
    %s39 = sphi 0, %s23
    %s43 = sphi 0, %s43
    %s45 = sphi 0, %s43
    %s46 = sphi 0, %s45
    %s60 = sphi 0, %s46
    %s64 = sphi 0, %s64
    %s66 = sphi 0, %s64
    %s67 = sphi 0, %s66
    %s81 = sphi 0, %s67
    %s87 = sphi 0, %s89
    %s90 = sphi 0, %s87
    %s91 = sphi 0, %s90
    %s107 = sphi 0, %s91
  $region4: #{residual_unit.1} parent=0 // loop_header_branch
    %12 = sbr.rel (%p10) target = $region8
  $region5: #{residual_unit.1} parent=0 // loop_body
    %s14 = ssub.s32 %s9, 1
    %s15 = ssub.s32 %s9, 2
    %s16 = sadd.s32 %s9, 1
    %s17 = ssub.s32 %s9, %s16
    %p18 = scmp.eq.s32.totalorder %s17, 0
    %s20 = sadd.s32 %s19, 1
    %s21 = scalar_select %p18, %s19, %s20
    %p24 = pneg %p18
    %p25 = scmp.eq.s32.totalorder %s9, 1
    %p26 = por %p24, %p25
    %p27 = scmp.ne.s32.totalorder %s19, %s22
    %p28 = scmp.eq.s32.totalorder %s9, 0
    %p29 = por %p27, %p28
    %p30 = scmp.ne.s32.totalorder %s19, %s22
    %p31 = scmp.eq.s32.totalorder %s14, 1
    %p32 = por %p30, %p31
    %p33 = scmp.ne.s32.totalorder %s22, %s23
    %p34 = scmp.eq.s32.totalorder %s14, 0
    %p35 = por %p33, %p34
    %p36 = scmp.ne.s32.totalorder %s22, %s23
    %p37 = scmp.eq.s32.totalorder %s15, 1
    %p38 = por %p36, %p37
    %p40 = scmp.ne.s32.totalorder %s23, %s39
    %p41 = scmp.eq.s32.totalorder %s15, 0
    %p42 = por %p40, %p41
    %s44 = sadd.s32 %s43, 1
    %p47 = scmp.eq.s32.totalorder %s9, 1
    %p48 = scmp.ne.s32.totalorder %s43, %s45
    %p49 = scmp.eq.s32.totalorder %s9, 0
    %p50 = por %p48, %p49
    %p51 = scmp.ne.s32.totalorder %s43, %s45
    %p52 = scmp.eq.s32.totalorder %s14, 1
    %p53 = por %p51, %p52
    %p54 = scmp.ne.s32.totalorder %s45, %s46
    %p55 = scmp.eq.s32.totalorder %s14, 0
    %p56 = por %p54, %p55
    %p57 = scmp.ne.s32.totalorder %s45, %s46
    %p58 = scmp.eq.s32.totalorder %s15, 1
    %p59 = por %p57, %p58
    %p61 = scmp.ne.s32.totalorder %s46, %s60
    %p62 = scmp.eq.s32.totalorder %s15, 0
    %p63 = por %p61, %p62
    %s65 = sadd.s32 %s64, 1
    %p68 = scmp.eq.s32.totalorder %s9, 1
    %p69 = scmp.ne.s32.totalorder %s64, %s66
    %p70 = scmp.eq.s32.totalorder %s9, 0
    %p71 = por %p69, %p70
    %p72 = scmp.ne.s32.totalorder %s64, %s66
    %p73 = scmp.eq.s32.totalorder %s14, 1
    %p74 = por %p72, %p73
    %p75 = scmp.ne.s32.totalorder %s66, %s67
    %p76 = scmp.eq.s32.totalorder %s14, 0
    %p77 = por %p75, %p76
    %p78 = scmp.ne.s32.totalorder %s66, %s67
    %p79 = scmp.eq.s32.totalorder %s15, 1
    %p80 = por %p78, %p79
    %p82 = scmp.ne.s32.totalorder %s67, %s81
    %p83 = scmp.eq.s32.totalorder %s15, 0
    %p84 = por %p82, %p83
    %s85 = ssub.s32 %s9, %s16
    %p86 = scmp.eq.s32.totalorder %s85, 0
    %s88 = sadd.s32 %s87, 1
    %s89 = scalar_select %p86, %s87, %s88
    %p92 = pneg %p86
    %p93 = scmp.eq.s32.totalorder %s9, 1
    %p94 = por %p92, %p93
    %p95 = scmp.ne.s32.totalorder %s87, %s90
    %p96 = scmp.eq.s32.totalorder %s9, 0
    %p97 = por %p95, %p96
    %p98 = scmp.ne.s32.totalorder %s87, %s90
    %p99 = scmp.eq.s32.totalorder %s14, 1
    %p100 = por %p98, %p99
    %p101 = scmp.ne.s32.totalorder %s90, %s91
    %p102 = scmp.eq.s32.totalorder %s14, 0
    %p103 = por %p101, %p102
    %p104 = scmp.ne.s32.totalorder %s90, %s91
    %p105 = scmp.eq.s32.totalorder %s15, 1
    %p106 = por %p104, %p105
    %p108 = scmp.ne.s32.totalorder %s91, %s107
    %p109 = scmp.eq.s32.totalorder %s15, 0
    %p110 = por %p108, %p109
    %p111 = scmp.le.s32.totalorder 1, %s9
    %p112 = scmp.lt.s32.totalorder %s9, 3
    %p113 = pnand %p111, %p112
    %p114 = pneg %p113
    // Predicated region
    $region9: #{residual_unit.1} parent=5 // pred_check
      _
    $region10: #{residual_unit.1} parent=5 // pred_check_branch
      %116 = sbr.rel (%p113) target = $region12
    $region11: #{residual_unit.1} parent=5 // pred_region
      %s117 = ssub.s32 %s9, 1
      // Predicated region
      $region13: #{residual_unit.1} parent=11 // pred_check
        %p118 = pneg %p56
      $region14: #{residual_unit.1} parent=11 // pred_check_branch
        %120 = sbr.rel (%p118) target = $region16
      $region15: #{residual_unit.1} parent=11 // pred_region
        _
      $region16: #{residual_unit.1} parent=11 // pred_fallthru
        _
      // Predicated region
      $region17: #{residual_unit.1} parent=11 // pred_check
        %p121 = pneg %p77
      $region18: #{residual_unit.1} parent=11 // pred_check_branch
        %123 = sbr.rel (%p121) target = $region20
      $region19: #{residual_unit.1} parent=11 // pred_region
        _
      $region20: #{residual_unit.1} parent=11 // pred_fallthru
        _
    $region12: #{residual_unit.1} parent=5 // pred_fallthru
      _
    %p124 = scmp.lt.s32.totalorder %s9, 2
    // Predicated region
    $region21: #{residual_unit.1} parent=5 // pred_check
      %p125 = pneg %p124
    $region22: #{residual_unit.1} parent=5 // pred_check_branch
      %127 = sbr.rel (%p125) target = $region24
    $region23: #{residual_unit.1} parent=5 // pred_region
      // Predicated region
      $region25: #{residual_unit.1} parent=23 // pred_check
        %p128 = pneg %p29
      $region26: #{residual_unit.1} parent=23 // pred_check_branch
        %130 = sbr.rel (%p128) target = $region28
      $region27: #{residual_unit.1} parent=23 // pred_region
        %p131 = scmp.lt.s32.totalorder %s9, 1
        %s132 = scalar_select %p131, %s9, 1
        %s133 = smul.addr %s132, 32
        %s134 = smul.addr %s133, 8
        %s135 = scalar_lea.vmem %s0, %s134
      $region28: #{residual_unit.1} parent=23 // pred_fallthru
        _
    $region24: #{residual_unit.1} parent=5 // pred_fallthru
      _
    %p136 = scmp.le.s32.totalorder 1, %s9
    %p137 = scmp.lt.s32.totalorder %s9, 3
    %p138 = pnand %p136, %p137
    %p139 = pneg %p138
    // Predicated region
    $region29: #{residual_unit.1} parent=5 // pred_check
      _
    $region30: #{residual_unit.1} parent=5 // pred_check_branch
      %141 = sbr.rel (%p138) target = $region32
    $region31: #{residual_unit.1} parent=5 // pred_region
      %s142 = ssub.s32 %s9, 1
      %p143 = scmp.lt.s32.totalorder %s14, 1
      %s144 = scalar_select %p143, %s14, 1
      %s145 = smul.addr %s144, 32
      %s146 = smul.addr %s145, 8
      %s147 = scalar_lea.vmem %s0, %s146
      %p148 = pneg %p35
      %p149 = pneg %p32
      %p150 = pneg %p56
      %p151 = pneg %p53
      %p152 = pneg %p77
      %p153 = pneg %p74
      %p154 = pneg %p103
      %p155 = pneg %p100
      %p156 = scmp.lt.s32.totalorder %s14, 1
      %s157 = scalar_select %p156, %s14, 1
      %s158 = smul.addr %s157, 32
      %s159 = smul.addr %s158, 8
      %s160 = scalar_lea.vmem %s3, %s159
      %p161 = scmp.lt.s32.totalorder %s14, 1
      %s162 = scalar_select %p161, %s14, 1
      %s163 = smul.addr %s162, 32
      %s164 = smul.addr %s163, 8
      %s165 = scalar_lea.vmem %s0, %s164
      %p166 = scmp.lt.s32.totalorder %s14, 1
      %s167 = scalar_select %p166, %s14, 1
      %s168 = smul.addr %s167, 32
      %s169 = smul.addr %s168, 8
      %s170 = scalar_lea.vmem %s3, %s169
      %171 = vst [vmem:[#allocation2] sm:$0xff] 0.0
      %172 = vst [vmem:[#allocation2 + $0x8] sm:$0xff] 0.0
      %173 = vst [vmem:[#allocation2 + $0x10] sm:$0xff] 0.0
      %s174 = scalar_lea.vmem [#allocation2], 408
      %175 = vst [vmem:[%s174] sm:$0xff] 0.0
      %176 = vst [vmem:[%s174 + $0x8] sm:$0xff] 0.0
      %177 = vst [vmem:[%s174 + $0x10] sm:$0xff] 0.0
      %178 = vst [vmem:[#allocation2] sm:$0x1] 0.0
      %179 = vst [vmem:[#allocation2 + $0x18] sm:$0x1] 0.0
      %180 = vst [vmem:[#allocation2 + $0x30] sm:$0x1] 0.0
      %181 = vst [vmem:[#allocation2 + $0x48] sm:$0x1] 0.0
      %182 = vst [vmem:[#allocation2 + $0x60] sm:$0x1] 0.0
      %183 = vst [vmem:[#allocation2 + $0x78] sm:$0x1] 0.0
      %184 = vst [vmem:[#allocation2 + $0x90] sm:$0x1] 0.0
      %185 = vst [vmem:[#allocation2 + $0xa8] sm:$0x1] 0.0
      %186 = vst [vmem:[#allocation2 + $0xc0] sm:$0x1] 0.0
      %187 = vst [vmem:[#allocation2 + $0xd8] sm:$0x1] 0.0
      %188 = vst [vmem:[#allocation2 + $0xf0] sm:$0x1] 0.0
      %189 = vst [vmem:[#allocation2 + $0x108] sm:$0x1] 0.0
      %190 = vst [vmem:[#allocation2 + $0x120] sm:$0x1] 0.0
      %191 = vst [vmem:[#allocation2 + $0x138] sm:$0x1] 0.0
      %192 = vst [vmem:[#allocation2 + $0x150] sm:$0x1] 0.0
      %193 = vst [vmem:[#allocation2 + $0x168] sm:$0x1] 0.0
      %194 = vst [vmem:[#allocation2 + $0x180] sm:$0x1] 0.0
      %195 = vst [vmem:[#allocation2 + $0x198] sm:$0x1] 0.0
      %196 = vst [vmem:[#allocation2 + $0x11] sm:$0x1] 0.0
      %197 = vst [vmem:[#allocation2 + $0x29] sm:$0x1] 0.0
      %198 = vst [vmem:[#allocation2 + $0x41] sm:$0x1] 0.0
      %199 = vst [vmem:[#allocation2 + $0x59] sm:$0x1] 0.0
      %200 = vst [vmem:[#allocation2 + $0x71] sm:$0x1] 0.0
      %201 = vst [vmem:[#allocation2 + $0x89] sm:$0x1] 0.0
      %202 = vst [vmem:[#allocation2 + $0xa1] sm:$0x1] 0.0
      %203 = vst [vmem:[#allocation2 + $0xb9] sm:$0x1] 0.0
      %204 = vst [vmem:[#allocation2 + $0xd1] sm:$0x1] 0.0
      %205 = vst [vmem:[#allocation2 + $0xe9] sm:$0x1] 0.0
      %206 = vst [vmem:[#allocation2 + $0x101] sm:$0x1] 0.0
      %207 = vst [vmem:[#allocation2 + $0x119] sm:$0x1] 0.0
      %208 = vst [vmem:[#allocation2 + $0x131] sm:$0x1] 0.0
      %209 = vst [vmem:[#allocation2 + $0x149] sm:$0x1] 0.0
      %210 = vst [vmem:[#allocation2 + $0x161] sm:$0x1] 0.0
      %211 = vst [vmem:[#allocation2 + $0x179] sm:$0x1] 0.0
      %212 = vst [vmem:[#allocation2 + $0x191] sm:$0x1] 0.0
      %213 = vst [vmem:[#allocation2 + $0x1a9] sm:$0x1] 0.0
      %v214 = vld [vmem:[%s165] sm:$0xff]
      %v215 = vld [vmem:[%s165 + $0x8] sm:$0xff]
      %v216 = vld [vmem:[%s165 + $0x10] sm:$0xff]
      %v217 = vld [vmem:[%s165 + $0x18] sm:$0xff]
      %v218 = vld [vmem:[%s165 + $0x20] sm:$0xff]
      %v219 = vld [vmem:[%s165 + $0x28] sm:$0xff]
      %v220 = vld [vmem:[%s165 + $0x30] sm:$0xff]
      %v221 = vld [vmem:[%s165 + $0x38] sm:$0xff]
      %v222 = vld [vmem:[%s165 + $0x40] sm:$0xff]
      %v223 = vld [vmem:[%s165 + $0x48] sm:$0xff]
      %v224 = vld [vmem:[%s165 + $0x50] sm:$0xff]
      %v225 = vld [vmem:[%s165 + $0x58] sm:$0xff]
      %v226 = vld [vmem:[%s165 + $0x60] sm:$0xff]
      %v227 = vld [vmem:[%s165 + $0x68] sm:$0xff]
      %v228 = vld [vmem:[%s165 + $0x70] sm:$0xff]
      %v229 = vld [vmem:[%s165 + $0x78] sm:$0xff]
      %v230 = vld [vmem:[%s165 + $0x80] sm:$0xff]
      %v231 = vld [vmem:[%s165 + $0x88] sm:$0xff]
      %v232 = vld [vmem:[%s165 + $0x90] sm:$0xff]
      %v233 = vld [vmem:[%s165 + $0x98] sm:$0xff]
      %v234 = vld [vmem:[%s165 + $0xa0] sm:$0xff]
      %v235 = vld [vmem:[%s165 + $0xa8] sm:$0xff]
      %v236 = vld [vmem:[%s165 + $0xb0] sm:$0xff]
      %v237 = vld [vmem:[%s165 + $0xb8] sm:$0xff]
      %v238 = vld [vmem:[%s165 + $0xc0] sm:$0xff]
      %v239 = vld [vmem:[%s165 + $0xc8] sm:$0xff]
      %v240 = vld [vmem:[%s165 + $0xd0] sm:$0xff]
      %v241 = vld [vmem:[%s165 + $0xd8] sm:$0xff]
      %v242 = vld [vmem:[%s165 + $0xe0] sm:$0xff]
      %v243 = vld [vmem:[%s165 + $0xe8] sm:$0xff]
      %v244 = vld [vmem:[%s165 + $0xf0] sm:$0xff]
      %v245 = vld [vmem:[%s165 + $0xf8] sm:$0xff]
      %s246 = scalar_lea.vmem [#allocation2], 24
      %247 = vst [vmem:[%s246 + $0x1] sm:$0xff] %v214
      %248 = vst [vmem:[%s246 + $0x9] sm:$0xff] %v215
      %249 = vst [vmem:[%s246 + $0x19] sm:$0xff] %v216
      %250 = vst [vmem:[%s246 + $0x21] sm:$0xff] %v217
      %251 = vst [vmem:[%s246 + $0x31] sm:$0xff] %v218
      %252 = vst [vmem:[%s246 + $0x39] sm:$0xff] %v219
      %253 = vst [vmem:[%s246 + $0x49] sm:$0xff] %v220
      %254 = vst [vmem:[%s246 + $0x51] sm:$0xff] %v221
      %255 = vst [vmem:[%s246 + $0x61] sm:$0xff] %v222
      %256 = vst [vmem:[%s246 + $0x69] sm:$0xff] %v223
      %257 = vst [vmem:[%s246 + $0x79] sm:$0xff] %v224
      %258 = vst [vmem:[%s246 + $0x81] sm:$0xff] %v225
      %259 = vst [vmem:[%s246 + $0x91] sm:$0xff] %v226
      %260 = vst [vmem:[%s246 + $0x99] sm:$0xff] %v227
      %261 = vst [vmem:[%s246 + $0xa9] sm:$0xff] %v228
      %262 = vst [vmem:[%s246 + $0xb1] sm:$0xff] %v229
      %263 = vst [vmem:[%s246 + $0xc1] sm:$0xff] %v230
      %264 = vst [vmem:[%s246 + $0xc9] sm:$0xff] %v231
      %265 = vst [vmem:[%s246 + $0xd9] sm:$0xff] %v232
      %266 = vst [vmem:[%s246 + $0xe1] sm:$0xff] %v233
      %267 = vst [vmem:[%s246 + $0xf1] sm:$0xff] %v234
      %268 = vst [vmem:[%s246 + $0xf9] sm:$0xff] %v235
      %269 = vst [vmem:[%s246 + $0x109] sm:$0xff] %v236
      %270 = vst [vmem:[%s246 + $0x111] sm:$0xff] %v237
      %271 = vst [vmem:[%s246 + $0x121] sm:$0xff] %v238
      %272 = vst [vmem:[%s246 + $0x129] sm:$0xff] %v239
      %273 = vst [vmem:[%s246 + $0x139] sm:$0xff] %v240
      %274 = vst [vmem:[%s246 + $0x141] sm:$0xff] %v241
      %275 = vst [vmem:[%s246 + $0x151] sm:$0xff] %v242
      %276 = vst [vmem:[%s246 + $0x159] sm:$0xff] %v243
      %277 = vst [vmem:[%s246 + $0x169] sm:$0xff] %v244
      %278 = vst [vmem:[%s246 + $0x171] sm:$0xff] %v245
      %v279 = vld [vmem:[#allocation2] sm:$0xff]
      %v280 = vld [vmem:[#allocation2 + $0x8] sm:$0xff]
      %v281 = vld [vmem:[#allocation2 + $0x10] sm:$0xff]
      %v282 = vld [vmem:[#allocation2 + $0x18] sm:$0xff]
      %v283 = vld [vmem:[#allocation2 + $0x20] sm:$0xff]
      %v284 = vld [vmem:[#allocation2 + $0x28] sm:$0xff]
      %v285 = vld [vmem:[#allocation2 + $0x30] sm:$0xff]
      %v286 = vld [vmem:[#allocation2 + $0x38] sm:$0xff]
      %v287 = vld [vmem:[#allocation2 + $0x40] sm:$0xff]
      %v288 = vld [vmem:[#allocation2 + $0x48] sm:$0xff]
      %v289 = vld [vmem:[#allocation2 + $0x50] sm:$0xff]
      %v290 = vld [vmem:[#allocation2 + $0x58] sm:$0xff]
      %v291 = vld [vmem:[#allocation2 + $0x60] sm:$0xff]
      %v292 = vld [vmem:[#allocation2 + $0x68] sm:$0xff]
      %v293 = vld [vmem:[#allocation2 + $0x70] sm:$0xff]
      %v294 = vld [vmem:[#allocation2 + $0x78] sm:$0xff]
      %v295 = vld [vmem:[#allocation2 + $0x80] sm:$0xff]
      %v296 = vld [vmem:[#allocation2 + $0x88] sm:$0xff]
      %v297 = vld [vmem:[#allocation2 + $0x90] sm:$0xff]
      %v298 = vld [vmem:[#allocation2 + $0x98] sm:$0xff]
      %v299 = vld [vmem:[#allocation2 + $0xa0] sm:$0xff]
      %v300 = vld [vmem:[#allocation2 + $0xa8] sm:$0xff]
      %v301 = vld [vmem:[#allocation2 + $0xb0] sm:$0xff]
      %v302 = vld [vmem:[#allocation2 + $0xb8] sm:$0xff]
      %v303 = vld [vmem:[#allocation2 + $0xc0] sm:$0xff]
      %v304 = vld [vmem:[#allocation2 + $0xc8] sm:$0xff]
      %v305 = vld [vmem:[#allocation2 + $0xd0] sm:$0xff]
      %v306 = vld [vmem:[#allocation2 + $0xd8] sm:$0xff]
      %v307 = vld [vmem:[#allocation2 + $0xe0] sm:$0xff]
      %v308 = vld [vmem:[#allocation2 + $0xe8] sm:$0xff]
      %v309 = vld [vmem:[#allocation2 + $0xf0] sm:$0xff]
      %v310 = vld [vmem:[#allocation2 + $0xf8] sm:$0xff]
      %v311 = vld [vmem:[#allocation2 + $0x100] sm:$0xff]
      %v312 = vld [vmem:[#allocation2 + $0x108] sm:$0xff]
      %v313 = vld [vmem:[#allocation2 + $0x110] sm:$0xff]
      %v314 = vld [vmem:[#allocation2 + $0x118] sm:$0xff]
      %v315 = vld [vmem:[#allocation2 + $0x120] sm:$0xff]
      %v316 = vld [vmem:[#allocation2 + $0x128] sm:$0xff]
      %v317 = vld [vmem:[#allocation2 + $0x130] sm:$0xff]
      %v318 = vld [vmem:[#allocation2 + $0x138] sm:$0xff]
      %v319 = vld [vmem:[#allocation2 + $0x140] sm:$0xff]
      %v320 = vld [vmem:[#allocation2 + $0x148] sm:$0xff]
      %v321 = vld [vmem:[#allocation2 + $0x150] sm:$0xff]
      %v322 = vld [vmem:[#allocation2 + $0x158] sm:$0xff]
      %v323 = vld [vmem:[#allocation2 + $0x160] sm:$0xff]
      %v324 = vld [vmem:[#allocation2 + $0x168] sm:$0xff]
      %v325 = vld [vmem:[#allocation2 + $0x170] sm:$0xff]
      %v326 = vld [vmem:[#allocation2 + $0x178] sm:$0xff]
      %v327 = vld [vmem:[#allocation2 + $0x180] sm:$0xff]
      %v328 = vld [vmem:[#allocation2 + $0x188] sm:$0xff]
      %v329 = vld [vmem:[#allocation2 + $0x190] sm:$0xff]
      %v330 = vld [vmem:[#allocation2 + $0x198] sm:$0xff]
      %v331 = vld [vmem:[#allocation2 + $0x1a0] sm:$0xff]
      %v332 = vld [vmem:[#allocation2 + $0x1a8] sm:$0xff]
      %v333 = vld [vmem:[%s1] sm:$0xff]
      %v334 = vld [vmem:[%s1 + $0x8] sm:$0xff]
      %v335 = vld [vmem:[%s1 + $0x10] sm:$0xff]
      %v336 = vld [vmem:[%s1 + $0x18] sm:$0xff]
      %v337 = vld [vmem:[%s1 + $0x20] sm:$0xff]
      %v338 = vld [vmem:[%s1 + $0x28] sm:$0xff]
      %v339 = vld [vmem:[%s1 + $0x30] sm:$0xff]
      %v340 = vld [vmem:[%s1 + $0x38] sm:$0xff]
      %v341 = vld [vmem:[%s1 + $0x40] sm:$0xff]
      %v342 = vld [vmem:[%s1 + $0x48] sm:$0xff]
      %v343 = vld [vmem:[%s1 + $0x50] sm:$0xff]
      %v344 = vld [vmem:[%s1 + $0x58] sm:$0xff]
      %v345 = vld [vmem:[%s1 + $0x60] sm:$0xff]
      %v346 = vld [vmem:[%s1 + $0x68] sm:$0xff]
      %v347 = vld [vmem:[%s1 + $0x70] sm:$0xff]
      %v348 = vld [vmem:[%s1 + $0x78] sm:$0xff]
      %s349 = scalar_lea.vmem %s1, 384
      %v350 = vld [vmem:[%s349] sm:$0xff]
      %v351 = vld [vmem:[%s349 + $0x8] sm:$0xff]
      %v352 = vld [vmem:[%s349 + $0x10] sm:$0xff]
      %v353 = vld [vmem:[%s349 + $0x18] sm:$0xff]
      %v354 = vld [vmem:[%s349 + $0x20] sm:$0xff]
      %v355 = vld [vmem:[%s349 + $0x28] sm:$0xff]
      %v356 = vld [vmem:[%s349 + $0x30] sm:$0xff]
      %v357 = vld [vmem:[%s349 + $0x38] sm:$0xff]
      %v358 = vld [vmem:[%s349 + $0x40] sm:$0xff]
      %v359 = vld [vmem:[%s349 + $0x48] sm:$0xff]
      %v360 = vld [vmem:[%s349 + $0x50] sm:$0xff]
      %v361 = vld [vmem:[%s349 + $0x58] sm:$0xff]
      %v362 = vld [vmem:[%s349 + $0x60] sm:$0xff]
      %v363 = vld [vmem:[%s349 + $0x68] sm:$0xff]
      %v364 = vld [vmem:[%s349 + $0x70] sm:$0xff]
      %v365 = vld [vmem:[%s349 + $0x78] sm:$0xff]
      %366 = vmatprep.subr.mxu0 0.0
      %367 = vmatpush1.msra.mxu0 %v365
      %368 = vmatprep.subr.mxu0 0.0
      %369 = vmatpush1.msra.mxu0 %v364
      %370 = vmatprep.subr.mxu0 0.0
      %371 = vmatpush1.msra.mxu0 %v363
      %372 = vmatprep.subr.mxu0 0.0
      %373 = vmatpush1.msra.mxu0 %v362
      %374 = vmatprep.subr.mxu0 0.0
      %375 = vmatpush1.msra.mxu0 %v361
      %376 = vmatprep.subr.mxu0 0.0
      %377 = vmatpush1.msra.mxu0 %v360
      %378 = vmatprep.subr.mxu0 0.0
      %379 = vmatpush1.msra.mxu0 %v359
      %380 = vmatprep.subr.mxu0 0.0
      %381 = vmatpush1.msra.mxu0 %v358
      %382 = vmatprep.subr.mxu0 0.0
      %383 = vmatpush1.msra.mxu0 %v357
      %384 = vmatprep.subr.mxu0 0.0
      %385 = vmatpush1.msra.mxu0 %v356
      %386 = vmatprep.subr.mxu0 0.0
      %387 = vmatpush1.msra.mxu0 %v355
      %388 = vmatprep.subr.mxu0 0.0
      %389 = vmatpush1.msra.mxu0 %v354
      %390 = vmatprep.subr.mxu0 0.0
      %391 = vmatpush1.msra.mxu0 %v353
      %392 = vmatprep.subr.mxu0 0.0
      %393 = vmatpush1.msra.mxu0 %v352
      %394 = vmatprep.subr.mxu0 0.0
      %395 = vmatpush1.msra.mxu0 %v351
      %396 = vmatprep.subr.mxu0 0.0
      %397 = vmatpush1.msra.mxu0 %v350
      %398 = vmatprep.subr.mxu0 0.0
      %399 = vmatpush2.msra.mxu0 0.0
      %400 = vmatprep.subr.mxu0 0.0
      %401 = vmatpush2.msra.mxu0 0.0
      %402 = vmatprep.subr.mxu0 0.0
      %403 = vmatpush2.msra.mxu0 0.0
      %404 = vmatprep.subr.mxu0 0.0
      %405 = vmatpush2.msra.mxu0 0.0
      %406 = vmatprep.subr.mxu0 0.0
      %407 = vmatpush2.msra.mxu0 0.0
      %408 = vmatprep.subr.mxu0 0.0
      %409 = vmatpush2.msra.mxu0 0.0
      %410 = vmatprep.subr.mxu0 0.0
      %411 = vmatpush2.msra.mxu0 0.0
      %412 = vmatprep.subr.mxu0 0.0
      %413 = vmatpush2.msra.mxu0 0.0
      %414 = vmatprep.subr.mxu0 0.0
      %415 = vmatpush2.msra.mxu0 0.0
      %416 = vmatprep.subr.mxu0 0.0
      %417 = vmatpush2.msra.mxu0 0.0
      %418 = vmatprep.subr.mxu0 0.0
      %419 = vmatpush2.msra.mxu0 0.0
      %420 = vmatprep.subr.mxu0 0.0
      %421 = vmatpush2.msra.mxu0 0.0
      %422 = vmatprep.subr.mxu0 0.0
      %423 = vmatpush2.msra.mxu0 0.0
      %424 = vmatprep.subr.mxu0 0.0
      %425 = vmatpush2.msra.mxu0 0.0
      %426 = vmatprep.subr.mxu0 0.0
      %427 = vmatpush2.msra.mxu0 0.0
      %428 = vmatprep.subr.mxu0 0.0
      %429 = vmatpush2.msra.mxu0 0.0
      %430 = vmatprep.mubr.f32.mxu0 0.0
      %431 = vmatmul.mubr.f32.gmra.mxu0 %v282
      %v432 = vpop.f32.mrf.mxu0
      %v433 = vadd.f32 0.0, %v432
      %v434 = vpop.f32.mrf.mxu0
      %435 = vmatprep.mubr.f32.mxu0 0.0
      %436 = vmatmul.mubr.f32.gmra.mxu0 %v283
      %v437 = vpop.f32.mrf.mxu0
      %v438 = vadd.f32 0.0, %v437
      %v439 = vpop.f32.mrf.mxu0
      %440 = vmatprep.mubr.f32.mxu0 0.0
      %441 = vmatmul.mubr.f32.gmra.mxu0 %v285
      %v442 = vpop.f32.mrf.mxu0
      %v443 = vadd.f32 0.0, %v442
      %v444 = vpop.f32.mrf.mxu0
      %445 = vmatprep.mubr.f32.mxu0 0.0
      %446 = vmatmul.mubr.f32.gmra.mxu0 %v286
      %v447 = vpop.f32.mrf.mxu0
      %v448 = vadd.f32 0.0, %v447
      %v449 = vpop.f32.mrf.mxu0
      %450 = vmatprep.mubr.f32.mxu0 0.0
      %451 = vmatmul.mubr.f32.gmra.mxu0 %v288
      %v452 = vpop.f32.mrf.mxu0
      %v453 = vadd.f32 0.0, %v452
      %v454 = vpop.f32.mrf.mxu0
      %455 = vmatprep.mubr.f32.mxu0 0.0
      %456 = vmatmul.mubr.f32.gmra.mxu0 %v289
      %v457 = vpop.f32.mrf.mxu0
      %v458 = vadd.f32 0.0, %v457
      %v459 = vpop.f32.mrf.mxu0
      %460 = vmatprep.mubr.f32.mxu0 0.0
      %461 = vmatmul.mubr.f32.gmra.mxu0 %v291
      %v462 = vpop.f32.mrf.mxu0
      %v463 = vadd.f32 0.0, %v462
      %v464 = vpop.f32.mrf.mxu0
      %465 = vmatprep.mubr.f32.mxu0 0.0
      %466 = vmatmul.mubr.f32.gmra.mxu0 %v292
      %v467 = vpop.f32.mrf.mxu0
      %v468 = vadd.f32 0.0, %v467
      %v469 = vpop.f32.mrf.mxu0
      %470 = vmatprep.mubr.f32.mxu0 0.0
      %471 = vmatmul.mubr.f32.gmra.mxu0 %v294
      %v472 = vpop.f32.mrf.mxu0
      %v473 = vadd.f32 0.0, %v472
      %v474 = vpop.f32.mrf.mxu0
      %475 = vmatprep.mubr.f32.mxu0 0.0
      %476 = vmatmul.mubr.f32.gmra.mxu0 %v295
      %v477 = vpop.f32.mrf.mxu0
      %v478 = vadd.f32 0.0, %v477
      %v479 = vpop.f32.mrf.mxu0
      %480 = vmatprep.mubr.f32.mxu0 0.0
      %481 = vmatmul.mubr.f32.gmra.mxu0 %v297
      %v482 = vpop.f32.mrf.mxu0
      %v483 = vadd.f32 0.0, %v482
      %v484 = vpop.f32.mrf.mxu0
      %485 = vmatprep.mubr.f32.mxu0 0.0
      %486 = vmatmul.mubr.f32.gmra.mxu0 %v298
      %v487 = vpop.f32.mrf.mxu0
      %v488 = vadd.f32 0.0, %v487
      %v489 = vpop.f32.mrf.mxu0
      %490 = vmatprep.mubr.f32.mxu0 0.0
      %491 = vmatmul.mubr.f32.gmra.mxu0 %v300
      %v492 = vpop.f32.mrf.mxu0
      %v493 = vadd.f32 0.0, %v492
      %v494 = vpop.f32.mrf.mxu0
      %495 = vmatprep.mubr.f32.mxu0 0.0
      %496 = vmatmul.mubr.f32.gmra.mxu0 %v301
      %v497 = vpop.f32.mrf.mxu0
      %v498 = vadd.f32 0.0, %v497
      %v499 = vpop.f32.mrf.mxu0
      %500 = vmatprep.mubr.f32.mxu0 0.0
      %501 = vmatmul.mubr.f32.gmra.mxu0 %v303
      %v502 = vpop.f32.mrf.mxu0
      %v503 = vadd.f32 0.0, %v502
      %v504 = vpop.f32.mrf.mxu0
      %505 = vmatprep.mubr.f32.mxu0 0.0
      %506 = vmatmul.mubr.f32.gmra.mxu0 %v304
      %v507 = vpop.f32.mrf.mxu0
      %v508 = vadd.f32 0.0, %v507
      %v509 = vpop.f32.mrf.mxu0
      %510 = vmatprep.mubr.f32.mxu0 0.0
      %511 = vmatmul.mubr.f32.gmra.mxu0 %v306
      %v512 = vpop.f32.mrf.mxu0
      %v513 = vadd.f32 0.0, %v512
      %v514 = vpop.f32.mrf.mxu0
      %515 = vmatprep.mubr.f32.mxu0 0.0
      %516 = vmatmul.mubr.f32.gmra.mxu0 %v307
      %v517 = vpop.f32.mrf.mxu0
      %v518 = vadd.f32 0.0, %v517
      %v519 = vpop.f32.mrf.mxu0
      %520 = vmatprep.mubr.f32.mxu0 0.0
      %521 = vmatmul.mubr.f32.gmra.mxu0 %v309
      %v522 = vpop.f32.mrf.mxu0
      %v523 = vadd.f32 0.0, %v522
      %v524 = vpop.f32.mrf.mxu0
      %525 = vmatprep.mubr.f32.mxu0 0.0
      %526 = vmatmul.mubr.f32.gmra.mxu0 %v310
      %v527 = vpop.f32.mrf.mxu0
      %v528 = vadd.f32 0.0, %v527
      %v529 = vpop.f32.mrf.mxu0
      %530 = vmatprep.mubr.f32.mxu0 0.0
      %531 = vmatmul.mubr.f32.gmra.mxu0 %v312
      %v532 = vpop.f32.mrf.mxu0
      %v533 = vadd.f32 0.0, %v532
      %v534 = vpop.f32.mrf.mxu0
      %535 = vmatprep.mubr.f32.mxu0 0.0
      %536 = vmatmul.mubr.f32.gmra.mxu0 %v313
      %v537 = vpop.f32.mrf.mxu0
      %v538 = vadd.f32 0.0, %v537
      %v539 = vpop.f32.mrf.mxu0
      %540 = vmatprep.mubr.f32.mxu0 0.0
      %541 = vmatmul.mubr.f32.gmra.mxu0 %v315
      %v542 = vpop.f32.mrf.mxu0
      %v543 = vadd.f32 0.0, %v542
      %v544 = vpop.f32.mrf.mxu0
      %545 = vmatprep.mubr.f32.mxu0 0.0
      %546 = vmatmul.mubr.f32.gmra.mxu0 %v316
      %v547 = vpop.f32.mrf.mxu0
      %v548 = vadd.f32 0.0, %v547
      %v549 = vpop.f32.mrf.mxu0
      %550 = vmatprep.mubr.f32.mxu0 0.0
      %551 = vmatmul.mubr.f32.gmra.mxu0 %v318
      %v552 = vpop.f32.mrf.mxu0
      %v553 = vadd.f32 0.0, %v552
      %v554 = vpop.f32.mrf.mxu0
      %555 = vmatprep.mubr.f32.mxu0 0.0
      %556 = vmatmul.mubr.f32.gmra.mxu0 %v319
      %v557 = vpop.f32.mrf.mxu0
      %v558 = vadd.f32 0.0, %v557
      %v559 = vpop.f32.mrf.mxu0
      %560 = vmatprep.mubr.f32.mxu0 0.0
      %561 = vmatmul.mubr.f32.gmra.mxu0 %v321
      %v562 = vpop.f32.mrf.mxu0
      %v563 = vadd.f32 0.0, %v562
      %v564 = vpop.f32.mrf.mxu0
      %565 = vmatprep.mubr.f32.mxu0 0.0
      %566 = vmatmul.mubr.f32.gmra.mxu0 %v322
      %v567 = vpop.f32.mrf.mxu0
      %v568 = vadd.f32 0.0, %v567
      %v569 = vpop.f32.mrf.mxu0
      %570 = vmatprep.mubr.f32.mxu0 0.0
      %571 = vmatmul.mubr.f32.gmra.mxu0 %v324
      %v572 = vpop.f32.mrf.mxu0
      %v573 = vadd.f32 0.0, %v572
      %v574 = vpop.f32.mrf.mxu0
      %575 = vmatprep.mubr.f32.mxu0 0.0
      %576 = vmatmul.mubr.f32.gmra.mxu0 %v325
      %v577 = vpop.f32.mrf.mxu0
      %v578 = vadd.f32 0.0, %v577
      %v579 = vpop.f32.mrf.mxu0
      %580 = vmatprep.mubr.f32.mxu0 0.0
      %581 = vmatmul.mubr.f32.gmra.mxu0 %v327
      %v582 = vpop.f32.mrf.mxu0
      %v583 = vadd.f32 0.0, %v582
      %v584 = vpop.f32.mrf.mxu0
      %585 = vmatprep.mubr.f32.mxu0 0.0
      %586 = vmatmul.mubr.f32.gmra.mxu0 %v328
      %v587 = vpop.f32.mrf.mxu0
      %v588 = vadd.f32 0.0, %v587
      %v589 = vpop.f32.mrf.mxu0
      %590 = vdwg.mxu0
      %591 = vmatprep.subr.mxu0 0.0
      %592 = vmatpush1.msra.mxu0 %v348
      %593 = vmatprep.subr.mxu0 0.0
      %594 = vmatpush1.msra.mxu0 %v347
      %595 = vmatprep.subr.mxu0 0.0
      %596 = vmatpush1.msra.mxu0 %v346
      %597 = vmatprep.subr.mxu0 0.0
      %598 = vmatpush1.msra.mxu0 %v345
      %599 = vmatprep.subr.mxu0 0.0
      %600 = vmatpush1.msra.mxu0 %v344
      %601 = vmatprep.subr.mxu0 0.0
      %602 = vmatpush1.msra.mxu0 %v343
      %603 = vmatprep.subr.mxu0 0.0
      %604 = vmatpush1.msra.mxu0 %v342
      %605 = vmatprep.subr.mxu0 0.0
      %606 = vmatpush1.msra.mxu0 %v341
      %607 = vmatprep.subr.mxu0 0.0
      %608 = vmatpush1.msra.mxu0 %v340
      %609 = vmatprep.subr.mxu0 0.0
      %610 = vmatpush1.msra.mxu0 %v339
      %611 = vmatprep.subr.mxu0 0.0
      %612 = vmatpush1.msra.mxu0 %v338
      %613 = vmatprep.subr.mxu0 0.0
      %614 = vmatpush1.msra.mxu0 %v337
      %615 = vmatprep.subr.mxu0 0.0
      %616 = vmatpush1.msra.mxu0 %v336
      %617 = vmatprep.subr.mxu0 0.0
      %618 = vmatpush1.msra.mxu0 %v335
      %619 = vmatprep.subr.mxu0 0.0
      %620 = vmatpush1.msra.mxu0 %v334
      %621 = vmatprep.subr.mxu0 0.0
      %622 = vmatpush1.msra.mxu0 %v333
      %623 = vmatprep.subr.mxu0 0.0
      %624 = vmatpush2.msra.mxu0 0.0
      %625 = vmatprep.subr.mxu0 0.0
      %626 = vmatpush2.msra.mxu0 0.0
      %627 = vmatprep.subr.mxu0 0.0
      %628 = vmatpush2.msra.mxu0 0.0
      %629 = vmatprep.subr.mxu0 0.0
      %630 = vmatpush2.msra.mxu0 0.0
      %631 = vmatprep.subr.mxu0 0.0
      %632 = vmatpush2.msra.mxu0 0.0
      %633 = vmatprep.subr.mxu0 0.0
      %634 = vmatpush2.msra.mxu0 0.0
      %635 = vmatprep.subr.mxu0 0.0
      %636 = vmatpush2.msra.mxu0 0.0
      %637 = vmatprep.subr.mxu0 0.0
      %638 = vmatpush2.msra.mxu0 0.0
      %639 = vmatprep.subr.mxu0 0.0
      %640 = vmatpush2.msra.mxu0 0.0
      %641 = vmatprep.subr.mxu0 0.0
      %642 = vmatpush2.msra.mxu0 0.0
      %643 = vmatprep.subr.mxu0 0.0
      %644 = vmatpush2.msra.mxu0 0.0
      %645 = vmatprep.subr.mxu0 0.0
      %646 = vmatpush2.msra.mxu0 0.0
      %647 = vmatprep.subr.mxu0 0.0
      %648 = vmatpush2.msra.mxu0 0.0
      %649 = vmatprep.subr.mxu0 0.0
      %650 = vmatpush2.msra.mxu0 0.0
      %651 = vmatprep.subr.mxu0 0.0
      %652 = vmatpush2.msra.mxu0 0.0
      %653 = vmatprep.subr.mxu0 0.0
      %654 = vmatpush2.msra.mxu0 0.0
      %655 = vmatprep.mubr.f32.mxu0 0.0
      %656 = vmatmul.mubr.f32.gmra.mxu0 %v279
      %v657 = vpop.f32.mrf.mxu0
      %v658 = vadd.f32 %v433, %v657
      %v659 = vpop.f32.mrf.mxu0
      %660 = vmatprep.mubr.f32.mxu0 0.0
      %661 = vmatmul.mubr.f32.gmra.mxu0 %v280
      %v662 = vpop.f32.mrf.mxu0
      %v663 = vadd.f32 %v438, %v662
      %v664 = vpop.f32.mrf.mxu0
      %665 = vmatprep.mubr.f32.mxu0 0.0
      %666 = vmatmul.mubr.f32.gmra.mxu0 %v282
      %v667 = vpop.f32.mrf.mxu0
      %v668 = vadd.f32 %v443, %v667
      %v669 = vpop.f32.mrf.mxu0
      %670 = vmatprep.mubr.f32.mxu0 0.0
      %671 = vmatmul.mubr.f32.gmra.mxu0 %v283
      %v672 = vpop.f32.mrf.mxu0
      %v673 = vadd.f32 %v448, %v672
      %v674 = vpop.f32.mrf.mxu0
      %675 = vmatprep.mubr.f32.mxu0 0.0
      %676 = vmatmul.mubr.f32.gmra.mxu0 %v285
      %v677 = vpop.f32.mrf.mxu0
      %v678 = vadd.f32 %v453, %v677
      %v679 = vpop.f32.mrf.mxu0
      %680 = vmatprep.mubr.f32.mxu0 0.0
      %681 = vmatmul.mubr.f32.gmra.mxu0 %v286
      %v682 = vpop.f32.mrf.mxu0
      %v683 = vadd.f32 %v458, %v682
      %v684 = vpop.f32.mrf.mxu0
      %685 = vmatprep.mubr.f32.mxu0 0.0
      %686 = vmatmul.mubr.f32.gmra.mxu0 %v288
      %v687 = vpop.f32.mrf.mxu0
      %v688 = vadd.f32 %v463, %v687
      %v689 = vpop.f32.mrf.mxu0
      %690 = vmatprep.mubr.f32.mxu0 0.0
      %691 = vmatmul.mubr.f32.gmra.mxu0 %v289
      %v692 = vpop.f32.mrf.mxu0
      %v693 = vadd.f32 %v468, %v692
      %v694 = vpop.f32.mrf.mxu0
      %695 = vmatprep.mubr.f32.mxu0 0.0
      %696 = vmatmul.mubr.f32.gmra.mxu0 %v291
      %v697 = vpop.f32.mrf.mxu0
      %v698 = vadd.f32 %v473, %v697
      %v699 = vpop.f32.mrf.mxu0
      %700 = vmatprep.mubr.f32.mxu0 0.0
      %701 = vmatmul.mubr.f32.gmra.mxu0 %v292
      %v702 = vpop.f32.mrf.mxu0
      %v703 = vadd.f32 %v478, %v702
      %v704 = vpop.f32.mrf.mxu0
      %705 = vmatprep.mubr.f32.mxu0 0.0
      %706 = vmatmul.mubr.f32.gmra.mxu0 %v294
      %v707 = vpop.f32.mrf.mxu0
      %v708 = vadd.f32 %v483, %v707
      %v709 = vpop.f32.mrf.mxu0
      %710 = vmatprep.mubr.f32.mxu0 0.0
      %711 = vmatmul.mubr.f32.gmra.mxu0 %v295
      %v712 = vpop.f32.mrf.mxu0
      %v713 = vadd.f32 %v488, %v712
      %v714 = vpop.f32.mrf.mxu0
      %715 = vmatprep.mubr.f32.mxu0 0.0
      %716 = vmatmul.mubr.f32.gmra.mxu0 %v297
      %v717 = vpop.f32.mrf.mxu0
      %v718 = vadd.f32 %v493, %v717
      %v719 = vpop.f32.mrf.mxu0
      %720 = vmatprep.mubr.f32.mxu0 0.0
      %721 = vmatmul.mubr.f32.gmra.mxu0 %v298
      %v722 = vpop.f32.mrf.mxu0
      %v723 = vadd.f32 %v498, %v722
      %v724 = vpop.f32.mrf.mxu0
      %725 = vmatprep.mubr.f32.mxu0 0.0
      %726 = vmatmul.mubr.f32.gmra.mxu0 %v300
      %v727 = vpop.f32.mrf.mxu0
      %v728 = vadd.f32 %v503, %v727
      %v729 = vpop.f32.mrf.mxu0
      %730 = vmatprep.mubr.f32.mxu0 0.0
      %731 = vmatmul.mubr.f32.gmra.mxu0 %v301
      %v732 = vpop.f32.mrf.mxu0
      %v733 = vadd.f32 %v508, %v732
      %v734 = vpop.f32.mrf.mxu0
      %735 = vmatprep.mubr.f32.mxu0 0.0
      %736 = vmatmul.mubr.f32.gmra.mxu0 %v303
      %v737 = vpop.f32.mrf.mxu0
      %v738 = vadd.f32 %v513, %v737
      %v739 = vpop.f32.mrf.mxu0
      %740 = vmatprep.mubr.f32.mxu0 0.0
      %741 = vmatmul.mubr.f32.gmra.mxu0 %v304
      %v742 = vpop.f32.mrf.mxu0
      %v743 = vadd.f32 %v518, %v742
      %v744 = vpop.f32.mrf.mxu0
      %745 = vmatprep.mubr.f32.mxu0 0.0
      %746 = vmatmul.mubr.f32.gmra.mxu0 %v306
      %v747 = vpop.f32.mrf.mxu0
      %v748 = vadd.f32 %v523, %v747
      %v749 = vpop.f32.mrf.mxu0
      %750 = vmatprep.mubr.f32.mxu0 0.0
      %751 = vmatmul.mubr.f32.gmra.mxu0 %v307
      %v752 = vpop.f32.mrf.mxu0
      %v753 = vadd.f32 %v528, %v752
      %v754 = vpop.f32.mrf.mxu0
      %755 = vmatprep.mubr.f32.mxu0 0.0
      %756 = vmatmul.mubr.f32.gmra.mxu0 %v309
      %v757 = vpop.f32.mrf.mxu0
      %v758 = vadd.f32 %v533, %v757
      %v759 = vpop.f32.mrf.mxu0
      %760 = vmatprep.mubr.f32.mxu0 0.0
      %761 = vmatmul.mubr.f32.gmra.mxu0 %v310
      %v762 = vpop.f32.mrf.mxu0
      %v763 = vadd.f32 %v538, %v762
      %v764 = vpop.f32.mrf.mxu0
      %765 = vmatprep.mubr.f32.mxu0 0.0
      %766 = vmatmul.mubr.f32.gmra.mxu0 %v312
      %v767 = vpop.f32.mrf.mxu0
      %v768 = vadd.f32 %v543, %v767
      %v769 = vpop.f32.mrf.mxu0
      %770 = vmatprep.mubr.f32.mxu0 0.0
      %771 = vmatmul.mubr.f32.gmra.mxu0 %v313
      %v772 = vpop.f32.mrf.mxu0
      %v773 = vadd.f32 %v548, %v772
      %v774 = vpop.f32.mrf.mxu0
      %775 = vmatprep.mubr.f32.mxu0 0.0
      %776 = vmatmul.mubr.f32.gmra.mxu0 %v315
      %v777 = vpop.f32.mrf.mxu0
      %v778 = vadd.f32 %v553, %v777
      %v779 = vpop.f32.mrf.mxu0
      %780 = vmatprep.mubr.f32.mxu0 0.0
      %781 = vmatmul.mubr.f32.gmra.mxu0 %v316
      %v782 = vpop.f32.mrf.mxu0
      %v783 = vadd.f32 %v558, %v782
      %v784 = vpop.f32.mrf.mxu0
      %785 = vmatprep.mubr.f32.mxu0 0.0
      %786 = vmatmul.mubr.f32.gmra.mxu0 %v318
      %v787 = vpop.f32.mrf.mxu0
      %v788 = vadd.f32 %v563, %v787
      %v789 = vpop.f32.mrf.mxu0
      %790 = vmatprep.mubr.f32.mxu0 0.0
      %791 = vmatmul.mubr.f32.gmra.mxu0 %v319
      %v792 = vpop.f32.mrf.mxu0
      %v793 = vadd.f32 %v568, %v792
      %v794 = vpop.f32.mrf.mxu0
      %795 = vmatprep.mubr.f32.mxu0 0.0
      %796 = vmatmul.mubr.f32.gmra.mxu0 %v321
      %v797 = vpop.f32.mrf.mxu0
      %v798 = vadd.f32 %v573, %v797
      %v799 = vpop.f32.mrf.mxu0
      %800 = vmatprep.mubr.f32.mxu0 0.0
      %801 = vmatmul.mubr.f32.gmra.mxu0 %v322
      %v802 = vpop.f32.mrf.mxu0
      %v803 = vadd.f32 %v578, %v802
      %v804 = vpop.f32.mrf.mxu0
      %805 = vmatprep.mubr.f32.mxu0 0.0
      %806 = vmatmul.mubr.f32.gmra.mxu0 %v324
      %v807 = vpop.f32.mrf.mxu0
      %v808 = vadd.f32 %v583, %v807
      %v809 = vpop.f32.mrf.mxu0
      %810 = vmatprep.mubr.f32.mxu0 0.0
      %811 = vmatmul.mubr.f32.gmra.mxu0 %v325
      %v812 = vpop.f32.mrf.mxu0
      %v813 = vadd.f32 %v588, %v812
      %v814 = vpop.f32.mrf.mxu0
      %815 = vdwg.mxu0
      %s816 = scalar_lea.vmem %s1, 768
      %v817 = vld [vmem:[%s816] sm:$0xff]
      %v818 = vld [vmem:[%s816 + $0x8] sm:$0xff]
      %v819 = vld [vmem:[%s816 + $0x10] sm:$0xff]
      %v820 = vld [vmem:[%s816 + $0x18] sm:$0xff]
      %v821 = vld [vmem:[%s816 + $0x20] sm:$0xff]
      %v822 = vld [vmem:[%s816 + $0x28] sm:$0xff]
      %v823 = vld [vmem:[%s816 + $0x30] sm:$0xff]
      %v824 = vld [vmem:[%s816 + $0x38] sm:$0xff]
      %v825 = vld [vmem:[%s816 + $0x40] sm:$0xff]
      %v826 = vld [vmem:[%s816 + $0x48] sm:$0xff]
      %v827 = vld [vmem:[%s816 + $0x50] sm:$0xff]
      %v828 = vld [vmem:[%s816 + $0x58] sm:$0xff]
      %v829 = vld [vmem:[%s816 + $0x60] sm:$0xff]
      %v830 = vld [vmem:[%s816 + $0x68] sm:$0xff]
      %v831 = vld [vmem:[%s816 + $0x70] sm:$0xff]
      %v832 = vld [vmem:[%s816 + $0x78] sm:$0xff]
      %833 = vmatprep.subr.mxu0 0.0
      %834 = vmatpush1.msra.mxu0 %v832
      %835 = vmatprep.subr.mxu0 0.0
      %836 = vmatpush1.msra.mxu0 %v831
      %837 = vmatprep.subr.mxu0 0.0
      %838 = vmatpush1.msra.mxu0 %v830
      %839 = vmatprep.subr.mxu0 0.0
      %840 = vmatpush1.msra.mxu0 %v829
      %841 = vmatprep.subr.mxu0 0.0
      %842 = vmatpush1.msra.mxu0 %v828
      %843 = vmatprep.subr.mxu0 0.0
      %844 = vmatpush1.msra.mxu0 %v827
      %845 = vmatprep.subr.mxu0 0.0
      %846 = vmatpush1.msra.mxu0 %v826
      %847 = vmatprep.subr.mxu0 0.0
      %848 = vmatpush1.msra.mxu0 %v825
      %849 = vmatprep.subr.mxu0 0.0
      %850 = vmatpush1.msra.mxu0 %v824
      %851 = vmatprep.subr.mxu0 0.0
      %852 = vmatpush1.msra.mxu0 %v823
      %853 = vmatprep.subr.mxu0 0.0
      %854 = vmatpush1.msra.mxu0 %v822
      %855 = vmatprep.subr.mxu0 0.0
      %856 = vmatpush1.msra.mxu0 %v821
      %857 = vmatprep.subr.mxu0 0.0
      %858 = vmatpush1.msra.mxu0 %v820
      %859 = vmatprep.subr.mxu0 0.0
      %860 = vmatpush1.msra.mxu0 %v819
      %861 = vmatprep.subr.mxu0 0.0
      %862 = vmatpush1.msra.mxu0 %v818
      %863 = vmatprep.subr.mxu0 0.0
      %864 = vmatpush1.msra.mxu0 %v817
      %865 = vmatprep.subr.mxu0 0.0
      %866 = vmatpush2.msra.mxu0 0.0
      %867 = vmatprep.subr.mxu0 0.0
      %868 = vmatpush2.msra.mxu0 0.0
      %869 = vmatprep.subr.mxu0 0.0
      %870 = vmatpush2.msra.mxu0 0.0
      %871 = vmatprep.subr.mxu0 0.0
      %872 = vmatpush2.msra.mxu0 0.0
      %873 = vmatprep.subr.mxu0 0.0
      %874 = vmatpush2.msra.mxu0 0.0
      %875 = vmatprep.subr.mxu0 0.0
      %876 = vmatpush2.msra.mxu0 0.0
      %877 = vmatprep.subr.mxu0 0.0
      %878 = vmatpush2.msra.mxu0 0.0
      %879 = vmatprep.subr.mxu0 0.0
      %880 = vmatpush2.msra.mxu0 0.0
      %881 = vmatprep.subr.mxu0 0.0
      %882 = vmatpush2.msra.mxu0 0.0
      %883 = vmatprep.subr.mxu0 0.0
      %884 = vmatpush2.msra.mxu0 0.0
      %885 = vmatprep.subr.mxu0 0.0
      %886 = vmatpush2.msra.mxu0 0.0
      %887 = vmatprep.subr.mxu0 0.0
      %888 = vmatpush2.msra.mxu0 0.0
      %889 = vmatprep.subr.mxu0 0.0
      %890 = vmatpush2.msra.mxu0 0.0
      %891 = vmatprep.subr.mxu0 0.0
      %892 = vmatpush2.msra.mxu0 0.0
      %893 = vmatprep.subr.mxu0 0.0
      %894 = vmatpush2.msra.mxu0 0.0
      %895 = vmatprep.subr.mxu0 0.0
      %896 = vmatpush2.msra.mxu0 0.0
      %897 = vmatprep.mubr.f32.mxu0 0.0
      %898 = vmatmul.mubr.f32.gmra.mxu0 %v285
      %v899 = vpop.f32.mrf.mxu0
      %v900 = vadd.f32 0.0, %v899
      %v901 = vpop.f32.mrf.mxu0
      %902 = vmatprep.mubr.f32.mxu0 0.0
      %903 = vmatmul.mubr.f32.gmra.mxu0 %v286
      %v904 = vpop.f32.mrf.mxu0
      %v905 = vadd.f32 0.0, %v904
      %v906 = vpop.f32.mrf.mxu0
      %907 = vmatprep.mubr.f32.mxu0 0.0
      %908 = vmatmul.mubr.f32.gmra.mxu0 %v288
      %v909 = vpop.f32.mrf.mxu0
      %v910 = vadd.f32 0.0, %v909
      %v911 = vpop.f32.mrf.mxu0
      %912 = vmatprep.mubr.f32.mxu0 0.0
      %913 = vmatmul.mubr.f32.gmra.mxu0 %v289
      %v914 = vpop.f32.mrf.mxu0
      %v915 = vadd.f32 0.0, %v914
      %v916 = vpop.f32.mrf.mxu0
      %917 = vmatprep.mubr.f32.mxu0 0.0
      %918 = vmatmul.mubr.f32.gmra.mxu0 %v291
      %v919 = vpop.f32.mrf.mxu0
      %v920 = vadd.f32 0.0, %v919
      %v921 = vpop.f32.mrf.mxu0
      %922 = vmatprep.mubr.f32.mxu0 0.0
      %923 = vmatmul.mubr.f32.gmra.mxu0 %v292
      %v924 = vpop.f32.mrf.mxu0
      %v925 = vadd.f32 0.0, %v924
      %v926 = vpop.f32.mrf.mxu0
      %927 = vmatprep.mubr.f32.mxu0 0.0
      %928 = vmatmul.mubr.f32.gmra.mxu0 %v294
      %v929 = vpop.f32.mrf.mxu0
      %v930 = vadd.f32 0.0, %v929
      %v931 = vpop.f32.mrf.mxu0
      %932 = vmatprep.mubr.f32.mxu0 0.0
      %933 = vmatmul.mubr.f32.gmra.mxu0 %v295
      %v934 = vpop.f32.mrf.mxu0
      %v935 = vadd.f32 0.0, %v934
      %v936 = vpop.f32.mrf.mxu0
      %937 = vmatprep.mubr.f32.mxu0 0.0
      %938 = vmatmul.mubr.f32.gmra.mxu0 %v297
      %v939 = vpop.f32.mrf.mxu0
      %v940 = vadd.f32 0.0, %v939
      %v941 = vpop.f32.mrf.mxu0
      %942 = vmatprep.mubr.f32.mxu0 0.0
      %943 = vmatmul.mubr.f32.gmra.mxu0 %v298
      %v944 = vpop.f32.mrf.mxu0
      %v945 = vadd.f32 0.0, %v944
      %v946 = vpop.f32.mrf.mxu0
      %947 = vmatprep.mubr.f32.mxu0 0.0
      %948 = vmatmul.mubr.f32.gmra.mxu0 %v300
      %v949 = vpop.f32.mrf.mxu0
      %v950 = vadd.f32 0.0, %v949
      %v951 = vpop.f32.mrf.mxu0
      %952 = vmatprep.mubr.f32.mxu0 0.0
      %953 = vmatmul.mubr.f32.gmra.mxu0 %v301
      %v954 = vpop.f32.mrf.mxu0
      %v955 = vadd.f32 0.0, %v954
      %v956 = vpop.f32.mrf.mxu0
      %957 = vmatprep.mubr.f32.mxu0 0.0
      %958 = vmatmul.mubr.f32.gmra.mxu0 %v303
      %v959 = vpop.f32.mrf.mxu0
      %v960 = vadd.f32 0.0, %v959
      %v961 = vpop.f32.mrf.mxu0
      %962 = vmatprep.mubr.f32.mxu0 0.0
      %963 = vmatmul.mubr.f32.gmra.mxu0 %v304
      %v964 = vpop.f32.mrf.mxu0
      %v965 = vadd.f32 0.0, %v964
      %v966 = vpop.f32.mrf.mxu0
      %967 = vmatprep.mubr.f32.mxu0 0.0
      %968 = vmatmul.mubr.f32.gmra.mxu0 %v306
      %v969 = vpop.f32.mrf.mxu0
      %v970 = vadd.f32 0.0, %v969
      %v971 = vpop.f32.mrf.mxu0
      %972 = vmatprep.mubr.f32.mxu0 0.0
      %973 = vmatmul.mubr.f32.gmra.mxu0 %v307
      %v974 = vpop.f32.mrf.mxu0
      %v975 = vadd.f32 0.0, %v974
      %v976 = vpop.f32.mrf.mxu0
      %977 = vmatprep.mubr.f32.mxu0 0.0
      %978 = vmatmul.mubr.f32.gmra.mxu0 %v309
      %v979 = vpop.f32.mrf.mxu0
      %v980 = vadd.f32 0.0, %v979
      %v981 = vpop.f32.mrf.mxu0
      %982 = vmatprep.mubr.f32.mxu0 0.0
      %983 = vmatmul.mubr.f32.gmra.mxu0 %v310
      %v984 = vpop.f32.mrf.mxu0
      %v985 = vadd.f32 0.0, %v984
      %v986 = vpop.f32.mrf.mxu0
      %987 = vmatprep.mubr.f32.mxu0 0.0
      %988 = vmatmul.mubr.f32.gmra.mxu0 %v312
      %v989 = vpop.f32.mrf.mxu0
      %v990 = vadd.f32 0.0, %v989
      %v991 = vpop.f32.mrf.mxu0
      %992 = vmatprep.mubr.f32.mxu0 0.0
      %993 = vmatmul.mubr.f32.gmra.mxu0 %v313
      %v994 = vpop.f32.mrf.mxu0
      %v995 = vadd.f32 0.0, %v994
      %v996 = vpop.f32.mrf.mxu0
      %997 = vmatprep.mubr.f32.mxu0 0.0
      %998 = vmatmul.mubr.f32.gmra.mxu0 %v315
      %v999 = vpop.f32.mrf.mxu0
      %v1000 = vadd.f32 0.0, %v999
      %v1001 = vpop.f32.mrf.mxu0
      %1002 = vmatprep.mubr.f32.mxu0 0.0
      %1003 = vmatmul.mubr.f32.gmra.mxu0 %v316
      %v1004 = vpop.f32.mrf.mxu0
      %v1005 = vadd.f32 0.0, %v1004
      %v1006 = vpop.f32.mrf.mxu0
      %1007 = vmatprep.mubr.f32.mxu0 0.0
      %1008 = vmatmul.mubr.f32.gmra.mxu0 %v318
      %v1009 = vpop.f32.mrf.mxu0
      %v1010 = vadd.f32 0.0, %v1009
      %v1011 = vpop.f32.mrf.mxu0
      %1012 = vmatprep.mubr.f32.mxu0 0.0
      %1013 = vmatmul.mubr.f32.gmra.mxu0 %v319
      %v1014 = vpop.f32.mrf.mxu0
      %v1015 = vadd.f32 0.0, %v1014
      %v1016 = vpop.f32.mrf.mxu0
      %1017 = vmatprep.mubr.f32.mxu0 0.0
      %1018 = vmatmul.mubr.f32.gmra.mxu0 %v321
      %v1019 = vpop.f32.mrf.mxu0
      %v1020 = vadd.f32 0.0, %v1019
      %v1021 = vpop.f32.mrf.mxu0
      %1022 = vmatprep.mubr.f32.mxu0 0.0
      %1023 = vmatmul.mubr.f32.gmra.mxu0 %v322
      %v1024 = vpop.f32.mrf.mxu0
      %v1025 = vadd.f32 0.0, %v1024
      %v1026 = vpop.f32.mrf.mxu0
      %1027 = vmatprep.mubr.f32.mxu0 0.0
      %1028 = vmatmul.mubr.f32.gmra.mxu0 %v324
      %v1029 = vpop.f32.mrf.mxu0
      %v1030 = vadd.f32 0.0, %v1029
      %v1031 = vpop.f32.mrf.mxu0
      %1032 = vmatprep.mubr.f32.mxu0 0.0
      %1033 = vmatmul.mubr.f32.gmra.mxu0 %v325
      %v1034 = vpop.f32.mrf.mxu0
      %v1035 = vadd.f32 0.0, %v1034
      %v1036 = vpop.f32.mrf.mxu0
      %1037 = vmatprep.mubr.f32.mxu0 0.0
      %1038 = vmatmul.mubr.f32.gmra.mxu0 %v327
      %v1039 = vpop.f32.mrf.mxu0
      %v1040 = vadd.f32 0.0, %v1039
      %v1041 = vpop.f32.mrf.mxu0
      %1042 = vmatprep.mubr.f32.mxu0 0.0
      %1043 = vmatmul.mubr.f32.gmra.mxu0 %v328
      %v1044 = vpop.f32.mrf.mxu0
      %v1045 = vadd.f32 0.0, %v1044
      %v1046 = vpop.f32.mrf.mxu0
      %1047 = vmatprep.mubr.f32.mxu0 0.0
      %1048 = vmatmul.mubr.f32.gmra.mxu0 %v330
      %v1049 = vpop.f32.mrf.mxu0
      %v1050 = vadd.f32 0.0, %v1049
      %v1051 = vpop.f32.mrf.mxu0
      %1052 = vmatprep.mubr.f32.mxu0 0.0
      %1053 = vmatmul.mubr.f32.gmra.mxu0 %v331
      %v1054 = vpop.f32.mrf.mxu0
      %v1055 = vadd.f32 0.0, %v1054
      %v1056 = vpop.f32.mrf.mxu0
      %1057 = vdwg.mxu0
      %v1058 = vadd.f32 %v658, %v900
      %v1059 = vadd.f32 %v663, %v905
      %v1060 = vadd.f32 %v668, %v910
      %v1061 = vadd.f32 %v673, %v915
      %v1062 = vadd.f32 %v678, %v920
      %v1063 = vadd.f32 %v683, %v925
      %v1064 = vadd.f32 %v688, %v930
      %v1065 = vadd.f32 %v693, %v935
      %v1066 = vadd.f32 %v698, %v940
      %v1067 = vadd.f32 %v703, %v945
      %v1068 = vadd.f32 %v708, %v950
      %v1069 = vadd.f32 %v713, %v955
      %v1070 = vadd.f32 %v718, %v960
      %v1071 = vadd.f32 %v723, %v965
      %v1072 = vadd.f32 %v728, %v970
      %v1073 = vadd.f32 %v733, %v975
      %v1074 = vadd.f32 %v738, %v980
      %v1075 = vadd.f32 %v743, %v985
      %v1076 = vadd.f32 %v748, %v990
      %v1077 = vadd.f32 %v753, %v995
      %v1078 = vadd.f32 %v758, %v1000
      %v1079 = vadd.f32 %v763, %v1005
      %v1080 = vadd.f32 %v768, %v1010
      %v1081 = vadd.f32 %v773, %v1015
      %v1082 = vadd.f32 %v778, %v1020
      %v1083 = vadd.f32 %v783, %v1025
      %v1084 = vadd.f32 %v788, %v1030
      %v1085 = vadd.f32 %v793, %v1035
      %v1086 = vadd.f32 %v798, %v1040
      %v1087 = vadd.f32 %v803, %v1045
      %v1088 = vadd.f32 %v808, %v1050
      %v1089 = vadd.f32 %v813, %v1055
      %v1090 = vrot.slane %v279, 1
      %v1091 = vrot.slane %v282, 1
      %v1092 = vrot.slane %v285, 1
      %v1093 = vrot.slane %v288, 1
      %v1094 = vrot.slane %v291, 1
      %v1095 = vrot.slane %v294, 1
      %v1096 = vrot.slane %v297, 1
      %v1097 = vrot.slane %v300, 1
      %v1098 = vrot.slane %v303, 1
      %v1099 = vrot.slane %v306, 1
      %v1100 = vrot.slane %v309, 1
      %v1101 = vrot.slane %v312, 1
      %v1102 = vrot.slane %v315, 1
      %v1103 = vrot.slane %v318, 1
      %v1104 = vrot.slane %v321, 1
      %v1105 = vrot.slane %v324, 1
      %v1106 = vrot.slane %v327, 1
      %v1107 = vrot.slane %v330, 1
      %v1108 = vrot.slane %v280, 1
      %v1109 = vrot.slane %v283, 1
      %v1110 = vrot.slane %v286, 1
      %v1111 = vrot.slane %v289, 1
      %v1112 = vrot.slane %v292, 1
      %v1113 = vrot.slane %v295, 1
      %v1114 = vrot.slane %v298, 1
      %v1115 = vrot.slane %v301, 1
      %v1116 = vrot.slane %v304, 1
      %v1117 = vrot.slane %v307, 1
      %v1118 = vrot.slane %v310, 1
      %v1119 = vrot.slane %v313, 1
      %v1120 = vrot.slane %v316, 1
      %v1121 = vrot.slane %v319, 1
      %v1122 = vrot.slane %v322, 1
      %v1123 = vrot.slane %v325, 1
      %v1124 = vrot.slane %v328, 1
      %v1125 = vrot.slane %v331, 1
      %v1126 = vrot.slane %v281, 1
      %v1127 = vrot.slane %v284, 1
      %v1128 = vrot.slane %v287, 1
      %v1129 = vrot.slane %v290, 1
      %v1130 = vrot.slane %v293, 1
      %v1131 = vrot.slane %v296, 1
      %v1132 = vrot.slane %v299, 1
      %v1133 = vrot.slane %v302, 1
      %v1134 = vrot.slane %v305, 1
      %v1135 = vrot.slane %v308, 1
      %v1136 = vrot.slane %v311, 1
      %v1137 = vrot.slane %v314, 1
      %v1138 = vrot.slane %v317, 1
      %v1139 = vrot.slane %v320, 1
      %v1140 = vrot.slane %v323, 1
      %v1141 = vrot.slane %v326, 1
      %v1142 = vrot.slane %v329, 1
      %v1143 = vrot.slane %v332, 1
      %v1144 = vlaneseq
      %v1145 = vshrl.u32 %v1144, 7
      %vm1146 = vcmp.lt.s32.totalorder %v1145, 7
      %v1147 = vsel %vm1146, %v1108, %v1126
      %v1148 = vsel %vm1146, %v1109, %v1127
      %v1149 = vsel %vm1146, %v1110, %v1128
      %v1150 = vsel %vm1146, %v1111, %v1129
      %v1151 = vsel %vm1146, %v1112, %v1130
      %v1152 = vsel %vm1146, %v1113, %v1131
      %v1153 = vsel %vm1146, %v1114, %v1132
      %v1154 = vsel %vm1146, %v1115, %v1133
      %v1155 = vsel %vm1146, %v1116, %v1134
      %v1156 = vsel %vm1146, %v1117, %v1135
      %v1157 = vsel %vm1146, %v1118, %v1136
      %v1158 = vsel %vm1146, %v1119, %v1137
      %v1159 = vsel %vm1146, %v1120, %v1138
      %v1160 = vsel %vm1146, %v1121, %v1139
      %v1161 = vsel %vm1146, %v1122, %v1140
      %v1162 = vsel %vm1146, %v1123, %v1141
      %v1163 = vsel %vm1146, %v1124, %v1142
      %v1164 = vsel %vm1146, %v1125, %v1143
      %v1165 = vsel %vm1146, %v1090, %v1108
      %v1166 = vsel %vm1146, %v1091, %v1109
      %v1167 = vsel %vm1146, %v1092, %v1110
      %v1168 = vsel %vm1146, %v1093, %v1111
      %v1169 = vsel %vm1146, %v1094, %v1112
      %v1170 = vsel %vm1146, %v1095, %v1113
      %v1171 = vsel %vm1146, %v1096, %v1114
      %v1172 = vsel %vm1146, %v1097, %v1115
      %v1173 = vsel %vm1146, %v1098, %v1116
      %v1174 = vsel %vm1146, %v1099, %v1117
      %v1175 = vsel %vm1146, %v1100, %v1118
      %v1176 = vsel %vm1146, %v1101, %v1119
      %v1177 = vsel %vm1146, %v1102, %v1120
      %v1178 = vsel %vm1146, %v1103, %v1121
      %v1179 = vsel %vm1146, %v1104, %v1122
      %v1180 = vsel %vm1146, %v1105, %v1123
      %v1181 = vsel %vm1146, %v1106, %v1124
      %v1182 = vsel %vm1146, %v1107, %v1125
      %s1183 = scalar_lea.vmem %s1, 128
      %v1184 = vld [vmem:[%s1183] sm:$0xff]
      %v1185 = vld [vmem:[%s1183 + $0x8] sm:$0xff]
      %v1186 = vld [vmem:[%s1183 + $0x10] sm:$0xff]
      %v1187 = vld [vmem:[%s1183 + $0x18] sm:$0xff]
      %v1188 = vld [vmem:[%s1183 + $0x20] sm:$0xff]
      %v1189 = vld [vmem:[%s1183 + $0x28] sm:$0xff]
      %v1190 = vld [vmem:[%s1183 + $0x30] sm:$0xff]
      %v1191 = vld [vmem:[%s1183 + $0x38] sm:$0xff]
      %v1192 = vld [vmem:[%s1183 + $0x40] sm:$0xff]
      %v1193 = vld [vmem:[%s1183 + $0x48] sm:$0xff]
      %v1194 = vld [vmem:[%s1183 + $0x50] sm:$0xff]
      %v1195 = vld [vmem:[%s1183 + $0x58] sm:$0xff]
      %v1196 = vld [vmem:[%s1183 + $0x60] sm:$0xff]
      %v1197 = vld [vmem:[%s1183 + $0x68] sm:$0xff]
      %v1198 = vld [vmem:[%s1183 + $0x70] sm:$0xff]
      %v1199 = vld [vmem:[%s1183 + $0x78] sm:$0xff]
      %1200 = vmatprep.subr.mxu0 0.0
      %1201 = vmatpush1.msra.mxu0 %v1199
      %1202 = vmatprep.subr.mxu0 0.0
      %1203 = vmatpush1.msra.mxu0 %v1198
      %1204 = vmatprep.subr.mxu0 0.0
      %1205 = vmatpush1.msra.mxu0 %v1197
      %1206 = vmatprep.subr.mxu0 0.0
      %1207 = vmatpush1.msra.mxu0 %v1196
      %1208 = vmatprep.subr.mxu0 0.0
      %1209 = vmatpush1.msra.mxu0 %v1195
      %1210 = vmatprep.subr.mxu0 0.0
      %1211 = vmatpush1.msra.mxu0 %v1194
      %1212 = vmatprep.subr.mxu0 0.0
      %1213 = vmatpush1.msra.mxu0 %v1193
      %1214 = vmatprep.subr.mxu0 0.0
      %1215 = vmatpush1.msra.mxu0 %v1192
      %1216 = vmatprep.subr.mxu0 0.0
      %1217 = vmatpush1.msra.mxu0 %v1191
      %1218 = vmatprep.subr.mxu0 0.0
      %1219 = vmatpush1.msra.mxu0 %v1190
      %1220 = vmatprep.subr.mxu0 0.0
      %1221 = vmatpush1.msra.mxu0 %v1189
      %1222 = vmatprep.subr.mxu0 0.0
      %1223 = vmatpush1.msra.mxu0 %v1188
      %1224 = vmatprep.subr.mxu0 0.0
      %1225 = vmatpush1.msra.mxu0 %v1187
      %1226 = vmatprep.subr.mxu0 0.0
      %1227 = vmatpush1.msra.mxu0 %v1186
      %1228 = vmatprep.subr.mxu0 0.0
      %1229 = vmatpush1.msra.mxu0 %v1185
      %1230 = vmatprep.subr.mxu0 0.0
      %1231 = vmatpush1.msra.mxu0 %v1184
      %1232 = vmatprep.subr.mxu0 0.0
      %1233 = vmatpush2.msra.mxu0 0.0
      %1234 = vmatprep.subr.mxu0 0.0
      %1235 = vmatpush2.msra.mxu0 0.0
      %1236 = vmatprep.subr.mxu0 0.0
      %1237 = vmatpush2.msra.mxu0 0.0
      %1238 = vmatprep.subr.mxu0 0.0
      %1239 = vmatpush2.msra.mxu0 0.0
      %1240 = vmatprep.subr.mxu0 0.0
      %1241 = vmatpush2.msra.mxu0 0.0
      %1242 = vmatprep.subr.mxu0 0.0
      %1243 = vmatpush2.msra.mxu0 0.0
      %1244 = vmatprep.subr.mxu0 0.0
      %1245 = vmatpush2.msra.mxu0 0.0
      %1246 = vmatprep.subr.mxu0 0.0
      %1247 = vmatpush2.msra.mxu0 0.0
      %1248 = vmatprep.subr.mxu0 0.0
      %1249 = vmatpush2.msra.mxu0 0.0
      %1250 = vmatprep.subr.mxu0 0.0
      %1251 = vmatpush2.msra.mxu0 0.0
      %1252 = vmatprep.subr.mxu0 0.0
      %1253 = vmatpush2.msra.mxu0 0.0
      %1254 = vmatprep.subr.mxu0 0.0
      %1255 = vmatpush2.msra.mxu0 0.0
      %1256 = vmatprep.subr.mxu0 0.0
      %1257 = vmatpush2.msra.mxu0 0.0
      %1258 = vmatprep.subr.mxu0 0.0
      %1259 = vmatpush2.msra.mxu0 0.0
      %1260 = vmatprep.subr.mxu0 0.0
      %1261 = vmatpush2.msra.mxu0 0.0
      %1262 = vmatprep.subr.mxu0 0.0
      %1263 = vmatpush2.msra.mxu0 0.0
      %1264 = vmatprep.mubr.f32.mxu0 0.0
      %1265 = vmatmul.mubr.f32.gmra.mxu0 %v1165
      %v1266 = vpop.f32.mrf.mxu0
      %v1267 = vadd.f32 0.0, %v1266
      %v1268 = vpop.f32.mrf.mxu0
      %1269 = vmatprep.mubr.f32.mxu0 0.0
      %1270 = vmatmul.mubr.f32.gmra.mxu0 %v1147
      %v1271 = vpop.f32.mrf.mxu0
      %v1272 = vadd.f32 0.0, %v1271
      %v1273 = vpop.f32.mrf.mxu0
      %1274 = vmatprep.mubr.f32.mxu0 0.0
      %1275 = vmatmul.mubr.f32.gmra.mxu0 %v1166
      %v1276 = vpop.f32.mrf.mxu0
      %v1277 = vadd.f32 0.0, %v1276
      %v1278 = vpop.f32.mrf.mxu0
      %1279 = vmatprep.mubr.f32.mxu0 0.0
      %1280 = vmatmul.mubr.f32.gmra.mxu0 %v1148
      %v1281 = vpop.f32.mrf.mxu0
      %v1282 = vadd.f32 0.0, %v1281
      %v1283 = vpop.f32.mrf.mxu0
      %1284 = vmatprep.mubr.f32.mxu0 0.0
      %1285 = vmatmul.mubr.f32.gmra.mxu0 %v1167
      %v1286 = vpop.f32.mrf.mxu0
      %v1287 = vadd.f32 0.0, %v1286
      %v1288 = vpop.f32.mrf.mxu0
      %1289 = vmatprep.mubr.f32.mxu0 0.0
      %1290 = vmatmul.mubr.f32.gmra.mxu0 %v1149
      %v1291 = vpop.f32.mrf.mxu0
      %v1292 = vadd.f32 0.0, %v1291
      %v1293 = vpop.f32.mrf.mxu0
      %1294 = vmatprep.mubr.f32.mxu0 0.0
      %1295 = vmatmul.mubr.f32.gmra.mxu0 %v1168
      %v1296 = vpop.f32.mrf.mxu0
      %v1297 = vadd.f32 0.0, %v1296
      %v1298 = vpop.f32.mrf.mxu0
      %1299 = vmatprep.mubr.f32.mxu0 0.0
      %1300 = vmatmul.mubr.f32.gmra.mxu0 %v1150
      %v1301 = vpop.f32.mrf.mxu0
      %v1302 = vadd.f32 0.0, %v1301
      %v1303 = vpop.f32.mrf.mxu0
      %1304 = vmatprep.mubr.f32.mxu0 0.0
      %1305 = vmatmul.mubr.f32.gmra.mxu0 %v1169
      %v1306 = vpop.f32.mrf.mxu0
      %v1307 = vadd.f32 0.0, %v1306
      %v1308 = vpop.f32.mrf.mxu0
      %1309 = vmatprep.mubr.f32.mxu0 0.0
      %1310 = vmatmul.mubr.f32.gmra.mxu0 %v1151
      %v1311 = vpop.f32.mrf.mxu0
      %v1312 = vadd.f32 0.0, %v1311
      %v1313 = vpop.f32.mrf.mxu0
      %1314 = vmatprep.mubr.f32.mxu0 0.0
      %1315 = vmatmul.mubr.f32.gmra.mxu0 %v1170
      %v1316 = vpop.f32.mrf.mxu0
      %v1317 = vadd.f32 0.0, %v1316
      %v1318 = vpop.f32.mrf.mxu0
      %1319 = vmatprep.mubr.f32.mxu0 0.0
      %1320 = vmatmul.mubr.f32.gmra.mxu0 %v1152
      %v1321 = vpop.f32.mrf.mxu0
      %v1322 = vadd.f32 0.0, %v1321
      %v1323 = vpop.f32.mrf.mxu0
      %1324 = vmatprep.mubr.f32.mxu0 0.0
      %1325 = vmatmul.mubr.f32.gmra.mxu0 %v1171
      %v1326 = vpop.f32.mrf.mxu0
      %v1327 = vadd.f32 0.0, %v1326
      %v1328 = vpop.f32.mrf.mxu0
      %1329 = vmatprep.mubr.f32.mxu0 0.0
      %1330 = vmatmul.mubr.f32.gmra.mxu0 %v1153
      %v1331 = vpop.f32.mrf.mxu0
      %v1332 = vadd.f32 0.0, %v1331
      %v1333 = vpop.f32.mrf.mxu0
      %1334 = vmatprep.mubr.f32.mxu0 0.0
      %1335 = vmatmul.mubr.f32.gmra.mxu0 %v1172
      %v1336 = vpop.f32.mrf.mxu0
      %v1337 = vadd.f32 0.0, %v1336
      %v1338 = vpop.f32.mrf.mxu0
      %1339 = vmatprep.mubr.f32.mxu0 0.0
      %1340 = vmatmul.mubr.f32.gmra.mxu0 %v1154
      %v1341 = vpop.f32.mrf.mxu0
      %v1342 = vadd.f32 0.0, %v1341
      %v1343 = vpop.f32.mrf.mxu0
      %1344 = vmatprep.mubr.f32.mxu0 0.0
      %1345 = vmatmul.mubr.f32.gmra.mxu0 %v1173
      %v1346 = vpop.f32.mrf.mxu0
      %v1347 = vadd.f32 0.0, %v1346
      %v1348 = vpop.f32.mrf.mxu0
      %1349 = vmatprep.mubr.f32.mxu0 0.0
      %1350 = vmatmul.mubr.f32.gmra.mxu0 %v1155
      %v1351 = vpop.f32.mrf.mxu0
      %v1352 = vadd.f32 0.0, %v1351
      %v1353 = vpop.f32.mrf.mxu0
      %1354 = vmatprep.mubr.f32.mxu0 0.0
      %1355 = vmatmul.mubr.f32.gmra.mxu0 %v1174
      %v1356 = vpop.f32.mrf.mxu0
      %v1357 = vadd.f32 0.0, %v1356
      %v1358 = vpop.f32.mrf.mxu0
      %1359 = vmatprep.mubr.f32.mxu0 0.0
      %1360 = vmatmul.mubr.f32.gmra.mxu0 %v1156
      %v1361 = vpop.f32.mrf.mxu0
      %v1362 = vadd.f32 0.0, %v1361
      %v1363 = vpop.f32.mrf.mxu0
      %1364 = vmatprep.mubr.f32.mxu0 0.0
      %1365 = vmatmul.mubr.f32.gmra.mxu0 %v1175
      %v1366 = vpop.f32.mrf.mxu0
      %v1367 = vadd.f32 0.0, %v1366
      %v1368 = vpop.f32.mrf.mxu0
      %1369 = vmatprep.mubr.f32.mxu0 0.0
      %1370 = vmatmul.mubr.f32.gmra.mxu0 %v1157
      %v1371 = vpop.f32.mrf.mxu0
      %v1372 = vadd.f32 0.0, %v1371
      %v1373 = vpop.f32.mrf.mxu0
      %1374 = vmatprep.mubr.f32.mxu0 0.0
      %1375 = vmatmul.mubr.f32.gmra.mxu0 %v1176
      %v1376 = vpop.f32.mrf.mxu0
      %v1377 = vadd.f32 0.0, %v1376
      %v1378 = vpop.f32.mrf.mxu0
      %1379 = vmatprep.mubr.f32.mxu0 0.0
      %1380 = vmatmul.mubr.f32.gmra.mxu0 %v1158
      %v1381 = vpop.f32.mrf.mxu0
      %v1382 = vadd.f32 0.0, %v1381
      %v1383 = vpop.f32.mrf.mxu0
      %1384 = vmatprep.mubr.f32.mxu0 0.0
      %1385 = vmatmul.mubr.f32.gmra.mxu0 %v1177
      %v1386 = vpop.f32.mrf.mxu0
      %v1387 = vadd.f32 0.0, %v1386
      %v1388 = vpop.f32.mrf.mxu0
      %1389 = vmatprep.mubr.f32.mxu0 0.0
      %1390 = vmatmul.mubr.f32.gmra.mxu0 %v1159
      %v1391 = vpop.f32.mrf.mxu0
      %v1392 = vadd.f32 0.0, %v1391
      %v1393 = vpop.f32.mrf.mxu0
      %1394 = vmatprep.mubr.f32.mxu0 0.0
      %1395 = vmatmul.mubr.f32.gmra.mxu0 %v1178
      %v1396 = vpop.f32.mrf.mxu0
      %v1397 = vadd.f32 0.0, %v1396
      %v1398 = vpop.f32.mrf.mxu0
      %1399 = vmatprep.mubr.f32.mxu0 0.0
      %1400 = vmatmul.mubr.f32.gmra.mxu0 %v1160
      %v1401 = vpop.f32.mrf.mxu0
      %v1402 = vadd.f32 0.0, %v1401
      %v1403 = vpop.f32.mrf.mxu0
      %1404 = vmatprep.mubr.f32.mxu0 0.0
      %1405 = vmatmul.mubr.f32.gmra.mxu0 %v1179
      %v1406 = vpop.f32.mrf.mxu0
      %v1407 = vadd.f32 0.0, %v1406
      %v1408 = vpop.f32.mrf.mxu0
      %1409 = vmatprep.mubr.f32.mxu0 0.0
      %1410 = vmatmul.mubr.f32.gmra.mxu0 %v1161
      %v1411 = vpop.f32.mrf.mxu0
      %v1412 = vadd.f32 0.0, %v1411
      %v1413 = vpop.f32.mrf.mxu0
      %1414 = vmatprep.mubr.f32.mxu0 0.0
      %1415 = vmatmul.mubr.f32.gmra.mxu0 %v1180
      %v1416 = vpop.f32.mrf.mxu0
      %v1417 = vadd.f32 0.0, %v1416
      %v1418 = vpop.f32.mrf.mxu0
      %1419 = vmatprep.mubr.f32.mxu0 0.0
      %1420 = vmatmul.mubr.f32.gmra.mxu0 %v1162
      %v1421 = vpop.f32.mrf.mxu0
      %v1422 = vadd.f32 0.0, %v1421
      %v1423 = vpop.f32.mrf.mxu0
      %1424 = vdwg.mxu0
      %v1425 = vadd.f32 %v1058, %v1267
      %v1426 = vadd.f32 %v1059, %v1272
      %v1427 = vadd.f32 %v1060, %v1277
      %v1428 = vadd.f32 %v1061, %v1282
      %v1429 = vadd.f32 %v1062, %v1287
      %v1430 = vadd.f32 %v1063, %v1292
      %v1431 = vadd.f32 %v1064, %v1297
      %v1432 = vadd.f32 %v1065, %v1302
      %v1433 = vadd.f32 %v1066, %v1307
      %v1434 = vadd.f32 %v1067, %v1312
      %v1435 = vadd.f32 %v1068, %v1317
      %v1436 = vadd.f32 %v1069, %v1322
      %v1437 = vadd.f32 %v1070, %v1327
      %v1438 = vadd.f32 %v1071, %v1332
      %v1439 = vadd.f32 %v1072, %v1337
      %v1440 = vadd.f32 %v1073, %v1342
      %v1441 = vadd.f32 %v1074, %v1347
      %v1442 = vadd.f32 %v1075, %v1352
      %v1443 = vadd.f32 %v1076, %v1357
      %v1444 = vadd.f32 %v1077, %v1362
      %v1445 = vadd.f32 %v1078, %v1367
      %v1446 = vadd.f32 %v1079, %v1372
      %v1447 = vadd.f32 %v1080, %v1377
      %v1448 = vadd.f32 %v1081, %v1382
      %v1449 = vadd.f32 %v1082, %v1387
      %v1450 = vadd.f32 %v1083, %v1392
      %v1451 = vadd.f32 %v1084, %v1397
      %v1452 = vadd.f32 %v1085, %v1402
      %v1453 = vadd.f32 %v1086, %v1407
      %v1454 = vadd.f32 %v1087, %v1412
      %v1455 = vadd.f32 %v1088, %v1417
      %v1456 = vadd.f32 %v1089, %v1422
      %s1457 = scalar_lea.vmem %s1, 512
      %v1458 = vld [vmem:[%s1457] sm:$0xff]
      %v1459 = vld [vmem:[%s1457 + $0x8] sm:$0xff]
      %v1460 = vld [vmem:[%s1457 + $0x10] sm:$0xff]
      %v1461 = vld [vmem:[%s1457 + $0x18] sm:$0xff]
      %v1462 = vld [vmem:[%s1457 + $0x20] sm:$0xff]
      %v1463 = vld [vmem:[%s1457 + $0x28] sm:$0xff]
      %v1464 = vld [vmem:[%s1457 + $0x30] sm:$0xff]
      %v1465 = vld [vmem:[%s1457 + $0x38] sm:$0xff]
      %v1466 = vld [vmem:[%s1457 + $0x40] sm:$0xff]
      %v1467 = vld [vmem:[%s1457 + $0x48] sm:$0xff]
      %v1468 = vld [vmem:[%s1457 + $0x50] sm:$0xff]
      %v1469 = vld [vmem:[%s1457 + $0x58] sm:$0xff]
      %v1470 = vld [vmem:[%s1457 + $0x60] sm:$0xff]
      %v1471 = vld [vmem:[%s1457 + $0x68] sm:$0xff]
      %v1472 = vld [vmem:[%s1457 + $0x70] sm:$0xff]
      %v1473 = vld [vmem:[%s1457 + $0x78] sm:$0xff]
      %1474 = vmatprep.subr.mxu0 0.0
      %1475 = vmatpush1.msra.mxu0 %v1473
      %1476 = vmatprep.subr.mxu0 0.0
      %1477 = vmatpush1.msra.mxu0 %v1472
      %1478 = vmatprep.subr.mxu0 0.0
      %1479 = vmatpush1.msra.mxu0 %v1471
      %1480 = vmatprep.subr.mxu0 0.0
      %1481 = vmatpush1.msra.mxu0 %v1470
      %1482 = vmatprep.subr.mxu0 0.0
      %1483 = vmatpush1.msra.mxu0 %v1469
      %1484 = vmatprep.subr.mxu0 0.0
      %1485 = vmatpush1.msra.mxu0 %v1468
      %1486 = vmatprep.subr.mxu0 0.0
      %1487 = vmatpush1.msra.mxu0 %v1467
      %1488 = vmatprep.subr.mxu0 0.0
      %1489 = vmatpush1.msra.mxu0 %v1466
      %1490 = vmatprep.subr.mxu0 0.0
      %1491 = vmatpush1.msra.mxu0 %v1465
      %1492 = vmatprep.subr.mxu0 0.0
      %1493 = vmatpush1.msra.mxu0 %v1464
      %1494 = vmatprep.subr.mxu0 0.0
      %1495 = vmatpush1.msra.mxu0 %v1463
      %1496 = vmatprep.subr.mxu0 0.0
      %1497 = vmatpush1.msra.mxu0 %v1462
      %1498 = vmatprep.subr.mxu0 0.0
      %1499 = vmatpush1.msra.mxu0 %v1461
      %1500 = vmatprep.subr.mxu0 0.0
      %1501 = vmatpush1.msra.mxu0 %v1460
      %1502 = vmatprep.subr.mxu0 0.0
      %1503 = vmatpush1.msra.mxu0 %v1459
      %1504 = vmatprep.subr.mxu0 0.0
      %1505 = vmatpush1.msra.mxu0 %v1458
      %1506 = vmatprep.subr.mxu0 0.0
      %1507 = vmatpush2.msra.mxu0 0.0
      %1508 = vmatprep.subr.mxu0 0.0
      %1509 = vmatpush2.msra.mxu0 0.0
      %1510 = vmatprep.subr.mxu0 0.0
      %1511 = vmatpush2.msra.mxu0 0.0
      %1512 = vmatprep.subr.mxu0 0.0
      %1513 = vmatpush2.msra.mxu0 0.0
      %1514 = vmatprep.subr.mxu0 0.0
      %1515 = vmatpush2.msra.mxu0 0.0
      %1516 = vmatprep.subr.mxu0 0.0
      %1517 = vmatpush2.msra.mxu0 0.0
      %1518 = vmatprep.subr.mxu0 0.0
      %1519 = vmatpush2.msra.mxu0 0.0
      %1520 = vmatprep.subr.mxu0 0.0
      %1521 = vmatpush2.msra.mxu0 0.0
      %1522 = vmatprep.subr.mxu0 0.0
      %1523 = vmatpush2.msra.mxu0 0.0
      %1524 = vmatprep.subr.mxu0 0.0
      %1525 = vmatpush2.msra.mxu0 0.0
      %1526 = vmatprep.subr.mxu0 0.0
      %1527 = vmatpush2.msra.mxu0 0.0
      %1528 = vmatprep.subr.mxu0 0.0
      %1529 = vmatpush2.msra.mxu0 0.0
      %1530 = vmatprep.subr.mxu0 0.0
      %1531 = vmatpush2.msra.mxu0 0.0
      %1532 = vmatprep.subr.mxu0 0.0
      %1533 = vmatpush2.msra.mxu0 0.0
      %1534 = vmatprep.subr.mxu0 0.0
      %1535 = vmatpush2.msra.mxu0 0.0
      %1536 = vmatprep.subr.mxu0 0.0
      %1537 = vmatpush2.msra.mxu0 0.0
      %1538 = vmatprep.mubr.f32.mxu0 0.0
      %1539 = vmatmul.mubr.f32.gmra.mxu0 %v1166
      %v1540 = vpop.f32.mrf.mxu0
      %v1541 = vadd.f32 0.0, %v1540
      %v1542 = vpop.f32.mrf.mxu0
      %1543 = vmatprep.mubr.f32.mxu0 0.0
      %1544 = vmatmul.mubr.f32.gmra.mxu0 %v1148
      %v1545 = vpop.f32.mrf.mxu0
      %v1546 = vadd.f32 0.0, %v1545
      %v1547 = vpop.f32.mrf.mxu0
      %1548 = vmatprep.mubr.f32.mxu0 0.0
      %1549 = vmatmul.mubr.f32.gmra.mxu0 %v1167
      %v1550 = vpop.f32.mrf.mxu0
      %v1551 = vadd.f32 0.0, %v1550
      %v1552 = vpop.f32.mrf.mxu0
      %1553 = vmatprep.mubr.f32.mxu0 0.0
      %1554 = vmatmul.mubr.f32.gmra.mxu0 %v1149
      %v1555 = vpop.f32.mrf.mxu0
      %v1556 = vadd.f32 0.0, %v1555
      %v1557 = vpop.f32.mrf.mxu0
      %1558 = vmatprep.mubr.f32.mxu0 0.0
      %1559 = vmatmul.mubr.f32.gmra.mxu0 %v1168
      %v1560 = vpop.f32.mrf.mxu0
      %v1561 = vadd.f32 0.0, %v1560
      %v1562 = vpop.f32.mrf.mxu0
      %1563 = vmatprep.mubr.f32.mxu0 0.0
      %1564 = vmatmul.mubr.f32.gmra.mxu0 %v1150
      %v1565 = vpop.f32.mrf.mxu0
      %v1566 = vadd.f32 0.0, %v1565
      %v1567 = vpop.f32.mrf.mxu0
      %1568 = vmatprep.mubr.f32.mxu0 0.0
      %1569 = vmatmul.mubr.f32.gmra.mxu0 %v1169
      %v1570 = vpop.f32.mrf.mxu0
      %v1571 = vadd.f32 0.0, %v1570
      %v1572 = vpop.f32.mrf.mxu0
      %1573 = vmatprep.mubr.f32.mxu0 0.0
      %1574 = vmatmul.mubr.f32.gmra.mxu0 %v1151
      %v1575 = vpop.f32.mrf.mxu0
      %v1576 = vadd.f32 0.0, %v1575
      %v1577 = vpop.f32.mrf.mxu0
      %1578 = vmatprep.mubr.f32.mxu0 0.0
      %1579 = vmatmul.mubr.f32.gmra.mxu0 %v1170
      %v1580 = vpop.f32.mrf.mxu0
      %v1581 = vadd.f32 0.0, %v1580
      %v1582 = vpop.f32.mrf.mxu0
      %1583 = vmatprep.mubr.f32.mxu0 0.0
      %1584 = vmatmul.mubr.f32.gmra.mxu0 %v1152
      %v1585 = vpop.f32.mrf.mxu0
      %v1586 = vadd.f32 0.0, %v1585
      %v1587 = vpop.f32.mrf.mxu0
      %1588 = vmatprep.mubr.f32.mxu0 0.0
      %1589 = vmatmul.mubr.f32.gmra.mxu0 %v1171
      %v1590 = vpop.f32.mrf.mxu0
      %v1591 = vadd.f32 0.0, %v1590
      %v1592 = vpop.f32.mrf.mxu0
      %1593 = vmatprep.mubr.f32.mxu0 0.0
      %1594 = vmatmul.mubr.f32.gmra.mxu0 %v1153
      %v1595 = vpop.f32.mrf.mxu0
      %v1596 = vadd.f32 0.0, %v1595
      %v1597 = vpop.f32.mrf.mxu0
      %1598 = vmatprep.mubr.f32.mxu0 0.0
      %1599 = vmatmul.mubr.f32.gmra.mxu0 %v1172
      %v1600 = vpop.f32.mrf.mxu0
      %v1601 = vadd.f32 0.0, %v1600
      %v1602 = vpop.f32.mrf.mxu0
      %1603 = vmatprep.mubr.f32.mxu0 0.0
      %1604 = vmatmul.mubr.f32.gmra.mxu0 %v1154
      %v1605 = vpop.f32.mrf.mxu0
      %v1606 = vadd.f32 0.0, %v1605
      %v1607 = vpop.f32.mrf.mxu0
      %1608 = vmatprep.mubr.f32.mxu0 0.0
      %1609 = vmatmul.mubr.f32.gmra.mxu0 %v1173
      %v1610 = vpop.f32.mrf.mxu0
      %v1611 = vadd.f32 0.0, %v1610
      %v1612 = vpop.f32.mrf.mxu0
      %1613 = vmatprep.mubr.f32.mxu0 0.0
      %1614 = vmatmul.mubr.f32.gmra.mxu0 %v1155
      %v1615 = vpop.f32.mrf.mxu0
      %v1616 = vadd.f32 0.0, %v1615
      %v1617 = vpop.f32.mrf.mxu0
      %1618 = vmatprep.mubr.f32.mxu0 0.0
      %1619 = vmatmul.mubr.f32.gmra.mxu0 %v1174
      %v1620 = vpop.f32.mrf.mxu0
      %v1621 = vadd.f32 0.0, %v1620
      %v1622 = vpop.f32.mrf.mxu0
      %1623 = vmatprep.mubr.f32.mxu0 0.0
      %1624 = vmatmul.mubr.f32.gmra.mxu0 %v1156
      %v1625 = vpop.f32.mrf.mxu0
      %v1626 = vadd.f32 0.0, %v1625
      %v1627 = vpop.f32.mrf.mxu0
      %1628 = vmatprep.mubr.f32.mxu0 0.0
      %1629 = vmatmul.mubr.f32.gmra.mxu0 %v1175
      %v1630 = vpop.f32.mrf.mxu0
      %v1631 = vadd.f32 0.0, %v1630
      %v1632 = vpop.f32.mrf.mxu0
      %1633 = vmatprep.mubr.f32.mxu0 0.0
      %1634 = vmatmul.mubr.f32.gmra.mxu0 %v1157
      %v1635 = vpop.f32.mrf.mxu0
      %v1636 = vadd.f32 0.0, %v1635
      %v1637 = vpop.f32.mrf.mxu0
      %1638 = vmatprep.mubr.f32.mxu0 0.0
      %1639 = vmatmul.mubr.f32.gmra.mxu0 %v1176
      %v1640 = vpop.f32.mrf.mxu0
      %v1641 = vadd.f32 0.0, %v1640
      %v1642 = vpop.f32.mrf.mxu0
      %1643 = vmatprep.mubr.f32.mxu0 0.0
      %1644 = vmatmul.mubr.f32.gmra.mxu0 %v1158
      %v1645 = vpop.f32.mrf.mxu0
      %v1646 = vadd.f32 0.0, %v1645
      %v1647 = vpop.f32.mrf.mxu0
      %1648 = vmatprep.mubr.f32.mxu0 0.0
      %1649 = vmatmul.mubr.f32.gmra.mxu0 %v1177
      %v1650 = vpop.f32.mrf.mxu0
      %v1651 = vadd.f32 0.0, %v1650
      %v1652 = vpop.f32.mrf.mxu0
      %1653 = vmatprep.mubr.f32.mxu0 0.0
      %1654 = vmatmul.mubr.f32.gmra.mxu0 %v1159
      %v1655 = vpop.f32.mrf.mxu0
      %v1656 = vadd.f32 0.0, %v1655
      %v1657 = vpop.f32.mrf.mxu0
      %1658 = vmatprep.mubr.f32.mxu0 0.0
      %1659 = vmatmul.mubr.f32.gmra.mxu0 %v1178
      %v1660 = vpop.f32.mrf.mxu0
      %v1661 = vadd.f32 0.0, %v1660
      %v1662 = vpop.f32.mrf.mxu0
      %1663 = vmatprep.mubr.f32.mxu0 0.0
      %1664 = vmatmul.mubr.f32.gmra.mxu0 %v1160
      %v1665 = vpop.f32.mrf.mxu0
      %v1666 = vadd.f32 0.0, %v1665
      %v1667 = vpop.f32.mrf.mxu0
      %1668 = vmatprep.mubr.f32.mxu0 0.0
      %1669 = vmatmul.mubr.f32.gmra.mxu0 %v1179
      %v1670 = vpop.f32.mrf.mxu0
      %v1671 = vadd.f32 0.0, %v1670
      %v1672 = vpop.f32.mrf.mxu0
      %1673 = vmatprep.mubr.f32.mxu0 0.0
      %1674 = vmatmul.mubr.f32.gmra.mxu0 %v1161
      %v1675 = vpop.f32.mrf.mxu0
      %v1676 = vadd.f32 0.0, %v1675
      %v1677 = vpop.f32.mrf.mxu0
      %1678 = vmatprep.mubr.f32.mxu0 0.0
      %1679 = vmatmul.mubr.f32.gmra.mxu0 %v1180
      %v1680 = vpop.f32.mrf.mxu0
      %v1681 = vadd.f32 0.0, %v1680
      %v1682 = vpop.f32.mrf.mxu0
      %1683 = vmatprep.mubr.f32.mxu0 0.0
      %1684 = vmatmul.mubr.f32.gmra.mxu0 %v1162
      %v1685 = vpop.f32.mrf.mxu0
      %v1686 = vadd.f32 0.0, %v1685
      %v1687 = vpop.f32.mrf.mxu0
      %1688 = vmatprep.mubr.f32.mxu0 0.0
      %1689 = vmatmul.mubr.f32.gmra.mxu0 %v1181
      %v1690 = vpop.f32.mrf.mxu0
      %v1691 = vadd.f32 0.0, %v1690
      %v1692 = vpop.f32.mrf.mxu0
      %1693 = vmatprep.mubr.f32.mxu0 0.0
      %1694 = vmatmul.mubr.f32.gmra.mxu0 %v1163
      %v1695 = vpop.f32.mrf.mxu0
      %v1696 = vadd.f32 0.0, %v1695
      %v1697 = vpop.f32.mrf.mxu0
      %1698 = vdwg.mxu0
      %v1699 = vadd.f32 %v1425, %v1541
      %v1700 = vadd.f32 %v1426, %v1546
      %v1701 = vadd.f32 %v1427, %v1551
      %v1702 = vadd.f32 %v1428, %v1556
      %v1703 = vadd.f32 %v1429, %v1561
      %v1704 = vadd.f32 %v1430, %v1566
      %v1705 = vadd.f32 %v1431, %v1571
      %v1706 = vadd.f32 %v1432, %v1576
      %v1707 = vadd.f32 %v1433, %v1581
      %v1708 = vadd.f32 %v1434, %v1586
      %v1709 = vadd.f32 %v1435, %v1591
      %v1710 = vadd.f32 %v1436, %v1596
      %v1711 = vadd.f32 %v1437, %v1601
      %v1712 = vadd.f32 %v1438, %v1606
      %v1713 = vadd.f32 %v1439, %v1611
      %v1714 = vadd.f32 %v1440, %v1616
      %v1715 = vadd.f32 %v1441, %v1621
      %v1716 = vadd.f32 %v1442, %v1626
      %v1717 = vadd.f32 %v1443, %v1631
      %v1718 = vadd.f32 %v1444, %v1636
      %v1719 = vadd.f32 %v1445, %v1641
      %v1720 = vadd.f32 %v1446, %v1646
      %v1721 = vadd.f32 %v1447, %v1651
      %v1722 = vadd.f32 %v1448, %v1656
      %v1723 = vadd.f32 %v1449, %v1661
      %v1724 = vadd.f32 %v1450, %v1666
      %v1725 = vadd.f32 %v1451, %v1671
      %v1726 = vadd.f32 %v1452, %v1676
      %v1727 = vadd.f32 %v1453, %v1681
      %v1728 = vadd.f32 %v1454, %v1686
      %v1729 = vadd.f32 %v1455, %v1691
      %v1730 = vadd.f32 %v1456, %v1696
      %s1731 = scalar_lea.vmem %s1, 896
      %v1732 = vld [vmem:[%s1731] sm:$0xff]
      %v1733 = vld [vmem:[%s1731 + $0x8] sm:$0xff]
      %v1734 = vld [vmem:[%s1731 + $0x10] sm:$0xff]
      %v1735 = vld [vmem:[%s1731 + $0x18] sm:$0xff]
      %v1736 = vld [vmem:[%s1731 + $0x20] sm:$0xff]
      %v1737 = vld [vmem:[%s1731 + $0x28] sm:$0xff]
      %v1738 = vld [vmem:[%s1731 + $0x30] sm:$0xff]
      %v1739 = vld [vmem:[%s1731 + $0x38] sm:$0xff]
      %v1740 = vld [vmem:[%s1731 + $0x40] sm:$0xff]
      %v1741 = vld [vmem:[%s1731 + $0x48] sm:$0xff]
      %v1742 = vld [vmem:[%s1731 + $0x50] sm:$0xff]
      %v1743 = vld [vmem:[%s1731 + $0x58] sm:$0xff]
      %v1744 = vld [vmem:[%s1731 + $0x60] sm:$0xff]
      %v1745 = vld [vmem:[%s1731 + $0x68] sm:$0xff]
      %v1746 = vld [vmem:[%s1731 + $0x70] sm:$0xff]
      %v1747 = vld [vmem:[%s1731 + $0x78] sm:$0xff]
      %1748 = vmatprep.subr.mxu0 0.0
      %1749 = vmatpush1.msra.mxu0 %v1747
      %1750 = vmatprep.subr.mxu0 0.0
      %1751 = vmatpush1.msra.mxu0 %v1746
      %1752 = vmatprep.subr.mxu0 0.0
      %1753 = vmatpush1.msra.mxu0 %v1745
      %1754 = vmatprep.subr.mxu0 0.0
      %1755 = vmatpush1.msra.mxu0 %v1744
      %1756 = vmatprep.subr.mxu0 0.0
      %1757 = vmatpush1.msra.mxu0 %v1743
      %1758 = vmatprep.subr.mxu0 0.0
      %1759 = vmatpush1.msra.mxu0 %v1742
      %1760 = vmatprep.subr.mxu0 0.0
      %1761 = vmatpush1.msra.mxu0 %v1741
      %1762 = vmatprep.subr.mxu0 0.0
      %1763 = vmatpush1.msra.mxu0 %v1740
      %1764 = vmatprep.subr.mxu0 0.0
      %1765 = vmatpush1.msra.mxu0 %v1739
      %1766 = vmatprep.subr.mxu0 0.0
      %1767 = vmatpush1.msra.mxu0 %v1738
      %1768 = vmatprep.subr.mxu0 0.0
      %1769 = vmatpush1.msra.mxu0 %v1737
      %1770 = vmatprep.subr.mxu0 0.0
      %1771 = vmatpush1.msra.mxu0 %v1736
      %1772 = vmatprep.subr.mxu0 0.0
      %1773 = vmatpush1.msra.mxu0 %v1735
      %1774 = vmatprep.subr.mxu0 0.0
      %1775 = vmatpush1.msra.mxu0 %v1734
      %1776 = vmatprep.subr.mxu0 0.0
      %1777 = vmatpush1.msra.mxu0 %v1733
      %1778 = vmatprep.subr.mxu0 0.0
      %1779 = vmatpush1.msra.mxu0 %v1732
      %1780 = vmatprep.subr.mxu0 0.0
      %1781 = vmatpush2.msra.mxu0 0.0
      %1782 = vmatprep.subr.mxu0 0.0
      %1783 = vmatpush2.msra.mxu0 0.0
      %1784 = vmatprep.subr.mxu0 0.0
      %1785 = vmatpush2.msra.mxu0 0.0
      %1786 = vmatprep.subr.mxu0 0.0
      %1787 = vmatpush2.msra.mxu0 0.0
      %1788 = vmatprep.subr.mxu0 0.0
      %1789 = vmatpush2.msra.mxu0 0.0
      %1790 = vmatprep.subr.mxu0 0.0
      %1791 = vmatpush2.msra.mxu0 0.0
      %1792 = vmatprep.subr.mxu0 0.0
      %1793 = vmatpush2.msra.mxu0 0.0
      %1794 = vmatprep.subr.mxu0 0.0
      %1795 = vmatpush2.msra.mxu0 0.0
      %1796 = vmatprep.subr.mxu0 0.0
      %1797 = vmatpush2.msra.mxu0 0.0
      %1798 = vmatprep.subr.mxu0 0.0
      %1799 = vmatpush2.msra.mxu0 0.0
      %1800 = vmatprep.subr.mxu0 0.0
      %1801 = vmatpush2.msra.mxu0 0.0
      %1802 = vmatprep.subr.mxu0 0.0
      %1803 = vmatpush2.msra.mxu0 0.0
      %1804 = vmatprep.subr.mxu0 0.0
      %1805 = vmatpush2.msra.mxu0 0.0
      %1806 = vmatprep.subr.mxu0 0.0
      %1807 = vmatpush2.msra.mxu0 0.0
      %1808 = vmatprep.subr.mxu0 0.0
      %1809 = vmatpush2.msra.mxu0 0.0
      %1810 = vmatprep.subr.mxu0 0.0
      %1811 = vmatpush2.msra.mxu0 0.0
      %1812 = vmatprep.mubr.f32.mxu0 0.0
      %1813 = vmatmul.mubr.f32.gmra.mxu0 %v1167
      %v1814 = vpop.f32.mrf.mxu0
      %v1815 = vadd.f32 0.0, %v1814
      %v1816 = vpop.f32.mrf.mxu0
      %1817 = vmatprep.mubr.f32.mxu0 0.0
      %1818 = vmatmul.mubr.f32.gmra.mxu0 %v1149
      %v1819 = vpop.f32.mrf.mxu0
      %v1820 = vadd.f32 0.0, %v1819
      %v1821 = vpop.f32.mrf.mxu0
      %1822 = vmatprep.mubr.f32.mxu0 0.0
      %1823 = vmatmul.mubr.f32.gmra.mxu0 %v1168
      %v1824 = vpop.f32.mrf.mxu0
      %v1825 = vadd.f32 0.0, %v1824
      %v1826 = vpop.f32.mrf.mxu0
      %1827 = vmatprep.mubr.f32.mxu0 0.0
      %1828 = vmatmul.mubr.f32.gmra.mxu0 %v1150
      %v1829 = vpop.f32.mrf.mxu0
      %v1830 = vadd.f32 0.0, %v1829
      %v1831 = vpop.f32.mrf.mxu0
      %1832 = vmatprep.mubr.f32.mxu0 0.0
      %1833 = vmatmul.mubr.f32.gmra.mxu0 %v1169
      %v1834 = vpop.f32.mrf.mxu0
      %v1835 = vadd.f32 0.0, %v1834
      %v1836 = vpop.f32.mrf.mxu0
      %1837 = vmatprep.mubr.f32.mxu0 0.0
      %1838 = vmatmul.mubr.f32.gmra.mxu0 %v1151
      %v1839 = vpop.f32.mrf.mxu0
      %v1840 = vadd.f32 0.0, %v1839
      %v1841 = vpop.f32.mrf.mxu0
      %1842 = vmatprep.mubr.f32.mxu0 0.0
      %1843 = vmatmul.mubr.f32.gmra.mxu0 %v1170
      %v1844 = vpop.f32.mrf.mxu0
      %v1845 = vadd.f32 0.0, %v1844
      %v1846 = vpop.f32.mrf.mxu0
      %1847 = vmatprep.mubr.f32.mxu0 0.0
      %1848 = vmatmul.mubr.f32.gmra.mxu0 %v1152
      %v1849 = vpop.f32.mrf.mxu0
      %v1850 = vadd.f32 0.0, %v1849
      %v1851 = vpop.f32.mrf.mxu0
      %1852 = vmatprep.mubr.f32.mxu0 0.0
      %1853 = vmatmul.mubr.f32.gmra.mxu0 %v1171
      %v1854 = vpop.f32.mrf.mxu0
      %v1855 = vadd.f32 0.0, %v1854
      %v1856 = vpop.f32.mrf.mxu0
      %1857 = vmatprep.mubr.f32.mxu0 0.0
      %1858 = vmatmul.mubr.f32.gmra.mxu0 %v1153
      %v1859 = vpop.f32.mrf.mxu0
      %v1860 = vadd.f32 0.0, %v1859
      %v1861 = vpop.f32.mrf.mxu0
      %1862 = vmatprep.mubr.f32.mxu0 0.0
      %1863 = vmatmul.mubr.f32.gmra.mxu0 %v1172
      %v1864 = vpop.f32.mrf.mxu0
      %v1865 = vadd.f32 0.0, %v1864
      %v1866 = vpop.f32.mrf.mxu0
      %1867 = vmatprep.mubr.f32.mxu0 0.0
      %1868 = vmatmul.mubr.f32.gmra.mxu0 %v1154
      %v1869 = vpop.f32.mrf.mxu0
      %v1870 = vadd.f32 0.0, %v1869
      %v1871 = vpop.f32.mrf.mxu0
      %1872 = vmatprep.mubr.f32.mxu0 0.0
      %1873 = vmatmul.mubr.f32.gmra.mxu0 %v1173
      %v1874 = vpop.f32.mrf.mxu0
      %v1875 = vadd.f32 0.0, %v1874
      %v1876 = vpop.f32.mrf.mxu0
      %1877 = vmatprep.mubr.f32.mxu0 0.0
      %1878 = vmatmul.mubr.f32.gmra.mxu0 %v1155
      %v1879 = vpop.f32.mrf.mxu0
      %v1880 = vadd.f32 0.0, %v1879
      %v1881 = vpop.f32.mrf.mxu0
      %1882 = vmatprep.mubr.f32.mxu0 0.0
      %1883 = vmatmul.mubr.f32.gmra.mxu0 %v1174
      %v1884 = vpop.f32.mrf.mxu0
      %v1885 = vadd.f32 0.0, %v1884
      %v1886 = vpop.f32.mrf.mxu0
      %1887 = vmatprep.mubr.f32.mxu0 0.0
      %1888 = vmatmul.mubr.f32.gmra.mxu0 %v1156
      %v1889 = vpop.f32.mrf.mxu0
      %v1890 = vadd.f32 0.0, %v1889
      %v1891 = vpop.f32.mrf.mxu0
      %1892 = vmatprep.mubr.f32.mxu0 0.0
      %1893 = vmatmul.mubr.f32.gmra.mxu0 %v1175
      %v1894 = vpop.f32.mrf.mxu0
      %v1895 = vadd.f32 0.0, %v1894
      %v1896 = vpop.f32.mrf.mxu0
      %1897 = vmatprep.mubr.f32.mxu0 0.0
      %1898 = vmatmul.mubr.f32.gmra.mxu0 %v1157
      %v1899 = vpop.f32.mrf.mxu0
      %v1900 = vadd.f32 0.0, %v1899
      %v1901 = vpop.f32.mrf.mxu0
      %1902 = vmatprep.mubr.f32.mxu0 0.0
      %1903 = vmatmul.mubr.f32.gmra.mxu0 %v1176
      %v1904 = vpop.f32.mrf.mxu0
      %v1905 = vadd.f32 0.0, %v1904
      %v1906 = vpop.f32.mrf.mxu0
      %1907 = vmatprep.mubr.f32.mxu0 0.0
      %1908 = vmatmul.mubr.f32.gmra.mxu0 %v1158
      %v1909 = vpop.f32.mrf.mxu0
      %v1910 = vadd.f32 0.0, %v1909
      %v1911 = vpop.f32.mrf.mxu0
      %1912 = vmatprep.mubr.f32.mxu0 0.0
      %1913 = vmatmul.mubr.f32.gmra.mxu0 %v1177
      %v1914 = vpop.f32.mrf.mxu0
      %v1915 = vadd.f32 0.0, %v1914
      %v1916 = vpop.f32.mrf.mxu0
      %1917 = vmatprep.mubr.f32.mxu0 0.0
      %1918 = vmatmul.mubr.f32.gmra.mxu0 %v1159
      %v1919 = vpop.f32.mrf.mxu0
      %v1920 = vadd.f32 0.0, %v1919
      %v1921 = vpop.f32.mrf.mxu0
      %1922 = vmatprep.mubr.f32.mxu0 0.0
      %1923 = vmatmul.mubr.f32.gmra.mxu0 %v1178
      %v1924 = vpop.f32.mrf.mxu0
      %v1925 = vadd.f32 0.0, %v1924
      %v1926 = vpop.f32.mrf.mxu0
      %1927 = vmatprep.mubr.f32.mxu0 0.0
      %1928 = vmatmul.mubr.f32.gmra.mxu0 %v1160
      %v1929 = vpop.f32.mrf.mxu0
      %v1930 = vadd.f32 0.0, %v1929
      %v1931 = vpop.f32.mrf.mxu0
      %1932 = vmatprep.mubr.f32.mxu0 0.0
      %1933 = vmatmul.mubr.f32.gmra.mxu0 %v1179
      %v1934 = vpop.f32.mrf.mxu0
      %v1935 = vadd.f32 0.0, %v1934
      %v1936 = vpop.f32.mrf.mxu0
      %1937 = vmatprep.mubr.f32.mxu0 0.0
      %1938 = vmatmul.mubr.f32.gmra.mxu0 %v1161
      %v1939 = vpop.f32.mrf.mxu0
      %v1940 = vadd.f32 0.0, %v1939
      %v1941 = vpop.f32.mrf.mxu0
      %1942 = vmatprep.mubr.f32.mxu0 0.0
      %1943 = vmatmul.mubr.f32.gmra.mxu0 %v1180
      %v1944 = vpop.f32.mrf.mxu0
      %v1945 = vadd.f32 0.0, %v1944
      %v1946 = vpop.f32.mrf.mxu0
      %1947 = vmatprep.mubr.f32.mxu0 0.0
      %1948 = vmatmul.mubr.f32.gmra.mxu0 %v1162
      %v1949 = vpop.f32.mrf.mxu0
      %v1950 = vadd.f32 0.0, %v1949
      %v1951 = vpop.f32.mrf.mxu0
      %1952 = vmatprep.mubr.f32.mxu0 0.0
      %1953 = vmatmul.mubr.f32.gmra.mxu0 %v1181
      %v1954 = vpop.f32.mrf.mxu0
      %v1955 = vadd.f32 0.0, %v1954
      %v1956 = vpop.f32.mrf.mxu0
      %1957 = vmatprep.mubr.f32.mxu0 0.0
      %1958 = vmatmul.mubr.f32.gmra.mxu0 %v1163
      %v1959 = vpop.f32.mrf.mxu0
      %v1960 = vadd.f32 0.0, %v1959
      %v1961 = vpop.f32.mrf.mxu0
      %1962 = vmatprep.mubr.f32.mxu0 0.0
      %1963 = vmatmul.mubr.f32.gmra.mxu0 %v1182
      %v1964 = vpop.f32.mrf.mxu0
      %v1965 = vadd.f32 0.0, %v1964
      %v1966 = vpop.f32.mrf.mxu0
      %1967 = vmatprep.mubr.f32.mxu0 0.0
      %1968 = vmatmul.mubr.f32.gmra.mxu0 %v1164
      %v1969 = vpop.f32.mrf.mxu0
      %v1970 = vadd.f32 0.0, %v1969
      %v1971 = vpop.f32.mrf.mxu0
      %1972 = vdwg.mxu0
      %v1973 = vadd.f32 %v1699, %v1815
      %v1974 = vadd.f32 %v1700, %v1820
      %v1975 = vadd.f32 %v1701, %v1825
      %v1976 = vadd.f32 %v1702, %v1830
      %v1977 = vadd.f32 %v1703, %v1835
      %v1978 = vadd.f32 %v1704, %v1840
      %v1979 = vadd.f32 %v1705, %v1845
      %v1980 = vadd.f32 %v1706, %v1850
      %v1981 = vadd.f32 %v1707, %v1855
      %v1982 = vadd.f32 %v1708, %v1860
      %v1983 = vadd.f32 %v1709, %v1865
      %v1984 = vadd.f32 %v1710, %v1870
      %v1985 = vadd.f32 %v1711, %v1875
      %v1986 = vadd.f32 %v1712, %v1880
      %v1987 = vadd.f32 %v1713, %v1885
      %v1988 = vadd.f32 %v1714, %v1890
      %v1989 = vadd.f32 %v1715, %v1895
      %v1990 = vadd.f32 %v1716, %v1900
      %v1991 = vadd.f32 %v1717, %v1905
      %v1992 = vadd.f32 %v1718, %v1910
      %v1993 = vadd.f32 %v1719, %v1915
      %v1994 = vadd.f32 %v1720, %v1920
      %v1995 = vadd.f32 %v1721, %v1925
      %v1996 = vadd.f32 %v1722, %v1930
      %v1997 = vadd.f32 %v1723, %v1935
      %v1998 = vadd.f32 %v1724, %v1940
      %v1999 = vadd.f32 %v1725, %v1945
      %v2000 = vadd.f32 %v1726, %v1950
      %v2001 = vadd.f32 %v1727, %v1955
      %v2002 = vadd.f32 %v1728, %v1960
      %v2003 = vadd.f32 %v1729, %v1965
      %v2004 = vadd.f32 %v1730, %v1970
      %v2005 = vrot.slane %v279, 2
      %v2006 = vrot.slane %v282, 2
      %v2007 = vrot.slane %v285, 2
      %v2008 = vrot.slane %v288, 2
      %v2009 = vrot.slane %v291, 2
      %v2010 = vrot.slane %v294, 2
      %v2011 = vrot.slane %v297, 2
      %v2012 = vrot.slane %v300, 2
      %v2013 = vrot.slane %v303, 2
      %v2014 = vrot.slane %v306, 2
      %v2015 = vrot.slane %v309, 2
      %v2016 = vrot.slane %v312, 2
      %v2017 = vrot.slane %v315, 2
      %v2018 = vrot.slane %v318, 2
      %v2019 = vrot.slane %v321, 2
      %v2020 = vrot.slane %v324, 2
      %v2021 = vrot.slane %v327, 2
      %v2022 = vrot.slane %v330, 2
      %v2023 = vrot.slane %v280, 2
      %v2024 = vrot.slane %v283, 2
      %v2025 = vrot.slane %v286, 2
      %v2026 = vrot.slane %v289, 2
      %v2027 = vrot.slane %v292, 2
      %v2028 = vrot.slane %v295, 2
      %v2029 = vrot.slane %v298, 2
      %v2030 = vrot.slane %v301, 2
      %v2031 = vrot.slane %v304, 2
      %v2032 = vrot.slane %v307, 2
      %v2033 = vrot.slane %v310, 2
      %v2034 = vrot.slane %v313, 2
      %v2035 = vrot.slane %v316, 2
      %v2036 = vrot.slane %v319, 2
      %v2037 = vrot.slane %v322, 2
      %v2038 = vrot.slane %v325, 2
      %v2039 = vrot.slane %v328, 2
      %v2040 = vrot.slane %v331, 2
      %v2041 = vrot.slane %v281, 2
      %v2042 = vrot.slane %v284, 2
      %v2043 = vrot.slane %v287, 2
      %v2044 = vrot.slane %v290, 2
      %v2045 = vrot.slane %v293, 2
      %v2046 = vrot.slane %v296, 2
      %v2047 = vrot.slane %v299, 2
      %v2048 = vrot.slane %v302, 2
      %v2049 = vrot.slane %v305, 2
      %v2050 = vrot.slane %v308, 2
      %v2051 = vrot.slane %v311, 2
      %v2052 = vrot.slane %v314, 2
      %v2053 = vrot.slane %v317, 2
      %v2054 = vrot.slane %v320, 2
      %v2055 = vrot.slane %v323, 2
      %v2056 = vrot.slane %v326, 2
      %v2057 = vrot.slane %v329, 2
      %v2058 = vrot.slane %v332, 2
      %vm2059 = vcmp.lt.s32.totalorder %v1145, 6
      %v2060 = vsel %vm2059, %v2023, %v2041
      %v2061 = vsel %vm2059, %v2024, %v2042
      %v2062 = vsel %vm2059, %v2025, %v2043
      %v2063 = vsel %vm2059, %v2026, %v2044
      %v2064 = vsel %vm2059, %v2027, %v2045
      %v2065 = vsel %vm2059, %v2028, %v2046
      %v2066 = vsel %vm2059, %v2029, %v2047
      %v2067 = vsel %vm2059, %v2030, %v2048
      %v2068 = vsel %vm2059, %v2031, %v2049
      %v2069 = vsel %vm2059, %v2032, %v2050
      %v2070 = vsel %vm2059, %v2033, %v2051
      %v2071 = vsel %vm2059, %v2034, %v2052
      %v2072 = vsel %vm2059, %v2035, %v2053
      %v2073 = vsel %vm2059, %v2036, %v2054
      %v2074 = vsel %vm2059, %v2037, %v2055
      %v2075 = vsel %vm2059, %v2038, %v2056
      %v2076 = vsel %vm2059, %v2039, %v2057
      %v2077 = vsel %vm2059, %v2040, %v2058
      %v2078 = vsel %vm2059, %v2005, %v2023
      %v2079 = vsel %vm2059, %v2006, %v2024
      %v2080 = vsel %vm2059, %v2007, %v2025
      %v2081 = vsel %vm2059, %v2008, %v2026
      %v2082 = vsel %vm2059, %v2009, %v2027
      %v2083 = vsel %vm2059, %v2010, %v2028
      %v2084 = vsel %vm2059, %v2011, %v2029
      %v2085 = vsel %vm2059, %v2012, %v2030
      %v2086 = vsel %vm2059, %v2013, %v2031
      %v2087 = vsel %vm2059, %v2014, %v2032
      %v2088 = vsel %vm2059, %v2015, %v2033
      %v2089 = vsel %vm2059, %v2016, %v2034
      %v2090 = vsel %vm2059, %v2017, %v2035
      %v2091 = vsel %vm2059, %v2018, %v2036
      %v2092 = vsel %vm2059, %v2019, %v2037
      %v2093 = vsel %vm2059, %v2020, %v2038
      %v2094 = vsel %vm2059, %v2021, %v2039
      %v2095 = vsel %vm2059, %v2022, %v2040
      %s2096 = scalar_lea.vmem %s1, 256
      %v2097 = vld [vmem:[%s2096] sm:$0xff]
      %v2098 = vld [vmem:[%s2096 + $0x8] sm:$0xff]
      %v2099 = vld [vmem:[%s2096 + $0x10] sm:$0xff]
      %v2100 = vld [vmem:[%s2096 + $0x18] sm:$0xff]
      %v2101 = vld [vmem:[%s2096 + $0x20] sm:$0xff]
      %v2102 = vld [vmem:[%s2096 + $0x28] sm:$0xff]
      %v2103 = vld [vmem:[%s2096 + $0x30] sm:$0xff]
      %v2104 = vld [vmem:[%s2096 + $0x38] sm:$0xff]
      %v2105 = vld [vmem:[%s2096 + $0x40] sm:$0xff]
      %v2106 = vld [vmem:[%s2096 + $0x48] sm:$0xff]
      %v2107 = vld [vmem:[%s2096 + $0x50] sm:$0xff]
      %v2108 = vld [vmem:[%s2096 + $0x58] sm:$0xff]
      %v2109 = vld [vmem:[%s2096 + $0x60] sm:$0xff]
      %v2110 = vld [vmem:[%s2096 + $0x68] sm:$0xff]
      %v2111 = vld [vmem:[%s2096 + $0x70] sm:$0xff]
      %v2112 = vld [vmem:[%s2096 + $0x78] sm:$0xff]
      %2113 = vmatprep.subr.mxu0 0.0
      %2114 = vmatpush1.msra.mxu0 %v2112
      %2115 = vmatprep.subr.mxu0 0.0
      %2116 = vmatpush1.msra.mxu0 %v2111
      %2117 = vmatprep.subr.mxu0 0.0
      %2118 = vmatpush1.msra.mxu0 %v2110
      %2119 = vmatprep.subr.mxu0 0.0
      %2120 = vmatpush1.msra.mxu0 %v2109
      %2121 = vmatprep.subr.mxu0 0.0
      %2122 = vmatpush1.msra.mxu0 %v2108
      %2123 = vmatprep.subr.mxu0 0.0
      %2124 = vmatpush1.msra.mxu0 %v2107
      %2125 = vmatprep.subr.mxu0 0.0
      %2126 = vmatpush1.msra.mxu0 %v2106
      %2127 = vmatprep.subr.mxu0 0.0
      %2128 = vmatpush1.msra.mxu0 %v2105
      %2129 = vmatprep.subr.mxu0 0.0
      %2130 = vmatpush1.msra.mxu0 %v2104
      %2131 = vmatprep.subr.mxu0 0.0
      %2132 = vmatpush1.msra.mxu0 %v2103
      %2133 = vmatprep.subr.mxu0 0.0
      %2134 = vmatpush1.msra.mxu0 %v2102
      %2135 = vmatprep.subr.mxu0 0.0
      %2136 = vmatpush1.msra.mxu0 %v2101
      %2137 = vmatprep.subr.mxu0 0.0
      %2138 = vmatpush1.msra.mxu0 %v2100
      %2139 = vmatprep.subr.mxu0 0.0
      %2140 = vmatpush1.msra.mxu0 %v2099
      %2141 = vmatprep.subr.mxu0 0.0
      %2142 = vmatpush1.msra.mxu0 %v2098
      %2143 = vmatprep.subr.mxu0 0.0
      %2144 = vmatpush1.msra.mxu0 %v2097
      %2145 = vmatprep.subr.mxu0 0.0
      %2146 = vmatpush2.msra.mxu0 0.0
      %2147 = vmatprep.subr.mxu0 0.0
      %2148 = vmatpush2.msra.mxu0 0.0
      %2149 = vmatprep.subr.mxu0 0.0
      %2150 = vmatpush2.msra.mxu0 0.0
      %2151 = vmatprep.subr.mxu0 0.0
      %2152 = vmatpush2.msra.mxu0 0.0
      %2153 = vmatprep.subr.mxu0 0.0
      %2154 = vmatpush2.msra.mxu0 0.0
      %2155 = vmatprep.subr.mxu0 0.0
      %2156 = vmatpush2.msra.mxu0 0.0
      %2157 = vmatprep.subr.mxu0 0.0
      %2158 = vmatpush2.msra.mxu0 0.0
      %2159 = vmatprep.subr.mxu0 0.0
      %2160 = vmatpush2.msra.mxu0 0.0
      %2161 = vmatprep.subr.mxu0 0.0
      %2162 = vmatpush2.msra.mxu0 0.0
      %2163 = vmatprep.subr.mxu0 0.0
      %2164 = vmatpush2.msra.mxu0 0.0
      %2165 = vmatprep.subr.mxu0 0.0
      %2166 = vmatpush2.msra.mxu0 0.0
      %2167 = vmatprep.subr.mxu0 0.0
      %2168 = vmatpush2.msra.mxu0 0.0
      %2169 = vmatprep.subr.mxu0 0.0
      %2170 = vmatpush2.msra.mxu0 0.0
      %2171 = vmatprep.subr.mxu0 0.0
      %2172 = vmatpush2.msra.mxu0 0.0
      %2173 = vmatprep.subr.mxu0 0.0
      %2174 = vmatpush2.msra.mxu0 0.0
      %2175 = vmatprep.subr.mxu0 0.0
      %2176 = vmatpush2.msra.mxu0 0.0
      %2177 = vmatprep.mubr.f32.mxu0 0.0
      %2178 = vmatmul.mubr.f32.gmra.mxu0 %v2078
      %v2179 = vpop.f32.mrf.mxu0
      %v2180 = vadd.f32 0.0, %v2179
      %v2181 = vpop.f32.mrf.mxu0
      %2182 = vmatprep.mubr.f32.mxu0 0.0
      %2183 = vmatmul.mubr.f32.gmra.mxu0 %v2060
      %v2184 = vpop.f32.mrf.mxu0
      %v2185 = vadd.f32 0.0, %v2184
      %v2186 = vpop.f32.mrf.mxu0
      %2187 = vmatprep.mubr.f32.mxu0 0.0
      %2188 = vmatmul.mubr.f32.gmra.mxu0 %v2079
      %v2189 = vpop.f32.mrf.mxu0
      %v2190 = vadd.f32 0.0, %v2189
      %v2191 = vpop.f32.mrf.mxu0
      %2192 = vmatprep.mubr.f32.mxu0 0.0
      %2193 = vmatmul.mubr.f32.gmra.mxu0 %v2061
      %v2194 = vpop.f32.mrf.mxu0
      %v2195 = vadd.f32 0.0, %v2194
      %v2196 = vpop.f32.mrf.mxu0
      %2197 = vmatprep.mubr.f32.mxu0 0.0
      %2198 = vmatmul.mubr.f32.gmra.mxu0 %v2080
      %v2199 = vpop.f32.mrf.mxu0
      %v2200 = vadd.f32 0.0, %v2199
      %v2201 = vpop.f32.mrf.mxu0
      %2202 = vmatprep.mubr.f32.mxu0 0.0
      %2203 = vmatmul.mubr.f32.gmra.mxu0 %v2062
      %v2204 = vpop.f32.mrf.mxu0
      %v2205 = vadd.f32 0.0, %v2204
      %v2206 = vpop.f32.mrf.mxu0
      %2207 = vmatprep.mubr.f32.mxu0 0.0
      %2208 = vmatmul.mubr.f32.gmra.mxu0 %v2081
      %v2209 = vpop.f32.mrf.mxu0
      %v2210 = vadd.f32 0.0, %v2209
      %v2211 = vpop.f32.mrf.mxu0
      %2212 = vmatprep.mubr.f32.mxu0 0.0
      %2213 = vmatmul.mubr.f32.gmra.mxu0 %v2063
      %v2214 = vpop.f32.mrf.mxu0
      %v2215 = vadd.f32 0.0, %v2214
      %v2216 = vpop.f32.mrf.mxu0
      %2217 = vmatprep.mubr.f32.mxu0 0.0
      %2218 = vmatmul.mubr.f32.gmra.mxu0 %v2082
      %v2219 = vpop.f32.mrf.mxu0
      %v2220 = vadd.f32 0.0, %v2219
      %v2221 = vpop.f32.mrf.mxu0
      %2222 = vmatprep.mubr.f32.mxu0 0.0
      %2223 = vmatmul.mubr.f32.gmra.mxu0 %v2064
      %v2224 = vpop.f32.mrf.mxu0
      %v2225 = vadd.f32 0.0, %v2224
      %v2226 = vpop.f32.mrf.mxu0
      %2227 = vmatprep.mubr.f32.mxu0 0.0
      %2228 = vmatmul.mubr.f32.gmra.mxu0 %v2083
      %v2229 = vpop.f32.mrf.mxu0
      %v2230 = vadd.f32 0.0, %v2229
      %v2231 = vpop.f32.mrf.mxu0
      %2232 = vmatprep.mubr.f32.mxu0 0.0
      %2233 = vmatmul.mubr.f32.gmra.mxu0 %v2065
      %v2234 = vpop.f32.mrf.mxu0
      %v2235 = vadd.f32 0.0, %v2234
      %v2236 = vpop.f32.mrf.mxu0
      %2237 = vmatprep.mubr.f32.mxu0 0.0
      %2238 = vmatmul.mubr.f32.gmra.mxu0 %v2084
      %v2239 = vpop.f32.mrf.mxu0
      %v2240 = vadd.f32 0.0, %v2239
      %v2241 = vpop.f32.mrf.mxu0
      %2242 = vmatprep.mubr.f32.mxu0 0.0
      %2243 = vmatmul.mubr.f32.gmra.mxu0 %v2066
      %v2244 = vpop.f32.mrf.mxu0
      %v2245 = vadd.f32 0.0, %v2244
      %v2246 = vpop.f32.mrf.mxu0
      %2247 = vmatprep.mubr.f32.mxu0 0.0
      %2248 = vmatmul.mubr.f32.gmra.mxu0 %v2085
      %v2249 = vpop.f32.mrf.mxu0
      %v2250 = vadd.f32 0.0, %v2249
      %v2251 = vpop.f32.mrf.mxu0
      %2252 = vmatprep.mubr.f32.mxu0 0.0
      %2253 = vmatmul.mubr.f32.gmra.mxu0 %v2067
      %v2254 = vpop.f32.mrf.mxu0
      %v2255 = vadd.f32 0.0, %v2254
      %v2256 = vpop.f32.mrf.mxu0
      %2257 = vmatprep.mubr.f32.mxu0 0.0
      %2258 = vmatmul.mubr.f32.gmra.mxu0 %v2086
      %v2259 = vpop.f32.mrf.mxu0
      %v2260 = vadd.f32 0.0, %v2259
      %v2261 = vpop.f32.mrf.mxu0
      %2262 = vmatprep.mubr.f32.mxu0 0.0
      %2263 = vmatmul.mubr.f32.gmra.mxu0 %v2068
      %v2264 = vpop.f32.mrf.mxu0
      %v2265 = vadd.f32 0.0, %v2264
      %v2266 = vpop.f32.mrf.mxu0
      %2267 = vmatprep.mubr.f32.mxu0 0.0
      %2268 = vmatmul.mubr.f32.gmra.mxu0 %v2087
      %v2269 = vpop.f32.mrf.mxu0
      %v2270 = vadd.f32 0.0, %v2269
      %v2271 = vpop.f32.mrf.mxu0
      %2272 = vmatprep.mubr.f32.mxu0 0.0
      %2273 = vmatmul.mubr.f32.gmra.mxu0 %v2069
      %v2274 = vpop.f32.mrf.mxu0
      %v2275 = vadd.f32 0.0, %v2274
      %v2276 = vpop.f32.mrf.mxu0
      %2277 = vmatprep.mubr.f32.mxu0 0.0
      %2278 = vmatmul.mubr.f32.gmra.mxu0 %v2088
      %v2279 = vpop.f32.mrf.mxu0
      %v2280 = vadd.f32 0.0, %v2279
      %v2281 = vpop.f32.mrf.mxu0
      %2282 = vmatprep.mubr.f32.mxu0 0.0
      %2283 = vmatmul.mubr.f32.gmra.mxu0 %v2070
      %v2284 = vpop.f32.mrf.mxu0
      %v2285 = vadd.f32 0.0, %v2284
      %v2286 = vpop.f32.mrf.mxu0
      %2287 = vmatprep.mubr.f32.mxu0 0.0
      %2288 = vmatmul.mubr.f32.gmra.mxu0 %v2089
      %v2289 = vpop.f32.mrf.mxu0
      %v2290 = vadd.f32 0.0, %v2289
      %v2291 = vpop.f32.mrf.mxu0
      %2292 = vmatprep.mubr.f32.mxu0 0.0
      %2293 = vmatmul.mubr.f32.gmra.mxu0 %v2071
      %v2294 = vpop.f32.mrf.mxu0
      %v2295 = vadd.f32 0.0, %v2294
      %v2296 = vpop.f32.mrf.mxu0
      %2297 = vmatprep.mubr.f32.mxu0 0.0
      %2298 = vmatmul.mubr.f32.gmra.mxu0 %v2090
      %v2299 = vpop.f32.mrf.mxu0
      %v2300 = vadd.f32 0.0, %v2299
      %v2301 = vpop.f32.mrf.mxu0
      %2302 = vmatprep.mubr.f32.mxu0 0.0
      %2303 = vmatmul.mubr.f32.gmra.mxu0 %v2072
      %v2304 = vpop.f32.mrf.mxu0
      %v2305 = vadd.f32 0.0, %v2304
      %v2306 = vpop.f32.mrf.mxu0
      %2307 = vmatprep.mubr.f32.mxu0 0.0
      %2308 = vmatmul.mubr.f32.gmra.mxu0 %v2091
      %v2309 = vpop.f32.mrf.mxu0
      %v2310 = vadd.f32 0.0, %v2309
      %v2311 = vpop.f32.mrf.mxu0
      %2312 = vmatprep.mubr.f32.mxu0 0.0
      %2313 = vmatmul.mubr.f32.gmra.mxu0 %v2073
      %v2314 = vpop.f32.mrf.mxu0
      %v2315 = vadd.f32 0.0, %v2314
      %v2316 = vpop.f32.mrf.mxu0
      %2317 = vmatprep.mubr.f32.mxu0 0.0
      %2318 = vmatmul.mubr.f32.gmra.mxu0 %v2092
      %v2319 = vpop.f32.mrf.mxu0
      %v2320 = vadd.f32 0.0, %v2319
      %v2321 = vpop.f32.mrf.mxu0
      %2322 = vmatprep.mubr.f32.mxu0 0.0
      %2323 = vmatmul.mubr.f32.gmra.mxu0 %v2074
      %v2324 = vpop.f32.mrf.mxu0
      %v2325 = vadd.f32 0.0, %v2324
      %v2326 = vpop.f32.mrf.mxu0
      %2327 = vmatprep.mubr.f32.mxu0 0.0
      %2328 = vmatmul.mubr.f32.gmra.mxu0 %v2093
      %v2329 = vpop.f32.mrf.mxu0
      %v2330 = vadd.f32 0.0, %v2329
      %v2331 = vpop.f32.mrf.mxu0
      %2332 = vmatprep.mubr.f32.mxu0 0.0
      %2333 = vmatmul.mubr.f32.gmra.mxu0 %v2075
      %v2334 = vpop.f32.mrf.mxu0
      %v2335 = vadd.f32 0.0, %v2334
      %v2336 = vpop.f32.mrf.mxu0
      %2337 = vdwg.mxu0
      %v2338 = vadd.f32 %v1973, %v2180
      %v2339 = vadd.f32 %v1974, %v2185
      %v2340 = vadd.f32 %v1975, %v2190
      %v2341 = vadd.f32 %v1976, %v2195
      %v2342 = vadd.f32 %v1977, %v2200
      %v2343 = vadd.f32 %v1978, %v2205
      %v2344 = vadd.f32 %v1979, %v2210
      %v2345 = vadd.f32 %v1980, %v2215
      %v2346 = vadd.f32 %v1981, %v2220
      %v2347 = vadd.f32 %v1982, %v2225
      %v2348 = vadd.f32 %v1983, %v2230
      %v2349 = vadd.f32 %v1984, %v2235
      %v2350 = vadd.f32 %v1985, %v2240
      %v2351 = vadd.f32 %v1986, %v2245
      %v2352 = vadd.f32 %v1987, %v2250
      %v2353 = vadd.f32 %v1988, %v2255
      %v2354 = vadd.f32 %v1989, %v2260
      %v2355 = vadd.f32 %v1990, %v2265
      %v2356 = vadd.f32 %v1991, %v2270
      %v2357 = vadd.f32 %v1992, %v2275
      %v2358 = vadd.f32 %v1993, %v2280
      %v2359 = vadd.f32 %v1994, %v2285
      %v2360 = vadd.f32 %v1995, %v2290
      %v2361 = vadd.f32 %v1996, %v2295
      %v2362 = vadd.f32 %v1997, %v2300
      %v2363 = vadd.f32 %v1998, %v2305
      %v2364 = vadd.f32 %v1999, %v2310
      %v2365 = vadd.f32 %v2000, %v2315
      %v2366 = vadd.f32 %v2001, %v2320
      %v2367 = vadd.f32 %v2002, %v2325
      %v2368 = vadd.f32 %v2003, %v2330
      %v2369 = vadd.f32 %v2004, %v2335
      %s2370 = scalar_lea.vmem %s1, 640
      %v2371 = vld [vmem:[%s2370] sm:$0xff]
      %v2372 = vld [vmem:[%s2370 + $0x8] sm:$0xff]
      %v2373 = vld [vmem:[%s2370 + $0x10] sm:$0xff]
      %v2374 = vld [vmem:[%s2370 + $0x18] sm:$0xff]
      %v2375 = vld [vmem:[%s2370 + $0x20] sm:$0xff]
      %v2376 = vld [vmem:[%s2370 + $0x28] sm:$0xff]
      %v2377 = vld [vmem:[%s2370 + $0x30] sm:$0xff]
      %v2378 = vld [vmem:[%s2370 + $0x38] sm:$0xff]
      %v2379 = vld [vmem:[%s2370 + $0x40] sm:$0xff]
      %v2380 = vld [vmem:[%s2370 + $0x48] sm:$0xff]
      %v2381 = vld [vmem:[%s2370 + $0x50] sm:$0xff]
      %v2382 = vld [vmem:[%s2370 + $0x58] sm:$0xff]
      %v2383 = vld [vmem:[%s2370 + $0x60] sm:$0xff]
      %v2384 = vld [vmem:[%s2370 + $0x68] sm:$0xff]
      %v2385 = vld [vmem:[%s2370 + $0x70] sm:$0xff]
      %v2386 = vld [vmem:[%s2370 + $0x78] sm:$0xff]
      %2387 = vmatprep.subr.mxu0 0.0
      %2388 = vmatpush1.msra.mxu0 %v2386
      %2389 = vmatprep.subr.mxu0 0.0
      %2390 = vmatpush1.msra.mxu0 %v2385
      %2391 = vmatprep.subr.mxu0 0.0
      %2392 = vmatpush1.msra.mxu0 %v2384
      %2393 = vmatprep.subr.mxu0 0.0
      %2394 = vmatpush1.msra.mxu0 %v2383
      %2395 = vmatprep.subr.mxu0 0.0
      %2396 = vmatpush1.msra.mxu0 %v2382
      %2397 = vmatprep.subr.mxu0 0.0
      %2398 = vmatpush1.msra.mxu0 %v2381
      %2399 = vmatprep.subr.mxu0 0.0
      %2400 = vmatpush1.msra.mxu0 %v2380
      %2401 = vmatprep.subr.mxu0 0.0
      %2402 = vmatpush1.msra.mxu0 %v2379
      %2403 = vmatprep.subr.mxu0 0.0
      %2404 = vmatpush1.msra.mxu0 %v2378
      %2405 = vmatprep.subr.mxu0 0.0
      %2406 = vmatpush1.msra.mxu0 %v2377
      %2407 = vmatprep.subr.mxu0 0.0
      %2408 = vmatpush1.msra.mxu0 %v2376
      %2409 = vmatprep.subr.mxu0 0.0
      %2410 = vmatpush1.msra.mxu0 %v2375
      %2411 = vmatprep.subr.mxu0 0.0
      %2412 = vmatpush1.msra.mxu0 %v2374
      %2413 = vmatprep.subr.mxu0 0.0
      %2414 = vmatpush1.msra.mxu0 %v2373
      %2415 = vmatprep.subr.mxu0 0.0
      %2416 = vmatpush1.msra.mxu0 %v2372
      %2417 = vmatprep.subr.mxu0 0.0
      %2418 = vmatpush1.msra.mxu0 %v2371
      %2419 = vmatprep.subr.mxu0 0.0
      %2420 = vmatpush2.msra.mxu0 0.0
      %2421 = vmatprep.subr.mxu0 0.0
      %2422 = vmatpush2.msra.mxu0 0.0
      %2423 = vmatprep.subr.mxu0 0.0
      %2424 = vmatpush2.msra.mxu0 0.0
      %2425 = vmatprep.subr.mxu0 0.0
      %2426 = vmatpush2.msra.mxu0 0.0
      %2427 = vmatprep.subr.mxu0 0.0
      %2428 = vmatpush2.msra.mxu0 0.0
      %2429 = vmatprep.subr.mxu0 0.0
      %2430 = vmatpush2.msra.mxu0 0.0
      %2431 = vmatprep.subr.mxu0 0.0
      %2432 = vmatpush2.msra.mxu0 0.0
      %2433 = vmatprep.subr.mxu0 0.0
      %2434 = vmatpush2.msra.mxu0 0.0
      %2435 = vmatprep.subr.mxu0 0.0
      %2436 = vmatpush2.msra.mxu0 0.0
      %2437 = vmatprep.subr.mxu0 0.0
      %2438 = vmatpush2.msra.mxu0 0.0
      %2439 = vmatprep.subr.mxu0 0.0
      %2440 = vmatpush2.msra.mxu0 0.0
      %2441 = vmatprep.subr.mxu0 0.0
      %2442 = vmatpush2.msra.mxu0 0.0
      %2443 = vmatprep.subr.mxu0 0.0
      %2444 = vmatpush2.msra.mxu0 0.0
      %2445 = vmatprep.subr.mxu0 0.0
      %2446 = vmatpush2.msra.mxu0 0.0
      %2447 = vmatprep.subr.mxu0 0.0
      %2448 = vmatpush2.msra.mxu0 0.0
      %2449 = vmatprep.subr.mxu0 0.0
      %2450 = vmatpush2.msra.mxu0 0.0
      %2451 = vmatprep.mubr.f32.mxu0 0.0
      %2452 = vmatmul.mubr.f32.gmra.mxu0 %v2079
      %v2453 = vpop.f32.mrf.mxu0
      %v2454 = vadd.f32 0.0, %v2453
      %v2455 = vpop.f32.mrf.mxu0
      %2456 = vmatprep.mubr.f32.mxu0 0.0
      %2457 = vmatmul.mubr.f32.gmra.mxu0 %v2061
      %v2458 = vpop.f32.mrf.mxu0
      %v2459 = vadd.f32 0.0, %v2458
      %v2460 = vpop.f32.mrf.mxu0
      %2461 = vmatprep.mubr.f32.mxu0 0.0
      %2462 = vmatmul.mubr.f32.gmra.mxu0 %v2080
      %v2463 = vpop.f32.mrf.mxu0
      %v2464 = vadd.f32 0.0, %v2463
      %v2465 = vpop.f32.mrf.mxu0
      %2466 = vmatprep.mubr.f32.mxu0 0.0
      %2467 = vmatmul.mubr.f32.gmra.mxu0 %v2062
      %v2468 = vpop.f32.mrf.mxu0
      %v2469 = vadd.f32 0.0, %v2468
      %v2470 = vpop.f32.mrf.mxu0
      %2471 = vmatprep.mubr.f32.mxu0 0.0
      %2472 = vmatmul.mubr.f32.gmra.mxu0 %v2081
      %v2473 = vpop.f32.mrf.mxu0
      %v2474 = vadd.f32 0.0, %v2473
      %v2475 = vpop.f32.mrf.mxu0
      %2476 = vmatprep.mubr.f32.mxu0 0.0
      %2477 = vmatmul.mubr.f32.gmra.mxu0 %v2063
      %v2478 = vpop.f32.mrf.mxu0
      %v2479 = vadd.f32 0.0, %v2478
      %v2480 = vpop.f32.mrf.mxu0
      %2481 = vmatprep.mubr.f32.mxu0 0.0
      %2482 = vmatmul.mubr.f32.gmra.mxu0 %v2082
      %v2483 = vpop.f32.mrf.mxu0
      %v2484 = vadd.f32 0.0, %v2483
      %v2485 = vpop.f32.mrf.mxu0
      %2486 = vmatprep.mubr.f32.mxu0 0.0
      %2487 = vmatmul.mubr.f32.gmra.mxu0 %v2064
      %v2488 = vpop.f32.mrf.mxu0
      %v2489 = vadd.f32 0.0, %v2488
      %v2490 = vpop.f32.mrf.mxu0
      %2491 = vmatprep.mubr.f32.mxu0 0.0
      %2492 = vmatmul.mubr.f32.gmra.mxu0 %v2083
      %v2493 = vpop.f32.mrf.mxu0
      %v2494 = vadd.f32 0.0, %v2493
      %v2495 = vpop.f32.mrf.mxu0
      %2496 = vmatprep.mubr.f32.mxu0 0.0
      %2497 = vmatmul.mubr.f32.gmra.mxu0 %v2065
      %v2498 = vpop.f32.mrf.mxu0
      %v2499 = vadd.f32 0.0, %v2498
      %v2500 = vpop.f32.mrf.mxu0
      %2501 = vmatprep.mubr.f32.mxu0 0.0
      %2502 = vmatmul.mubr.f32.gmra.mxu0 %v2084
      %v2503 = vpop.f32.mrf.mxu0
      %v2504 = vadd.f32 0.0, %v2503
      %v2505 = vpop.f32.mrf.mxu0
      %2506 = vmatprep.mubr.f32.mxu0 0.0
      %2507 = vmatmul.mubr.f32.gmra.mxu0 %v2066
      %v2508 = vpop.f32.mrf.mxu0
      %v2509 = vadd.f32 0.0, %v2508
      %v2510 = vpop.f32.mrf.mxu0
      %2511 = vmatprep.mubr.f32.mxu0 0.0
      %2512 = vmatmul.mubr.f32.gmra.mxu0 %v2085
      %v2513 = vpop.f32.mrf.mxu0
      %v2514 = vadd.f32 0.0, %v2513
      %v2515 = vpop.f32.mrf.mxu0
      %2516 = vmatprep.mubr.f32.mxu0 0.0
      %2517 = vmatmul.mubr.f32.gmra.mxu0 %v2067
      %v2518 = vpop.f32.mrf.mxu0
      %v2519 = vadd.f32 0.0, %v2518
      %v2520 = vpop.f32.mrf.mxu0
      %2521 = vmatprep.mubr.f32.mxu0 0.0
      %2522 = vmatmul.mubr.f32.gmra.mxu0 %v2086
      %v2523 = vpop.f32.mrf.mxu0
      %v2524 = vadd.f32 0.0, %v2523
      %v2525 = vpop.f32.mrf.mxu0
      %2526 = vmatprep.mubr.f32.mxu0 0.0
      %2527 = vmatmul.mubr.f32.gmra.mxu0 %v2068
      %v2528 = vpop.f32.mrf.mxu0
      %v2529 = vadd.f32 0.0, %v2528
      %v2530 = vpop.f32.mrf.mxu0
      %2531 = vmatprep.mubr.f32.mxu0 0.0
      %2532 = vmatmul.mubr.f32.gmra.mxu0 %v2087
      %v2533 = vpop.f32.mrf.mxu0
      %v2534 = vadd.f32 0.0, %v2533
      %v2535 = vpop.f32.mrf.mxu0
      %2536 = vmatprep.mubr.f32.mxu0 0.0
      %2537 = vmatmul.mubr.f32.gmra.mxu0 %v2069
      %v2538 = vpop.f32.mrf.mxu0
      %v2539 = vadd.f32 0.0, %v2538
      %v2540 = vpop.f32.mrf.mxu0
      %2541 = vmatprep.mubr.f32.mxu0 0.0
      %2542 = vmatmul.mubr.f32.gmra.mxu0 %v2088
      %v2543 = vpop.f32.mrf.mxu0
      %v2544 = vadd.f32 0.0, %v2543
      %v2545 = vpop.f32.mrf.mxu0
      %2546 = vmatprep.mubr.f32.mxu0 0.0
      %2547 = vmatmul.mubr.f32.gmra.mxu0 %v2070
      %v2548 = vpop.f32.mrf.mxu0
      %v2549 = vadd.f32 0.0, %v2548
      %v2550 = vpop.f32.mrf.mxu0
      %2551 = vmatprep.mubr.f32.mxu0 0.0
      %2552 = vmatmul.mubr.f32.gmra.mxu0 %v2089
      %v2553 = vpop.f32.mrf.mxu0
      %v2554 = vadd.f32 0.0, %v2553
      %v2555 = vpop.f32.mrf.mxu0
      %2556 = vmatprep.mubr.f32.mxu0 0.0
      %2557 = vmatmul.mubr.f32.gmra.mxu0 %v2071
      %v2558 = vpop.f32.mrf.mxu0
      %v2559 = vadd.f32 0.0, %v2558
      %v2560 = vpop.f32.mrf.mxu0
      %2561 = vmatprep.mubr.f32.mxu0 0.0
      %2562 = vmatmul.mubr.f32.gmra.mxu0 %v2090
      %v2563 = vpop.f32.mrf.mxu0
      %v2564 = vadd.f32 0.0, %v2563
      %v2565 = vpop.f32.mrf.mxu0
      %2566 = vmatprep.mubr.f32.mxu0 0.0
      %2567 = vmatmul.mubr.f32.gmra.mxu0 %v2072
      %v2568 = vpop.f32.mrf.mxu0
      %v2569 = vadd.f32 0.0, %v2568
      %v2570 = vpop.f32.mrf.mxu0
      %2571 = vmatprep.mubr.f32.mxu0 0.0
      %2572 = vmatmul.mubr.f32.gmra.mxu0 %v2091
      %v2573 = vpop.f32.mrf.mxu0
      %v2574 = vadd.f32 0.0, %v2573
      %v2575 = vpop.f32.mrf.mxu0
      %2576 = vmatprep.mubr.f32.mxu0 0.0
      %2577 = vmatmul.mubr.f32.gmra.mxu0 %v2073
      %v2578 = vpop.f32.mrf.mxu0
      %v2579 = vadd.f32 0.0, %v2578
      %v2580 = vpop.f32.mrf.mxu0
      %2581 = vmatprep.mubr.f32.mxu0 0.0
      %2582 = vmatmul.mubr.f32.gmra.mxu0 %v2092
      %v2583 = vpop.f32.mrf.mxu0
      %v2584 = vadd.f32 0.0, %v2583
      %v2585 = vpop.f32.mrf.mxu0
      %2586 = vmatprep.mubr.f32.mxu0 0.0
      %2587 = vmatmul.mubr.f32.gmra.mxu0 %v2074
      %v2588 = vpop.f32.mrf.mxu0
      %v2589 = vadd.f32 0.0, %v2588
      %v2590 = vpop.f32.mrf.mxu0
      %2591 = vmatprep.mubr.f32.mxu0 0.0
      %2592 = vmatmul.mubr.f32.gmra.mxu0 %v2093
      %v2593 = vpop.f32.mrf.mxu0
      %v2594 = vadd.f32 0.0, %v2593
      %v2595 = vpop.f32.mrf.mxu0
      %2596 = vmatprep.mubr.f32.mxu0 0.0
      %2597 = vmatmul.mubr.f32.gmra.mxu0 %v2075
      %v2598 = vpop.f32.mrf.mxu0
      %v2599 = vadd.f32 0.0, %v2598
      %v2600 = vpop.f32.mrf.mxu0
      %2601 = vmatprep.mubr.f32.mxu0 0.0
      %2602 = vmatmul.mubr.f32.gmra.mxu0 %v2094
      %v2603 = vpop.f32.mrf.mxu0
      %v2604 = vadd.f32 0.0, %v2603
      %v2605 = vpop.f32.mrf.mxu0
      %2606 = vmatprep.mubr.f32.mxu0 0.0
      %2607 = vmatmul.mubr.f32.gmra.mxu0 %v2076
      %v2608 = vpop.f32.mrf.mxu0
      %v2609 = vadd.f32 0.0, %v2608
      %v2610 = vpop.f32.mrf.mxu0
      %2611 = vdwg.mxu0
      %v2612 = vadd.f32 %v2338, %v2454
      %v2613 = vadd.f32 %v2339, %v2459
      %v2614 = vadd.f32 %v2340, %v2464
      %v2615 = vadd.f32 %v2341, %v2469
      %v2616 = vadd.f32 %v2342, %v2474
      %v2617 = vadd.f32 %v2343, %v2479
      %v2618 = vadd.f32 %v2344, %v2484
      %v2619 = vadd.f32 %v2345, %v2489
      %v2620 = vadd.f32 %v2346, %v2494
      %v2621 = vadd.f32 %v2347, %v2499
      %v2622 = vadd.f32 %v2348, %v2504
      %v2623 = vadd.f32 %v2349, %v2509
      %v2624 = vadd.f32 %v2350, %v2514
      %v2625 = vadd.f32 %v2351, %v2519
      %v2626 = vadd.f32 %v2352, %v2524
      %v2627 = vadd.f32 %v2353, %v2529
      %v2628 = vadd.f32 %v2354, %v2534
      %v2629 = vadd.f32 %v2355, %v2539
      %v2630 = vadd.f32 %v2356, %v2544
      %v2631 = vadd.f32 %v2357, %v2549
      %v2632 = vadd.f32 %v2358, %v2554
      %v2633 = vadd.f32 %v2359, %v2559
      %v2634 = vadd.f32 %v2360, %v2564
      %v2635 = vadd.f32 %v2361, %v2569
      %v2636 = vadd.f32 %v2362, %v2574
      %v2637 = vadd.f32 %v2363, %v2579
      %v2638 = vadd.f32 %v2364, %v2584
      %v2639 = vadd.f32 %v2365, %v2589
      %v2640 = vadd.f32 %v2366, %v2594
      %v2641 = vadd.f32 %v2367, %v2599
      %v2642 = vadd.f32 %v2368, %v2604
      %v2643 = vadd.f32 %v2369, %v2609
      %s2644 = scalar_lea.vmem %s1, 1024
      %v2645 = vld [vmem:[%s2644] sm:$0xff]
      %v2646 = vld [vmem:[%s2644 + $0x8] sm:$0xff]
      %v2647 = vld [vmem:[%s2644 + $0x10] sm:$0xff]
      %v2648 = vld [vmem:[%s2644 + $0x18] sm:$0xff]
      %v2649 = vld [vmem:[%s2644 + $0x20] sm:$0xff]
      %v2650 = vld [vmem:[%s2644 + $0x28] sm:$0xff]
      %v2651 = vld [vmem:[%s2644 + $0x30] sm:$0xff]
      %v2652 = vld [vmem:[%s2644 + $0x38] sm:$0xff]
      %v2653 = vld [vmem:[%s2644 + $0x40] sm:$0xff]
      %v2654 = vld [vmem:[%s2644 + $0x48] sm:$0xff]
      %v2655 = vld [vmem:[%s2644 + $0x50] sm:$0xff]
      %v2656 = vld [vmem:[%s2644 + $0x58] sm:$0xff]
      %v2657 = vld [vmem:[%s2644 + $0x60] sm:$0xff]
      %v2658 = vld [vmem:[%s2644 + $0x68] sm:$0xff]
      %v2659 = vld [vmem:[%s2644 + $0x70] sm:$0xff]
      %v2660 = vld [vmem:[%s2644 + $0x78] sm:$0xff]
      %2661 = vmatprep.subr.mxu0 0.0
      %2662 = vmatpush1.msra.mxu0 %v2660
      %2663 = vmatprep.subr.mxu0 0.0
      %2664 = vmatpush1.msra.mxu0 %v2659
      %2665 = vmatprep.subr.mxu0 0.0
      %2666 = vmatpush1.msra.mxu0 %v2658
      %2667 = vmatprep.subr.mxu0 0.0
      %2668 = vmatpush1.msra.mxu0 %v2657
      %2669 = vmatprep.subr.mxu0 0.0
      %2670 = vmatpush1.msra.mxu0 %v2656
      %2671 = vmatprep.subr.mxu0 0.0
      %2672 = vmatpush1.msra.mxu0 %v2655
      %2673 = vmatprep.subr.mxu0 0.0
      %2674 = vmatpush1.msra.mxu0 %v2654
      %2675 = vmatprep.subr.mxu0 0.0
      %2676 = vmatpush1.msra.mxu0 %v2653
      %2677 = vmatprep.subr.mxu0 0.0
      %2678 = vmatpush1.msra.mxu0 %v2652
      %2679 = vmatprep.subr.mxu0 0.0
      %2680 = vmatpush1.msra.mxu0 %v2651
      %2681 = vmatprep.subr.mxu0 0.0
      %2682 = vmatpush1.msra.mxu0 %v2650
      %2683 = vmatprep.subr.mxu0 0.0
      %2684 = vmatpush1.msra.mxu0 %v2649
      %2685 = vmatprep.subr.mxu0 0.0
      %2686 = vmatpush1.msra.mxu0 %v2648
      %2687 = vmatprep.subr.mxu0 0.0
      %2688 = vmatpush1.msra.mxu0 %v2647
      %2689 = vmatprep.subr.mxu0 0.0
      %2690 = vmatpush1.msra.mxu0 %v2646
      %2691 = vmatprep.subr.mxu0 0.0
      %2692 = vmatpush1.msra.mxu0 %v2645
      %2693 = vmatprep.subr.mxu0 0.0
      %2694 = vmatpush2.msra.mxu0 0.0
      %2695 = vmatprep.subr.mxu0 0.0
      %2696 = vmatpush2.msra.mxu0 0.0
      %2697 = vmatprep.subr.mxu0 0.0
      %2698 = vmatpush2.msra.mxu0 0.0
      %2699 = vmatprep.subr.mxu0 0.0
      %2700 = vmatpush2.msra.mxu0 0.0
      %2701 = vmatprep.subr.mxu0 0.0
      %2702 = vmatpush2.msra.mxu0 0.0
      %2703 = vmatprep.subr.mxu0 0.0
      %2704 = vmatpush2.msra.mxu0 0.0
      %2705 = vmatprep.subr.mxu0 0.0
      %2706 = vmatpush2.msra.mxu0 0.0
      %2707 = vmatprep.subr.mxu0 0.0
      %2708 = vmatpush2.msra.mxu0 0.0
      %2709 = vmatprep.subr.mxu0 0.0
      %2710 = vmatpush2.msra.mxu0 0.0
      %2711 = vmatprep.subr.mxu0 0.0
      %2712 = vmatpush2.msra.mxu0 0.0
      %2713 = vmatprep.subr.mxu0 0.0
      %2714 = vmatpush2.msra.mxu0 0.0
      %2715 = vmatprep.subr.mxu0 0.0
      %2716 = vmatpush2.msra.mxu0 0.0
      %2717 = vmatprep.subr.mxu0 0.0
      %2718 = vmatpush2.msra.mxu0 0.0
      %2719 = vmatprep.subr.mxu0 0.0
      %2720 = vmatpush2.msra.mxu0 0.0
      %2721 = vmatprep.subr.mxu0 0.0
      %2722 = vmatpush2.msra.mxu0 0.0
      %2723 = vmatprep.subr.mxu0 0.0
      %2724 = vmatpush2.msra.mxu0 0.0
      %2725 = vmatprep.mubr.f32.mxu0 0.0
      %2726 = vmatmul.mubr.f32.gmra.mxu0 %v2080
      %v2727 = vpop.f32.mrf.mxu0
      %v2728 = vadd.f32 0.0, %v2727
      %v2729 = vpop.f32.mrf.mxu0
      %2730 = vmatprep.mubr.f32.mxu0 0.0
      %2731 = vmatmul.mubr.f32.gmra.mxu0 %v2062
      %v2732 = vpop.f32.mrf.mxu0
      %v2733 = vadd.f32 0.0, %v2732
      %v2734 = vpop.f32.mrf.mxu0
      %2735 = vmatprep.mubr.f32.mxu0 0.0
      %2736 = vmatmul.mubr.f32.gmra.mxu0 %v2081
      %v2737 = vpop.f32.mrf.mxu0
      %v2738 = vadd.f32 0.0, %v2737
      %v2739 = vpop.f32.mrf.mxu0
      %2740 = vmatprep.mubr.f32.mxu0 0.0
      %2741 = vmatmul.mubr.f32.gmra.mxu0 %v2063
      %v2742 = vpop.f32.mrf.mxu0
      %v2743 = vadd.f32 0.0, %v2742
      %v2744 = vpop.f32.mrf.mxu0
      %2745 = vmatprep.mubr.f32.mxu0 0.0
      %2746 = vmatmul.mubr.f32.gmra.mxu0 %v2082
      %v2747 = vpop.f32.mrf.mxu0
      %v2748 = vadd.f32 0.0, %v2747
      %v2749 = vpop.f32.mrf.mxu0
      %2750 = vmatprep.mubr.f32.mxu0 0.0
      %2751 = vmatmul.mubr.f32.gmra.mxu0 %v2064
      %v2752 = vpop.f32.mrf.mxu0
      %v2753 = vadd.f32 0.0, %v2752
      %v2754 = vpop.f32.mrf.mxu0
      %2755 = vmatprep.mubr.f32.mxu0 0.0
      %2756 = vmatmul.mubr.f32.gmra.mxu0 %v2083
      %v2757 = vpop.f32.mrf.mxu0
      %v2758 = vadd.f32 0.0, %v2757
      %v2759 = vpop.f32.mrf.mxu0
      %2760 = vmatprep.mubr.f32.mxu0 0.0
      %2761 = vmatmul.mubr.f32.gmra.mxu0 %v2065
      %v2762 = vpop.f32.mrf.mxu0
      %v2763 = vadd.f32 0.0, %v2762
      %v2764 = vpop.f32.mrf.mxu0
      %2765 = vmatprep.mubr.f32.mxu0 0.0
      %2766 = vmatmul.mubr.f32.gmra.mxu0 %v2084
      %v2767 = vpop.f32.mrf.mxu0
      %v2768 = vadd.f32 0.0, %v2767
      %v2769 = vpop.f32.mrf.mxu0
      %2770 = vmatprep.mubr.f32.mxu0 0.0
      %2771 = vmatmul.mubr.f32.gmra.mxu0 %v2066
      %v2772 = vpop.f32.mrf.mxu0
      %v2773 = vadd.f32 0.0, %v2772
      %v2774 = vpop.f32.mrf.mxu0
      %2775 = vmatprep.mubr.f32.mxu0 0.0
      %2776 = vmatmul.mubr.f32.gmra.mxu0 %v2085
      %v2777 = vpop.f32.mrf.mxu0
      %v2778 = vadd.f32 0.0, %v2777
      %v2779 = vpop.f32.mrf.mxu0
      %2780 = vmatprep.mubr.f32.mxu0 0.0
      %2781 = vmatmul.mubr.f32.gmra.mxu0 %v2067
      %v2782 = vpop.f32.mrf.mxu0
      %v2783 = vadd.f32 0.0, %v2782
      %v2784 = vpop.f32.mrf.mxu0
      %2785 = vmatprep.mubr.f32.mxu0 0.0
      %2786 = vmatmul.mubr.f32.gmra.mxu0 %v2086
      %v2787 = vpop.f32.mrf.mxu0
      %v2788 = vadd.f32 0.0, %v2787
      %v2789 = vpop.f32.mrf.mxu0
      %2790 = vmatprep.mubr.f32.mxu0 0.0
      %2791 = vmatmul.mubr.f32.gmra.mxu0 %v2068
      %v2792 = vpop.f32.mrf.mxu0
      %v2793 = vadd.f32 0.0, %v2792
      %v2794 = vpop.f32.mrf.mxu0
      %2795 = vmatprep.mubr.f32.mxu0 0.0
      %2796 = vmatmul.mubr.f32.gmra.mxu0 %v2087
      %v2797 = vpop.f32.mrf.mxu0
      %v2798 = vadd.f32 0.0, %v2797
      %v2799 = vpop.f32.mrf.mxu0
      %2800 = vmatprep.mubr.f32.mxu0 0.0
      %2801 = vmatmul.mubr.f32.gmra.mxu0 %v2069
      %v2802 = vpop.f32.mrf.mxu0
      %v2803 = vadd.f32 0.0, %v2802
      %v2804 = vpop.f32.mrf.mxu0
      %2805 = vmatprep.mubr.f32.mxu0 0.0
      %2806 = vmatmul.mubr.f32.gmra.mxu0 %v2088
      %v2807 = vpop.f32.mrf.mxu0
      %v2808 = vadd.f32 0.0, %v2807
      %v2809 = vpop.f32.mrf.mxu0
      %2810 = vmatprep.mubr.f32.mxu0 0.0
      %2811 = vmatmul.mubr.f32.gmra.mxu0 %v2070
      %v2812 = vpop.f32.mrf.mxu0
      %v2813 = vadd.f32 0.0, %v2812
      %v2814 = vpop.f32.mrf.mxu0
      %2815 = vmatprep.mubr.f32.mxu0 0.0
      %2816 = vmatmul.mubr.f32.gmra.mxu0 %v2089
      %v2817 = vpop.f32.mrf.mxu0
      %v2818 = vadd.f32 0.0, %v2817
      %v2819 = vpop.f32.mrf.mxu0
      %2820 = vmatprep.mubr.f32.mxu0 0.0
      %2821 = vmatmul.mubr.f32.gmra.mxu0 %v2071
      %v2822 = vpop.f32.mrf.mxu0
      %v2823 = vadd.f32 0.0, %v2822
      %v2824 = vpop.f32.mrf.mxu0
      %2825 = vmatprep.mubr.f32.mxu0 0.0
      %2826 = vmatmul.mubr.f32.gmra.mxu0 %v2090
      %v2827 = vpop.f32.mrf.mxu0
      %v2828 = vadd.f32 0.0, %v2827
      %v2829 = vpop.f32.mrf.mxu0
      %2830 = vmatprep.mubr.f32.mxu0 0.0
      %2831 = vmatmul.mubr.f32.gmra.mxu0 %v2072
      %v2832 = vpop.f32.mrf.mxu0
      %v2833 = vadd.f32 0.0, %v2832
      %v2834 = vpop.f32.mrf.mxu0
      %2835 = vmatprep.mubr.f32.mxu0 0.0
      %2836 = vmatmul.mubr.f32.gmra.mxu0 %v2091
      %v2837 = vpop.f32.mrf.mxu0
      %v2838 = vadd.f32 0.0, %v2837
      %v2839 = vpop.f32.mrf.mxu0
      %2840 = vmatprep.mubr.f32.mxu0 0.0
      %2841 = vmatmul.mubr.f32.gmra.mxu0 %v2073
      %v2842 = vpop.f32.mrf.mxu0
      %v2843 = vadd.f32 0.0, %v2842
      %v2844 = vpop.f32.mrf.mxu0
      %2845 = vmatprep.mubr.f32.mxu0 0.0
      %2846 = vmatmul.mubr.f32.gmra.mxu0 %v2092
      %v2847 = vpop.f32.mrf.mxu0
      %v2848 = vadd.f32 0.0, %v2847
      %v2849 = vpop.f32.mrf.mxu0
      %2850 = vmatprep.mubr.f32.mxu0 0.0
      %2851 = vmatmul.mubr.f32.gmra.mxu0 %v2074
      %v2852 = vpop.f32.mrf.mxu0
      %v2853 = vadd.f32 0.0, %v2852
      %v2854 = vpop.f32.mrf.mxu0
      %2855 = vmatprep.mubr.f32.mxu0 0.0
      %2856 = vmatmul.mubr.f32.gmra.mxu0 %v2093
      %v2857 = vpop.f32.mrf.mxu0
      %v2858 = vadd.f32 0.0, %v2857
      %v2859 = vpop.f32.mrf.mxu0
      %2860 = vmatprep.mubr.f32.mxu0 0.0
      %2861 = vmatmul.mubr.f32.gmra.mxu0 %v2075
      %v2862 = vpop.f32.mrf.mxu0
      %v2863 = vadd.f32 0.0, %v2862
      %v2864 = vpop.f32.mrf.mxu0
      %2865 = vmatprep.mubr.f32.mxu0 0.0
      %2866 = vmatmul.mubr.f32.gmra.mxu0 %v2094
      %v2867 = vpop.f32.mrf.mxu0
      %v2868 = vadd.f32 0.0, %v2867
      %v2869 = vpop.f32.mrf.mxu0
      %2870 = vmatprep.mubr.f32.mxu0 0.0
      %2871 = vmatmul.mubr.f32.gmra.mxu0 %v2076
      %v2872 = vpop.f32.mrf.mxu0
      %v2873 = vadd.f32 0.0, %v2872
      %v2874 = vpop.f32.mrf.mxu0
      %2875 = vmatprep.mubr.f32.mxu0 0.0
      %2876 = vmatmul.mubr.f32.gmra.mxu0 %v2095
      %v2877 = vpop.f32.mrf.mxu0
      %v2878 = vadd.f32 0.0, %v2877
      %v2879 = vpop.f32.mrf.mxu0
      %2880 = vmatprep.mubr.f32.mxu0 0.0
      %2881 = vmatmul.mubr.f32.gmra.mxu0 %v2077
      %v2882 = vpop.f32.mrf.mxu0
      %v2883 = vadd.f32 0.0, %v2882
      %v2884 = vpop.f32.mrf.mxu0
      %2885 = vdwg.mxu0
      %v2886 = vadd.f32 %v2612, %v2728
      %v2887 = vadd.f32 %v2613, %v2733
      %v2888 = vadd.f32 %v2614, %v2738
      %v2889 = vadd.f32 %v2615, %v2743
      %v2890 = vadd.f32 %v2616, %v2748
      %v2891 = vadd.f32 %v2617, %v2753
      %v2892 = vadd.f32 %v2618, %v2758
      %v2893 = vadd.f32 %v2619, %v2763
      %v2894 = vadd.f32 %v2620, %v2768
      %v2895 = vadd.f32 %v2621, %v2773
      %v2896 = vadd.f32 %v2622, %v2778
      %v2897 = vadd.f32 %v2623, %v2783
      %v2898 = vadd.f32 %v2624, %v2788
      %v2899 = vadd.f32 %v2625, %v2793
      %v2900 = vadd.f32 %v2626, %v2798
      %v2901 = vadd.f32 %v2627, %v2803
      %v2902 = vadd.f32 %v2628, %v2808
      %v2903 = vadd.f32 %v2629, %v2813
      %v2904 = vadd.f32 %v2630, %v2818
      %v2905 = vadd.f32 %v2631, %v2823
      %v2906 = vadd.f32 %v2632, %v2828
      %v2907 = vadd.f32 %v2633, %v2833
      %v2908 = vadd.f32 %v2634, %v2838
      %v2909 = vadd.f32 %v2635, %v2843
      %v2910 = vadd.f32 %v2636, %v2848
      %v2911 = vadd.f32 %v2637, %v2853
      %v2912 = vadd.f32 %v2638, %v2858
      %v2913 = vadd.f32 %v2639, %v2863
      %v2914 = vadd.f32 %v2640, %v2868
      %v2915 = vadd.f32 %v2641, %v2873
      %v2916 = vadd.f32 %v2642, %v2878
      %v2917 = vadd.f32 %v2643, %v2883
      %v2918 = vmax.f32 %v2886, 0.0
      %v2919 = vmax.f32 %v2887, 0.0
      %v2920 = vmax.f32 %v2888, 0.0
      %v2921 = vmax.f32 %v2889, 0.0
      %v2922 = vmax.f32 %v2890, 0.0
      %v2923 = vmax.f32 %v2891, 0.0
      %v2924 = vmax.f32 %v2892, 0.0
      %v2925 = vmax.f32 %v2893, 0.0
      %v2926 = vmax.f32 %v2894, 0.0
      %v2927 = vmax.f32 %v2895, 0.0
      %v2928 = vmax.f32 %v2896, 0.0
      %v2929 = vmax.f32 %v2897, 0.0
      %v2930 = vmax.f32 %v2898, 0.0
      %v2931 = vmax.f32 %v2899, 0.0
      %v2932 = vmax.f32 %v2900, 0.0
      %v2933 = vmax.f32 %v2901, 0.0
      %v2934 = vmax.f32 %v2902, 0.0
      %v2935 = vmax.f32 %v2903, 0.0
      %v2936 = vmax.f32 %v2904, 0.0
      %v2937 = vmax.f32 %v2905, 0.0
      %v2938 = vmax.f32 %v2906, 0.0
      %v2939 = vmax.f32 %v2907, 0.0
      %v2940 = vmax.f32 %v2908, 0.0
      %v2941 = vmax.f32 %v2909, 0.0
      %v2942 = vmax.f32 %v2910, 0.0
      %v2943 = vmax.f32 %v2911, 0.0
      %v2944 = vmax.f32 %v2912, 0.0
      %v2945 = vmax.f32 %v2913, 0.0
      %v2946 = vmax.f32 %v2914, 0.0
      %v2947 = vmax.f32 %v2915, 0.0
      %v2948 = vmax.f32 %v2916, 0.0
      %v2949 = vmax.f32 %v2917, 0.0
      %2950 = vst [vmem:[%s246 + $0x1] sm:$0xff] %v2918
      %2951 = vst [vmem:[%s246 + $0x9] sm:$0xff] %v2919
      %2952 = vst [vmem:[%s246 + $0x19] sm:$0xff] %v2920
      %2953 = vst [vmem:[%s246 + $0x21] sm:$0xff] %v2921
      %2954 = vst [vmem:[%s246 + $0x31] sm:$0xff] %v2922
      %2955 = vst [vmem:[%s246 + $0x39] sm:$0xff] %v2923
      %2956 = vst [vmem:[%s246 + $0x49] sm:$0xff] %v2924
      %2957 = vst [vmem:[%s246 + $0x51] sm:$0xff] %v2925
      %2958 = vst [vmem:[%s246 + $0x61] sm:$0xff] %v2926
      %2959 = vst [vmem:[%s246 + $0x69] sm:$0xff] %v2927
      %2960 = vst [vmem:[%s246 + $0x79] sm:$0xff] %v2928
      %2961 = vst [vmem:[%s246 + $0x81] sm:$0xff] %v2929
      %2962 = vst [vmem:[%s246 + $0x91] sm:$0xff] %v2930
      %2963 = vst [vmem:[%s246 + $0x99] sm:$0xff] %v2931
      %2964 = vst [vmem:[%s246 + $0xa9] sm:$0xff] %v2932
      %2965 = vst [vmem:[%s246 + $0xb1] sm:$0xff] %v2933
      %2966 = vst [vmem:[%s246 + $0xc1] sm:$0xff] %v2934
      %2967 = vst [vmem:[%s246 + $0xc9] sm:$0xff] %v2935
      %2968 = vst [vmem:[%s246 + $0xd9] sm:$0xff] %v2936
      %2969 = vst [vmem:[%s246 + $0xe1] sm:$0xff] %v2937
      %2970 = vst [vmem:[%s246 + $0xf1] sm:$0xff] %v2938
      %2971 = vst [vmem:[%s246 + $0xf9] sm:$0xff] %v2939
      %2972 = vst [vmem:[%s246 + $0x109] sm:$0xff] %v2940
      %2973 = vst [vmem:[%s246 + $0x111] sm:$0xff] %v2941
      %2974 = vst [vmem:[%s246 + $0x121] sm:$0xff] %v2942
      %2975 = vst [vmem:[%s246 + $0x129] sm:$0xff] %v2943
      %2976 = vst [vmem:[%s246 + $0x139] sm:$0xff] %v2944
      %2977 = vst [vmem:[%s246 + $0x141] sm:$0xff] %v2945
      %2978 = vst [vmem:[%s246 + $0x151] sm:$0xff] %v2946
      %2979 = vst [vmem:[%s246 + $0x159] sm:$0xff] %v2947
      %2980 = vst [vmem:[%s246 + $0x169] sm:$0xff] %v2948
      %2981 = vst [vmem:[%s246 + $0x171] sm:$0xff] %v2949
      %v2982 = vld [vmem:[#allocation2] sm:$0xff]
      %v2983 = vld [vmem:[#allocation2 + $0x8] sm:$0xff]
      %v2984 = vld [vmem:[#allocation2 + $0x10] sm:$0xff]
      %v2985 = vld [vmem:[#allocation2 + $0x18] sm:$0xff]
      %v2986 = vld [vmem:[#allocation2 + $0x20] sm:$0xff]
      %v2987 = vld [vmem:[#allocation2 + $0x28] sm:$0xff]
      %v2988 = vld [vmem:[#allocation2 + $0x30] sm:$0xff]
      %v2989 = vld [vmem:[#allocation2 + $0x38] sm:$0xff]
      %v2990 = vld [vmem:[#allocation2 + $0x40] sm:$0xff]
      %v2991 = vld [vmem:[#allocation2 + $0x48] sm:$0xff]
      %v2992 = vld [vmem:[#allocation2 + $0x50] sm:$0xff]
      %v2993 = vld [vmem:[#allocation2 + $0x58] sm:$0xff]
      %v2994 = vld [vmem:[#allocation2 + $0x60] sm:$0xff]
      %v2995 = vld [vmem:[#allocation2 + $0x68] sm:$0xff]
      %v2996 = vld [vmem:[#allocation2 + $0x70] sm:$0xff]
      %v2997 = vld [vmem:[#allocation2 + $0x78] sm:$0xff]
      %v2998 = vld [vmem:[#allocation2 + $0x80] sm:$0xff]
      %v2999 = vld [vmem:[#allocation2 + $0x88] sm:$0xff]
      %v3000 = vld [vmem:[#allocation2 + $0x90] sm:$0xff]
      %v3001 = vld [vmem:[#allocation2 + $0x98] sm:$0xff]
      %v3002 = vld [vmem:[#allocation2 + $0xa0] sm:$0xff]
      %v3003 = vld [vmem:[#allocation2 + $0xa8] sm:$0xff]
      %v3004 = vld [vmem:[#allocation2 + $0xb0] sm:$0xff]
      %v3005 = vld [vmem:[#allocation2 + $0xb8] sm:$0xff]
      %v3006 = vld [vmem:[#allocation2 + $0xc0] sm:$0xff]
      %v3007 = vld [vmem:[#allocation2 + $0xc8] sm:$0xff]
      %v3008 = vld [vmem:[#allocation2 + $0xd0] sm:$0xff]
      %v3009 = vld [vmem:[#allocation2 + $0xd8] sm:$0xff]
      %v3010 = vld [vmem:[#allocation2 + $0xe0] sm:$0xff]
      %v3011 = vld [vmem:[#allocation2 + $0xe8] sm:$0xff]
      %v3012 = vld [vmem:[#allocation2 + $0xf0] sm:$0xff]
      %v3013 = vld [vmem:[#allocation2 + $0xf8] sm:$0xff]
      %v3014 = vld [vmem:[#allocation2 + $0x100] sm:$0xff]
      %v3015 = vld [vmem:[#allocation2 + $0x108] sm:$0xff]
      %v3016 = vld [vmem:[#allocation2 + $0x110] sm:$0xff]
      %v3017 = vld [vmem:[#allocation2 + $0x118] sm:$0xff]
      %v3018 = vld [vmem:[#allocation2 + $0x120] sm:$0xff]
      %v3019 = vld [vmem:[#allocation2 + $0x128] sm:$0xff]
      %v3020 = vld [vmem:[#allocation2 + $0x130] sm:$0xff]
      %v3021 = vld [vmem:[#allocation2 + $0x138] sm:$0xff]
      %v3022 = vld [vmem:[#allocation2 + $0x140] sm:$0xff]
      %v3023 = vld [vmem:[#allocation2 + $0x148] sm:$0xff]
      %v3024 = vld [vmem:[#allocation2 + $0x150] sm:$0xff]
      %v3025 = vld [vmem:[#allocation2 + $0x158] sm:$0xff]
      %v3026 = vld [vmem:[#allocation2 + $0x160] sm:$0xff]
      %v3027 = vld [vmem:[#allocation2 + $0x168] sm:$0xff]
      %v3028 = vld [vmem:[#allocation2 + $0x170] sm:$0xff]
      %v3029 = vld [vmem:[#allocation2 + $0x178] sm:$0xff]
      %v3030 = vld [vmem:[#allocation2 + $0x180] sm:$0xff]
      %v3031 = vld [vmem:[#allocation2 + $0x188] sm:$0xff]
      %v3032 = vld [vmem:[#allocation2 + $0x190] sm:$0xff]
      %v3033 = vld [vmem:[#allocation2 + $0x198] sm:$0xff]
      %v3034 = vld [vmem:[#allocation2 + $0x1a0] sm:$0xff]
      %v3035 = vld [vmem:[#allocation2 + $0x1a8] sm:$0xff]
      %v3036 = vld [vmem:[%s2] sm:$0xff]
      %v3037 = vld [vmem:[%s2 + $0x8] sm:$0xff]
      %v3038 = vld [vmem:[%s2 + $0x10] sm:$0xff]
      %v3039 = vld [vmem:[%s2 + $0x18] sm:$0xff]
      %v3040 = vld [vmem:[%s2 + $0x20] sm:$0xff]
      %v3041 = vld [vmem:[%s2 + $0x28] sm:$0xff]
      %v3042 = vld [vmem:[%s2 + $0x30] sm:$0xff]
      %v3043 = vld [vmem:[%s2 + $0x38] sm:$0xff]
      %v3044 = vld [vmem:[%s2 + $0x40] sm:$0xff]
      %v3045 = vld [vmem:[%s2 + $0x48] sm:$0xff]
      %v3046 = vld [vmem:[%s2 + $0x50] sm:$0xff]
      %v3047 = vld [vmem:[%s2 + $0x58] sm:$0xff]
      %v3048 = vld [vmem:[%s2 + $0x60] sm:$0xff]
      %v3049 = vld [vmem:[%s2 + $0x68] sm:$0xff]
      %v3050 = vld [vmem:[%s2 + $0x70] sm:$0xff]
      %v3051 = vld [vmem:[%s2 + $0x78] sm:$0xff]
      %s3052 = scalar_lea.vmem %s2, 384
      %v3053 = vld [vmem:[%s3052] sm:$0xff]
      %v3054 = vld [vmem:[%s3052 + $0x8] sm:$0xff]
      %v3055 = vld [vmem:[%s3052 + $0x10] sm:$0xff]
      %v3056 = vld [vmem:[%s3052 + $0x18] sm:$0xff]
      %v3057 = vld [vmem:[%s3052 + $0x20] sm:$0xff]
      %v3058 = vld [vmem:[%s3052 + $0x28] sm:$0xff]
      %v3059 = vld [vmem:[%s3052 + $0x30] sm:$0xff]
      %v3060 = vld [vmem:[%s3052 + $0x38] sm:$0xff]
      %v3061 = vld [vmem:[%s3052 + $0x40] sm:$0xff]
      %v3062 = vld [vmem:[%s3052 + $0x48] sm:$0xff]
      %v3063 = vld [vmem:[%s3052 + $0x50] sm:$0xff]
      %v3064 = vld [vmem:[%s3052 + $0x58] sm:$0xff]
      %v3065 = vld [vmem:[%s3052 + $0x60] sm:$0xff]
      %v3066 = vld [vmem:[%s3052 + $0x68] sm:$0xff]
      %v3067 = vld [vmem:[%s3052 + $0x70] sm:$0xff]
      %v3068 = vld [vmem:[%s3052 + $0x78] sm:$0xff]
      %3069 = vmatprep.subr.mxu0 0.0
      %3070 = vmatpush1.msra.mxu0 %v3068
      %3071 = vmatprep.subr.mxu0 0.0
      %3072 = vmatpush1.msra.mxu0 %v3067
      %3073 = vmatprep.subr.mxu0 0.0
      %3074 = vmatpush1.msra.mxu0 %v3066
      %3075 = vmatprep.subr.mxu0 0.0
      %3076 = vmatpush1.msra.mxu0 %v3065
      %3077 = vmatprep.subr.mxu0 0.0
      %3078 = vmatpush1.msra.mxu0 %v3064
      %3079 = vmatprep.subr.mxu0 0.0
      %3080 = vmatpush1.msra.mxu0 %v3063
      %3081 = vmatprep.subr.mxu0 0.0
      %3082 = vmatpush1.msra.mxu0 %v3062
      %3083 = vmatprep.subr.mxu0 0.0
      %3084 = vmatpush1.msra.mxu0 %v3061
      %3085 = vmatprep.subr.mxu0 0.0
      %3086 = vmatpush1.msra.mxu0 %v3060
      %3087 = vmatprep.subr.mxu0 0.0
      %3088 = vmatpush1.msra.mxu0 %v3059
      %3089 = vmatprep.subr.mxu0 0.0
      %3090 = vmatpush1.msra.mxu0 %v3058
      %3091 = vmatprep.subr.mxu0 0.0
      %3092 = vmatpush1.msra.mxu0 %v3057
      %3093 = vmatprep.subr.mxu0 0.0
      %3094 = vmatpush1.msra.mxu0 %v3056
      %3095 = vmatprep.subr.mxu0 0.0
      %3096 = vmatpush1.msra.mxu0 %v3055
      %3097 = vmatprep.subr.mxu0 0.0
      %3098 = vmatpush1.msra.mxu0 %v3054
      %3099 = vmatprep.subr.mxu0 0.0
      %3100 = vmatpush1.msra.mxu0 %v3053
      %3101 = vmatprep.subr.mxu0 0.0
      %3102 = vmatpush2.msra.mxu0 0.0
      %3103 = vmatprep.subr.mxu0 0.0
      %3104 = vmatpush2.msra.mxu0 0.0
      %3105 = vmatprep.subr.mxu0 0.0
      %3106 = vmatpush2.msra.mxu0 0.0
      %3107 = vmatprep.subr.mxu0 0.0
      %3108 = vmatpush2.msra.mxu0 0.0
      %3109 = vmatprep.subr.mxu0 0.0
      %3110 = vmatpush2.msra.mxu0 0.0
      %3111 = vmatprep.subr.mxu0 0.0
      %3112 = vmatpush2.msra.mxu0 0.0
      %3113 = vmatprep.subr.mxu0 0.0
      %3114 = vmatpush2.msra.mxu0 0.0
      %3115 = vmatprep.subr.mxu0 0.0
      %3116 = vmatpush2.msra.mxu0 0.0
      %3117 = vmatprep.subr.mxu0 0.0
      %3118 = vmatpush2.msra.mxu0 0.0
      %3119 = vmatprep.subr.mxu0 0.0
      %3120 = vmatpush2.msra.mxu0 0.0
      %3121 = vmatprep.subr.mxu0 0.0
      %3122 = vmatpush2.msra.mxu0 0.0
      %3123 = vmatprep.subr.mxu0 0.0
      %3124 = vmatpush2.msra.mxu0 0.0
      %3125 = vmatprep.subr.mxu0 0.0
      %3126 = vmatpush2.msra.mxu0 0.0
      %3127 = vmatprep.subr.mxu0 0.0
      %3128 = vmatpush2.msra.mxu0 0.0
      %3129 = vmatprep.subr.mxu0 0.0
      %3130 = vmatpush2.msra.mxu0 0.0
      %3131 = vmatprep.subr.mxu0 0.0
      %3132 = vmatpush2.msra.mxu0 0.0
      %3133 = vmatprep.mubr.f32.mxu0 0.0
      %3134 = vmatmul.mubr.f32.gmra.mxu0 %v2985
      %v3135 = vpop.f32.mrf.mxu0
      %v3136 = vadd.f32 0.0, %v3135
      %v3137 = vpop.f32.mrf.mxu0
      %3138 = vmatprep.mubr.f32.mxu0 0.0
      %3139 = vmatmul.mubr.f32.gmra.mxu0 %v2986
      %v3140 = vpop.f32.mrf.mxu0
      %v3141 = vadd.f32 0.0, %v3140
      %v3142 = vpop.f32.mrf.mxu0
      %3143 = vmatprep.mubr.f32.mxu0 0.0
      %3144 = vmatmul.mubr.f32.gmra.mxu0 %v2988
      %v3145 = vpop.f32.mrf.mxu0
      %v3146 = vadd.f32 0.0, %v3145
      %v3147 = vpop.f32.mrf.mxu0
      %3148 = vmatprep.mubr.f32.mxu0 0.0
      %3149 = vmatmul.mubr.f32.gmra.mxu0 %v2989
      %v3150 = vpop.f32.mrf.mxu0
      %v3151 = vadd.f32 0.0, %v3150
      %v3152 = vpop.f32.mrf.mxu0
      %3153 = vmatprep.mubr.f32.mxu0 0.0
      %3154 = vmatmul.mubr.f32.gmra.mxu0 %v2991
      %v3155 = vpop.f32.mrf.mxu0
      %v3156 = vadd.f32 0.0, %v3155
      %v3157 = vpop.f32.mrf.mxu0
      %3158 = vmatprep.mubr.f32.mxu0 0.0
      %3159 = vmatmul.mubr.f32.gmra.mxu0 %v2992
      %v3160 = vpop.f32.mrf.mxu0
      %v3161 = vadd.f32 0.0, %v3160
      %v3162 = vpop.f32.mrf.mxu0
      %3163 = vmatprep.mubr.f32.mxu0 0.0
      %3164 = vmatmul.mubr.f32.gmra.mxu0 %v2994
      %v3165 = vpop.f32.mrf.mxu0
      %v3166 = vadd.f32 0.0, %v3165
      %v3167 = vpop.f32.mrf.mxu0
      %3168 = vmatprep.mubr.f32.mxu0 0.0
      %3169 = vmatmul.mubr.f32.gmra.mxu0 %v2995
      %v3170 = vpop.f32.mrf.mxu0
      %v3171 = vadd.f32 0.0, %v3170
      %v3172 = vpop.f32.mrf.mxu0
      %3173 = vmatprep.mubr.f32.mxu0 0.0
      %3174 = vmatmul.mubr.f32.gmra.mxu0 %v2997
      %v3175 = vpop.f32.mrf.mxu0
      %v3176 = vadd.f32 0.0, %v3175
      %v3177 = vpop.f32.mrf.mxu0
      %3178 = vmatprep.mubr.f32.mxu0 0.0
      %3179 = vmatmul.mubr.f32.gmra.mxu0 %v2998
      %v3180 = vpop.f32.mrf.mxu0
      %v3181 = vadd.f32 0.0, %v3180
      %v3182 = vpop.f32.mrf.mxu0
      %3183 = vmatprep.mubr.f32.mxu0 0.0
      %3184 = vmatmul.mubr.f32.gmra.mxu0 %v3000
      %v3185 = vpop.f32.mrf.mxu0
      %v3186 = vadd.f32 0.0, %v3185
      %v3187 = vpop.f32.mrf.mxu0
      %3188 = vmatprep.mubr.f32.mxu0 0.0
      %3189 = vmatmul.mubr.f32.gmra.mxu0 %v3001
      %v3190 = vpop.f32.mrf.mxu0
      %v3191 = vadd.f32 0.0, %v3190
      %v3192 = vpop.f32.mrf.mxu0
      %3193 = vmatprep.mubr.f32.mxu0 0.0
      %3194 = vmatmul.mubr.f32.gmra.mxu0 %v3003
      %v3195 = vpop.f32.mrf.mxu0
      %v3196 = vadd.f32 0.0, %v3195
      %v3197 = vpop.f32.mrf.mxu0
      %3198 = vmatprep.mubr.f32.mxu0 0.0
      %3199 = vmatmul.mubr.f32.gmra.mxu0 %v3004
      %v3200 = vpop.f32.mrf.mxu0
      %v3201 = vadd.f32 0.0, %v3200
      %v3202 = vpop.f32.mrf.mxu0
      %3203 = vmatprep.mubr.f32.mxu0 0.0
      %3204 = vmatmul.mubr.f32.gmra.mxu0 %v3006
      %v3205 = vpop.f32.mrf.mxu0
      %v3206 = vadd.f32 0.0, %v3205
      %v3207 = vpop.f32.mrf.mxu0
      %3208 = vmatprep.mubr.f32.mxu0 0.0
      %3209 = vmatmul.mubr.f32.gmra.mxu0 %v3007
      %v3210 = vpop.f32.mrf.mxu0
      %v3211 = vadd.f32 0.0, %v3210
      %v3212 = vpop.f32.mrf.mxu0
      %3213 = vmatprep.mubr.f32.mxu0 0.0
      %3214 = vmatmul.mubr.f32.gmra.mxu0 %v3009
      %v3215 = vpop.f32.mrf.mxu0
      %v3216 = vadd.f32 0.0, %v3215
      %v3217 = vpop.f32.mrf.mxu0
      %3218 = vmatprep.mubr.f32.mxu0 0.0
      %3219 = vmatmul.mubr.f32.gmra.mxu0 %v3010
      %v3220 = vpop.f32.mrf.mxu0
      %v3221 = vadd.f32 0.0, %v3220
      %v3222 = vpop.f32.mrf.mxu0
      %3223 = vmatprep.mubr.f32.mxu0 0.0
      %3224 = vmatmul.mubr.f32.gmra.mxu0 %v3012
      %v3225 = vpop.f32.mrf.mxu0
      %v3226 = vadd.f32 0.0, %v3225
      %v3227 = vpop.f32.mrf.mxu0
      %3228 = vmatprep.mubr.f32.mxu0 0.0
      %3229 = vmatmul.mubr.f32.gmra.mxu0 %v3013
      %v3230 = vpop.f32.mrf.mxu0
      %v3231 = vadd.f32 0.0, %v3230
      %v3232 = vpop.f32.mrf.mxu0
      %3233 = vmatprep.mubr.f32.mxu0 0.0
      %3234 = vmatmul.mubr.f32.gmra.mxu0 %v3015
      %v3235 = vpop.f32.mrf.mxu0
      %v3236 = vadd.f32 0.0, %v3235
      %v3237 = vpop.f32.mrf.mxu0
      %3238 = vmatprep.mubr.f32.mxu0 0.0
      %3239 = vmatmul.mubr.f32.gmra.mxu0 %v3016
      %v3240 = vpop.f32.mrf.mxu0
      %v3241 = vadd.f32 0.0, %v3240
      %v3242 = vpop.f32.mrf.mxu0
      %3243 = vmatprep.mubr.f32.mxu0 0.0
      %3244 = vmatmul.mubr.f32.gmra.mxu0 %v3018
      %v3245 = vpop.f32.mrf.mxu0
      %v3246 = vadd.f32 0.0, %v3245
      %v3247 = vpop.f32.mrf.mxu0
      %3248 = vmatprep.mubr.f32.mxu0 0.0
      %3249 = vmatmul.mubr.f32.gmra.mxu0 %v3019
      %v3250 = vpop.f32.mrf.mxu0
      %v3251 = vadd.f32 0.0, %v3250
      %v3252 = vpop.f32.mrf.mxu0
      %3253 = vmatprep.mubr.f32.mxu0 0.0
      %3254 = vmatmul.mubr.f32.gmra.mxu0 %v3021
      %v3255 = vpop.f32.mrf.mxu0
      %v3256 = vadd.f32 0.0, %v3255
      %v3257 = vpop.f32.mrf.mxu0
      %3258 = vmatprep.mubr.f32.mxu0 0.0
      %3259 = vmatmul.mubr.f32.gmra.mxu0 %v3022
      %v3260 = vpop.f32.mrf.mxu0
      %v3261 = vadd.f32 0.0, %v3260
      %v3262 = vpop.f32.mrf.mxu0
      %3263 = vmatprep.mubr.f32.mxu0 0.0
      %3264 = vmatmul.mubr.f32.gmra.mxu0 %v3024
      %v3265 = vpop.f32.mrf.mxu0
      %v3266 = vadd.f32 0.0, %v3265
      %v3267 = vpop.f32.mrf.mxu0
      %3268 = vmatprep.mubr.f32.mxu0 0.0
      %3269 = vmatmul.mubr.f32.gmra.mxu0 %v3025
      %v3270 = vpop.f32.mrf.mxu0
      %v3271 = vadd.f32 0.0, %v3270
      %v3272 = vpop.f32.mrf.mxu0
      %3273 = vmatprep.mubr.f32.mxu0 0.0
      %3274 = vmatmul.mubr.f32.gmra.mxu0 %v3027
      %v3275 = vpop.f32.mrf.mxu0
      %v3276 = vadd.f32 0.0, %v3275
      %v3277 = vpop.f32.mrf.mxu0
      %3278 = vmatprep.mubr.f32.mxu0 0.0
      %3279 = vmatmul.mubr.f32.gmra.mxu0 %v3028
      %v3280 = vpop.f32.mrf.mxu0
      %v3281 = vadd.f32 0.0, %v3280
      %v3282 = vpop.f32.mrf.mxu0
      %3283 = vmatprep.mubr.f32.mxu0 0.0
      %3284 = vmatmul.mubr.f32.gmra.mxu0 %v3030
      %v3285 = vpop.f32.mrf.mxu0
      %v3286 = vadd.f32 0.0, %v3285
      %v3287 = vpop.f32.mrf.mxu0
      %3288 = vmatprep.mubr.f32.mxu0 0.0
      %3289 = vmatmul.mubr.f32.gmra.mxu0 %v3031
      %v3290 = vpop.f32.mrf.mxu0
      %v3291 = vadd.f32 0.0, %v3290
      %v3292 = vpop.f32.mrf.mxu0
      %3293 = vdwg.mxu0
      %3294 = vmatprep.subr.mxu0 0.0
      %3295 = vmatpush1.msra.mxu0 %v3051
      %3296 = vmatprep.subr.mxu0 0.0
      %3297 = vmatpush1.msra.mxu0 %v3050
      %3298 = vmatprep.subr.mxu0 0.0
      %3299 = vmatpush1.msra.mxu0 %v3049
      %3300 = vmatprep.subr.mxu0 0.0
      %3301 = vmatpush1.msra.mxu0 %v3048
      %3302 = vmatprep.subr.mxu0 0.0
      %3303 = vmatpush1.msra.mxu0 %v3047
      %3304 = vmatprep.subr.mxu0 0.0
      %3305 = vmatpush1.msra.mxu0 %v3046
      %3306 = vmatprep.subr.mxu0 0.0
      %3307 = vmatpush1.msra.mxu0 %v3045
      %3308 = vmatprep.subr.mxu0 0.0
      %3309 = vmatpush1.msra.mxu0 %v3044
      %3310 = vmatprep.subr.mxu0 0.0
      %3311 = vmatpush1.msra.mxu0 %v3043
      %3312 = vmatprep.subr.mxu0 0.0
      %3313 = vmatpush1.msra.mxu0 %v3042
      %3314 = vmatprep.subr.mxu0 0.0
      %3315 = vmatpush1.msra.mxu0 %v3041
      %3316 = vmatprep.subr.mxu0 0.0
      %3317 = vmatpush1.msra.mxu0 %v3040
      %3318 = vmatprep.subr.mxu0 0.0
      %3319 = vmatpush1.msra.mxu0 %v3039
      %3320 = vmatprep.subr.mxu0 0.0
      %3321 = vmatpush1.msra.mxu0 %v3038
      %3322 = vmatprep.subr.mxu0 0.0
      %3323 = vmatpush1.msra.mxu0 %v3037
      %3324 = vmatprep.subr.mxu0 0.0
      %3325 = vmatpush1.msra.mxu0 %v3036
      %3326 = vmatprep.subr.mxu0 0.0
      %3327 = vmatpush2.msra.mxu0 0.0
      %3328 = vmatprep.subr.mxu0 0.0
      %3329 = vmatpush2.msra.mxu0 0.0
      %3330 = vmatprep.subr.mxu0 0.0
      %3331 = vmatpush2.msra.mxu0 0.0
      %3332 = vmatprep.subr.mxu0 0.0
      %3333 = vmatpush2.msra.mxu0 0.0
      %3334 = vmatprep.subr.mxu0 0.0
      %3335 = vmatpush2.msra.mxu0 0.0
      %3336 = vmatprep.subr.mxu0 0.0
      %3337 = vmatpush2.msra.mxu0 0.0
      %3338 = vmatprep.subr.mxu0 0.0
      %3339 = vmatpush2.msra.mxu0 0.0
      %3340 = vmatprep.subr.mxu0 0.0
      %3341 = vmatpush2.msra.mxu0 0.0
      %3342 = vmatprep.subr.mxu0 0.0
      %3343 = vmatpush2.msra.mxu0 0.0
      %3344 = vmatprep.subr.mxu0 0.0
      %3345 = vmatpush2.msra.mxu0 0.0
      %3346 = vmatprep.subr.mxu0 0.0
      %3347 = vmatpush2.msra.mxu0 0.0
      %3348 = vmatprep.subr.mxu0 0.0
      %3349 = vmatpush2.msra.mxu0 0.0
      %3350 = vmatprep.subr.mxu0 0.0
      %3351 = vmatpush2.msra.mxu0 0.0
      %3352 = vmatprep.subr.mxu0 0.0
      %3353 = vmatpush2.msra.mxu0 0.0
      %3354 = vmatprep.subr.mxu0 0.0
      %3355 = vmatpush2.msra.mxu0 0.0
      %3356 = vmatprep.subr.mxu0 0.0
      %3357 = vmatpush2.msra.mxu0 0.0
      %3358 = vmatprep.mubr.f32.mxu0 0.0
      %3359 = vmatmul.mubr.f32.gmra.mxu0 %v2982
      %v3360 = vpop.f32.mrf.mxu0
      %v3361 = vadd.f32 %v3136, %v3360
      %v3362 = vpop.f32.mrf.mxu0
      %3363 = vmatprep.mubr.f32.mxu0 0.0
      %3364 = vmatmul.mubr.f32.gmra.mxu0 %v2983
      %v3365 = vpop.f32.mrf.mxu0
      %v3366 = vadd.f32 %v3141, %v3365
      %v3367 = vpop.f32.mrf.mxu0
      %3368 = vmatprep.mubr.f32.mxu0 0.0
      %3369 = vmatmul.mubr.f32.gmra.mxu0 %v2985
      %v3370 = vpop.f32.mrf.mxu0
      %v3371 = vadd.f32 %v3146, %v3370
      %v3372 = vpop.f32.mrf.mxu0
      %3373 = vmatprep.mubr.f32.mxu0 0.0
      %3374 = vmatmul.mubr.f32.gmra.mxu0 %v2986
      %v3375 = vpop.f32.mrf.mxu0
      %v3376 = vadd.f32 %v3151, %v3375
      %v3377 = vpop.f32.mrf.mxu0
      %3378 = vmatprep.mubr.f32.mxu0 0.0
      %3379 = vmatmul.mubr.f32.gmra.mxu0 %v2988
      %v3380 = vpop.f32.mrf.mxu0
      %v3381 = vadd.f32 %v3156, %v3380
      %v3382 = vpop.f32.mrf.mxu0
      %3383 = vmatprep.mubr.f32.mxu0 0.0
      %3384 = vmatmul.mubr.f32.gmra.mxu0 %v2989
      %v3385 = vpop.f32.mrf.mxu0
      %v3386 = vadd.f32 %v3161, %v3385
      %v3387 = vpop.f32.mrf.mxu0
      %3388 = vmatprep.mubr.f32.mxu0 0.0
      %3389 = vmatmul.mubr.f32.gmra.mxu0 %v2991
      %v3390 = vpop.f32.mrf.mxu0
      %v3391 = vadd.f32 %v3166, %v3390
      %v3392 = vpop.f32.mrf.mxu0
      %3393 = vmatprep.mubr.f32.mxu0 0.0
      %3394 = vmatmul.mubr.f32.gmra.mxu0 %v2992
      %v3395 = vpop.f32.mrf.mxu0
      %v3396 = vadd.f32 %v3171, %v3395
      %v3397 = vpop.f32.mrf.mxu0
      %3398 = vmatprep.mubr.f32.mxu0 0.0
      %3399 = vmatmul.mubr.f32.gmra.mxu0 %v2994
      %v3400 = vpop.f32.mrf.mxu0
      %v3401 = vadd.f32 %v3176, %v3400
      %v3402 = vpop.f32.mrf.mxu0
      %3403 = vmatprep.mubr.f32.mxu0 0.0
      %3404 = vmatmul.mubr.f32.gmra.mxu0 %v2995
      %v3405 = vpop.f32.mrf.mxu0
      %v3406 = vadd.f32 %v3181, %v3405
      %v3407 = vpop.f32.mrf.mxu0
      %3408 = vmatprep.mubr.f32.mxu0 0.0
      %3409 = vmatmul.mubr.f32.gmra.mxu0 %v2997
      %v3410 = vpop.f32.mrf.mxu0
      %v3411 = vadd.f32 %v3186, %v3410
      %v3412 = vpop.f32.mrf.mxu0
      %3413 = vmatprep.mubr.f32.mxu0 0.0
      %3414 = vmatmul.mubr.f32.gmra.mxu0 %v2998
      %v3415 = vpop.f32.mrf.mxu0
      %v3416 = vadd.f32 %v3191, %v3415
      %v3417 = vpop.f32.mrf.mxu0
      %3418 = vmatprep.mubr.f32.mxu0 0.0
      %3419 = vmatmul.mubr.f32.gmra.mxu0 %v3000
      %v3420 = vpop.f32.mrf.mxu0
      %v3421 = vadd.f32 %v3196, %v3420
      %v3422 = vpop.f32.mrf.mxu0
      %3423 = vmatprep.mubr.f32.mxu0 0.0
      %3424 = vmatmul.mubr.f32.gmra.mxu0 %v3001
      %v3425 = vpop.f32.mrf.mxu0
      %v3426 = vadd.f32 %v3201, %v3425
      %v3427 = vpop.f32.mrf.mxu0
      %3428 = vmatprep.mubr.f32.mxu0 0.0
      %3429 = vmatmul.mubr.f32.gmra.mxu0 %v3003
      %v3430 = vpop.f32.mrf.mxu0
      %v3431 = vadd.f32 %v3206, %v3430
      %v3432 = vpop.f32.mrf.mxu0
      %3433 = vmatprep.mubr.f32.mxu0 0.0
      %3434 = vmatmul.mubr.f32.gmra.mxu0 %v3004
      %v3435 = vpop.f32.mrf.mxu0
      %v3436 = vadd.f32 %v3211, %v3435
      %v3437 = vpop.f32.mrf.mxu0
      %3438 = vmatprep.mubr.f32.mxu0 0.0
      %3439 = vmatmul.mubr.f32.gmra.mxu0 %v3006
      %v3440 = vpop.f32.mrf.mxu0
      %v3441 = vadd.f32 %v3216, %v3440
      %v3442 = vpop.f32.mrf.mxu0
      %3443 = vmatprep.mubr.f32.mxu0 0.0
      %3444 = vmatmul.mubr.f32.gmra.mxu0 %v3007
      %v3445 = vpop.f32.mrf.mxu0
      %v3446 = vadd.f32 %v3221, %v3445
      %v3447 = vpop.f32.mrf.mxu0
      %3448 = vmatprep.mubr.f32.mxu0 0.0
      %3449 = vmatmul.mubr.f32.gmra.mxu0 %v3009
      %v3450 = vpop.f32.mrf.mxu0
      %v3451 = vadd.f32 %v3226, %v3450
      %v3452 = vpop.f32.mrf.mxu0
      %3453 = vmatprep.mubr.f32.mxu0 0.0
      %3454 = vmatmul.mubr.f32.gmra.mxu0 %v3010
      %v3455 = vpop.f32.mrf.mxu0
      %v3456 = vadd.f32 %v3231, %v3455
      %v3457 = vpop.f32.mrf.mxu0
      %3458 = vmatprep.mubr.f32.mxu0 0.0
      %3459 = vmatmul.mubr.f32.gmra.mxu0 %v3012
      %v3460 = vpop.f32.mrf.mxu0
      %v3461 = vadd.f32 %v3236, %v3460
      %v3462 = vpop.f32.mrf.mxu0
      %3463 = vmatprep.mubr.f32.mxu0 0.0
      %3464 = vmatmul.mubr.f32.gmra.mxu0 %v3013
      %v3465 = vpop.f32.mrf.mxu0
      %v3466 = vadd.f32 %v3241, %v3465
      %v3467 = vpop.f32.mrf.mxu0
      %3468 = vmatprep.mubr.f32.mxu0 0.0
      %3469 = vmatmul.mubr.f32.gmra.mxu0 %v3015
      %v3470 = vpop.f32.mrf.mxu0
      %v3471 = vadd.f32 %v3246, %v3470
      %v3472 = vpop.f32.mrf.mxu0
      %3473 = vmatprep.mubr.f32.mxu0 0.0
      %3474 = vmatmul.mubr.f32.gmra.mxu0 %v3016
      %v3475 = vpop.f32.mrf.mxu0
      %v3476 = vadd.f32 %v3251, %v3475
      %v3477 = vpop.f32.mrf.mxu0
      %3478 = vmatprep.mubr.f32.mxu0 0.0
      %3479 = vmatmul.mubr.f32.gmra.mxu0 %v3018
      %v3480 = vpop.f32.mrf.mxu0
      %v3481 = vadd.f32 %v3256, %v3480
      %v3482 = vpop.f32.mrf.mxu0
      %3483 = vmatprep.mubr.f32.mxu0 0.0
      %3484 = vmatmul.mubr.f32.gmra.mxu0 %v3019
      %v3485 = vpop.f32.mrf.mxu0
      %v3486 = vadd.f32 %v3261, %v3485
      %v3487 = vpop.f32.mrf.mxu0
      %3488 = vmatprep.mubr.f32.mxu0 0.0
      %3489 = vmatmul.mubr.f32.gmra.mxu0 %v3021
      %v3490 = vpop.f32.mrf.mxu0
      %v3491 = vadd.f32 %v3266, %v3490
      %v3492 = vpop.f32.mrf.mxu0
      %3493 = vmatprep.mubr.f32.mxu0 0.0
      %3494 = vmatmul.mubr.f32.gmra.mxu0 %v3022
      %v3495 = vpop.f32.mrf.mxu0
      %v3496 = vadd.f32 %v3271, %v3495
      %v3497 = vpop.f32.mrf.mxu0
      %3498 = vmatprep.mubr.f32.mxu0 0.0
      %3499 = vmatmul.mubr.f32.gmra.mxu0 %v3024
      %v3500 = vpop.f32.mrf.mxu0
      %v3501 = vadd.f32 %v3276, %v3500
      %v3502 = vpop.f32.mrf.mxu0
      %3503 = vmatprep.mubr.f32.mxu0 0.0
      %3504 = vmatmul.mubr.f32.gmra.mxu0 %v3025
      %v3505 = vpop.f32.mrf.mxu0
      %v3506 = vadd.f32 %v3281, %v3505
      %v3507 = vpop.f32.mrf.mxu0
      %3508 = vmatprep.mubr.f32.mxu0 0.0
      %3509 = vmatmul.mubr.f32.gmra.mxu0 %v3027
      %v3510 = vpop.f32.mrf.mxu0
      %v3511 = vadd.f32 %v3286, %v3510
      %v3512 = vpop.f32.mrf.mxu0
      %3513 = vmatprep.mubr.f32.mxu0 0.0
      %3514 = vmatmul.mubr.f32.gmra.mxu0 %v3028
      %v3515 = vpop.f32.mrf.mxu0
      %v3516 = vadd.f32 %v3291, %v3515
      %v3517 = vpop.f32.mrf.mxu0
      %3518 = vdwg.mxu0
      %s3519 = scalar_lea.vmem %s2, 768
      %v3520 = vld [vmem:[%s3519] sm:$0xff]
      %v3521 = vld [vmem:[%s3519 + $0x8] sm:$0xff]
      %v3522 = vld [vmem:[%s3519 + $0x10] sm:$0xff]
      %v3523 = vld [vmem:[%s3519 + $0x18] sm:$0xff]
      %v3524 = vld [vmem:[%s3519 + $0x20] sm:$0xff]
      %v3525 = vld [vmem:[%s3519 + $0x28] sm:$0xff]
      %v3526 = vld [vmem:[%s3519 + $0x30] sm:$0xff]
      %v3527 = vld [vmem:[%s3519 + $0x38] sm:$0xff]
      %v3528 = vld [vmem:[%s3519 + $0x40] sm:$0xff]
      %v3529 = vld [vmem:[%s3519 + $0x48] sm:$0xff]
      %v3530 = vld [vmem:[%s3519 + $0x50] sm:$0xff]
      %v3531 = vld [vmem:[%s3519 + $0x58] sm:$0xff]
      %v3532 = vld [vmem:[%s3519 + $0x60] sm:$0xff]
      %v3533 = vld [vmem:[%s3519 + $0x68] sm:$0xff]
      %v3534 = vld [vmem:[%s3519 + $0x70] sm:$0xff]
      %v3535 = vld [vmem:[%s3519 + $0x78] sm:$0xff]
      %3536 = vmatprep.subr.mxu0 0.0
      %3537 = vmatpush1.msra.mxu0 %v3535
      %3538 = vmatprep.subr.mxu0 0.0
      %3539 = vmatpush1.msra.mxu0 %v3534
      %3540 = vmatprep.subr.mxu0 0.0
      %3541 = vmatpush1.msra.mxu0 %v3533
      %3542 = vmatprep.subr.mxu0 0.0
      %3543 = vmatpush1.msra.mxu0 %v3532
      %3544 = vmatprep.subr.mxu0 0.0
      %3545 = vmatpush1.msra.mxu0 %v3531
      %3546 = vmatprep.subr.mxu0 0.0
      %3547 = vmatpush1.msra.mxu0 %v3530
      %3548 = vmatprep.subr.mxu0 0.0
      %3549 = vmatpush1.msra.mxu0 %v3529
      %3550 = vmatprep.subr.mxu0 0.0
      %3551 = vmatpush1.msra.mxu0 %v3528
      %3552 = vmatprep.subr.mxu0 0.0
      %3553 = vmatpush1.msra.mxu0 %v3527
      %3554 = vmatprep.subr.mxu0 0.0
      %3555 = vmatpush1.msra.mxu0 %v3526
      %3556 = vmatprep.subr.mxu0 0.0
      %3557 = vmatpush1.msra.mxu0 %v3525
      %3558 = vmatprep.subr.mxu0 0.0
      %3559 = vmatpush1.msra.mxu0 %v3524
      %3560 = vmatprep.subr.mxu0 0.0
      %3561 = vmatpush1.msra.mxu0 %v3523
      %3562 = vmatprep.subr.mxu0 0.0
      %3563 = vmatpush1.msra.mxu0 %v3522
      %3564 = vmatprep.subr.mxu0 0.0
      %3565 = vmatpush1.msra.mxu0 %v3521
      %3566 = vmatprep.subr.mxu0 0.0
      %3567 = vmatpush1.msra.mxu0 %v3520
      %3568 = vmatprep.subr.mxu0 0.0
      %3569 = vmatpush2.msra.mxu0 0.0
      %3570 = vmatprep.subr.mxu0 0.0
      %3571 = vmatpush2.msra.mxu0 0.0
      %3572 = vmatprep.subr.mxu0 0.0
      %3573 = vmatpush2.msra.mxu0 0.0
      %3574 = vmatprep.subr.mxu0 0.0
      %3575 = vmatpush2.msra.mxu0 0.0
      %3576 = vmatprep.subr.mxu0 0.0
      %3577 = vmatpush2.msra.mxu0 0.0
      %3578 = vmatprep.subr.mxu0 0.0
      %3579 = vmatpush2.msra.mxu0 0.0
      %3580 = vmatprep.subr.mxu0 0.0
      %3581 = vmatpush2.msra.mxu0 0.0
      %3582 = vmatprep.subr.mxu0 0.0
      %3583 = vmatpush2.msra.mxu0 0.0
      %3584 = vmatprep.subr.mxu0 0.0
      %3585 = vmatpush2.msra.mxu0 0.0
      %3586 = vmatprep.subr.mxu0 0.0
      %3587 = vmatpush2.msra.mxu0 0.0
      %3588 = vmatprep.subr.mxu0 0.0
      %3589 = vmatpush2.msra.mxu0 0.0
      %3590 = vmatprep.subr.mxu0 0.0
      %3591 = vmatpush2.msra.mxu0 0.0
      %3592 = vmatprep.subr.mxu0 0.0
      %3593 = vmatpush2.msra.mxu0 0.0
      %3594 = vmatprep.subr.mxu0 0.0
      %3595 = vmatpush2.msra.mxu0 0.0
      %3596 = vmatprep.subr.mxu0 0.0
      %3597 = vmatpush2.msra.mxu0 0.0
      %3598 = vmatprep.subr.mxu0 0.0
      %3599 = vmatpush2.msra.mxu0 0.0
      %3600 = vmatprep.mubr.f32.mxu0 0.0
      %3601 = vmatmul.mubr.f32.gmra.mxu0 %v2988
      %v3602 = vpop.f32.mrf.mxu0
      %v3603 = vadd.f32 0.0, %v3602
      %v3604 = vpop.f32.mrf.mxu0
      %3605 = vmatprep.mubr.f32.mxu0 0.0
      %3606 = vmatmul.mubr.f32.gmra.mxu0 %v2989
      %v3607 = vpop.f32.mrf.mxu0
      %v3608 = vadd.f32 0.0, %v3607
      %v3609 = vpop.f32.mrf.mxu0
      %3610 = vmatprep.mubr.f32.mxu0 0.0
      %3611 = vmatmul.mubr.f32.gmra.mxu0 %v2991
      %v3612 = vpop.f32.mrf.mxu0
      %v3613 = vadd.f32 0.0, %v3612
      %v3614 = vpop.f32.mrf.mxu0
      %3615 = vmatprep.mubr.f32.mxu0 0.0
      %3616 = vmatmul.mubr.f32.gmra.mxu0 %v2992
      %v3617 = vpop.f32.mrf.mxu0
      %v3618 = vadd.f32 0.0, %v3617
      %v3619 = vpop.f32.mrf.mxu0
      %3620 = vmatprep.mubr.f32.mxu0 0.0
      %3621 = vmatmul.mubr.f32.gmra.mxu0 %v2994
      %v3622 = vpop.f32.mrf.mxu0
      %v3623 = vadd.f32 0.0, %v3622
      %v3624 = vpop.f32.mrf.mxu0
      %3625 = vmatprep.mubr.f32.mxu0 0.0
      %3626 = vmatmul.mubr.f32.gmra.mxu0 %v2995
      %v3627 = vpop.f32.mrf.mxu0
      %v3628 = vadd.f32 0.0, %v3627
      %v3629 = vpop.f32.mrf.mxu0
      %3630 = vmatprep.mubr.f32.mxu0 0.0
      %3631 = vmatmul.mubr.f32.gmra.mxu0 %v2997
      %v3632 = vpop.f32.mrf.mxu0
      %v3633 = vadd.f32 0.0, %v3632
      %v3634 = vpop.f32.mrf.mxu0
      %3635 = vmatprep.mubr.f32.mxu0 0.0
      %3636 = vmatmul.mubr.f32.gmra.mxu0 %v2998
      %v3637 = vpop.f32.mrf.mxu0
      %v3638 = vadd.f32 0.0, %v3637
      %v3639 = vpop.f32.mrf.mxu0
      %3640 = vmatprep.mubr.f32.mxu0 0.0
      %3641 = vmatmul.mubr.f32.gmra.mxu0 %v3000
      %v3642 = vpop.f32.mrf.mxu0
      %v3643 = vadd.f32 0.0, %v3642
      %v3644 = vpop.f32.mrf.mxu0
      %3645 = vmatprep.mubr.f32.mxu0 0.0
      %3646 = vmatmul.mubr.f32.gmra.mxu0 %v3001
      %v3647 = vpop.f32.mrf.mxu0
      %v3648 = vadd.f32 0.0, %v3647
      %v3649 = vpop.f32.mrf.mxu0
      %3650 = vmatprep.mubr.f32.mxu0 0.0
      %3651 = vmatmul.mubr.f32.gmra.mxu0 %v3003
      %v3652 = vpop.f32.mrf.mxu0
      %v3653 = vadd.f32 0.0, %v3652
      %v3654 = vpop.f32.mrf.mxu0
      %3655 = vmatprep.mubr.f32.mxu0 0.0
      %3656 = vmatmul.mubr.f32.gmra.mxu0 %v3004
      %v3657 = vpop.f32.mrf.mxu0
      %v3658 = vadd.f32 0.0, %v3657
      %v3659 = vpop.f32.mrf.mxu0
      %3660 = vmatprep.mubr.f32.mxu0 0.0
      %3661 = vmatmul.mubr.f32.gmra.mxu0 %v3006
      %v3662 = vpop.f32.mrf.mxu0
      %v3663 = vadd.f32 0.0, %v3662
      %v3664 = vpop.f32.mrf.mxu0
      %3665 = vmatprep.mubr.f32.mxu0 0.0
      %3666 = vmatmul.mubr.f32.gmra.mxu0 %v3007
      %v3667 = vpop.f32.mrf.mxu0
      %v3668 = vadd.f32 0.0, %v3667
      %v3669 = vpop.f32.mrf.mxu0
      %3670 = vmatprep.mubr.f32.mxu0 0.0
      %3671 = vmatmul.mubr.f32.gmra.mxu0 %v3009
      %v3672 = vpop.f32.mrf.mxu0
      %v3673 = vadd.f32 0.0, %v3672
      %v3674 = vpop.f32.mrf.mxu0
      %3675 = vmatprep.mubr.f32.mxu0 0.0
      %3676 = vmatmul.mubr.f32.gmra.mxu0 %v3010
      %v3677 = vpop.f32.mrf.mxu0
      %v3678 = vadd.f32 0.0, %v3677
      %v3679 = vpop.f32.mrf.mxu0
      %3680 = vmatprep.mubr.f32.mxu0 0.0
      %3681 = vmatmul.mubr.f32.gmra.mxu0 %v3012
      %v3682 = vpop.f32.mrf.mxu0
      %v3683 = vadd.f32 0.0, %v3682
      %v3684 = vpop.f32.mrf.mxu0
      %3685 = vmatprep.mubr.f32.mxu0 0.0
      %3686 = vmatmul.mubr.f32.gmra.mxu0 %v3013
      %v3687 = vpop.f32.mrf.mxu0
      %v3688 = vadd.f32 0.0, %v3687
      %v3689 = vpop.f32.mrf.mxu0
      %3690 = vmatprep.mubr.f32.mxu0 0.0
      %3691 = vmatmul.mubr.f32.gmra.mxu0 %v3015
      %v3692 = vpop.f32.mrf.mxu0
      %v3693 = vadd.f32 0.0, %v3692
      %v3694 = vpop.f32.mrf.mxu0
      %3695 = vmatprep.mubr.f32.mxu0 0.0
      %3696 = vmatmul.mubr.f32.gmra.mxu0 %v3016
      %v3697 = vpop.f32.mrf.mxu0
      %v3698 = vadd.f32 0.0, %v3697
      %v3699 = vpop.f32.mrf.mxu0
      %3700 = vmatprep.mubr.f32.mxu0 0.0
      %3701 = vmatmul.mubr.f32.gmra.mxu0 %v3018
      %v3702 = vpop.f32.mrf.mxu0
      %v3703 = vadd.f32 0.0, %v3702
      %v3704 = vpop.f32.mrf.mxu0
      %3705 = vmatprep.mubr.f32.mxu0 0.0
      %3706 = vmatmul.mubr.f32.gmra.mxu0 %v3019
      %v3707 = vpop.f32.mrf.mxu0
      %v3708 = vadd.f32 0.0, %v3707
      %v3709 = vpop.f32.mrf.mxu0
      %3710 = vmatprep.mubr.f32.mxu0 0.0
      %3711 = vmatmul.mubr.f32.gmra.mxu0 %v3021
      %v3712 = vpop.f32.mrf.mxu0
      %v3713 = vadd.f32 0.0, %v3712
      %v3714 = vpop.f32.mrf.mxu0
      %3715 = vmatprep.mubr.f32.mxu0 0.0
      %3716 = vmatmul.mubr.f32.gmra.mxu0 %v3022
      %v3717 = vpop.f32.mrf.mxu0
      %v3718 = vadd.f32 0.0, %v3717
      %v3719 = vpop.f32.mrf.mxu0
      %3720 = vmatprep.mubr.f32.mxu0 0.0
      %3721 = vmatmul.mubr.f32.gmra.mxu0 %v3024
      %v3722 = vpop.f32.mrf.mxu0
      %v3723 = vadd.f32 0.0, %v3722
      %v3724 = vpop.f32.mrf.mxu0
      %3725 = vmatprep.mubr.f32.mxu0 0.0
      %3726 = vmatmul.mubr.f32.gmra.mxu0 %v3025
      %v3727 = vpop.f32.mrf.mxu0
      %v3728 = vadd.f32 0.0, %v3727
      %v3729 = vpop.f32.mrf.mxu0
      %3730 = vmatprep.mubr.f32.mxu0 0.0
      %3731 = vmatmul.mubr.f32.gmra.mxu0 %v3027
      %v3732 = vpop.f32.mrf.mxu0
      %v3733 = vadd.f32 0.0, %v3732
      %v3734 = vpop.f32.mrf.mxu0
      %3735 = vmatprep.mubr.f32.mxu0 0.0
      %3736 = vmatmul.mubr.f32.gmra.mxu0 %v3028
      %v3737 = vpop.f32.mrf.mxu0
      %v3738 = vadd.f32 0.0, %v3737
      %v3739 = vpop.f32.mrf.mxu0
      %3740 = vmatprep.mubr.f32.mxu0 0.0
      %3741 = vmatmul.mubr.f32.gmra.mxu0 %v3030
      %v3742 = vpop.f32.mrf.mxu0
      %v3743 = vadd.f32 0.0, %v3742
      %v3744 = vpop.f32.mrf.mxu0
      %3745 = vmatprep.mubr.f32.mxu0 0.0
      %3746 = vmatmul.mubr.f32.gmra.mxu0 %v3031
      %v3747 = vpop.f32.mrf.mxu0
      %v3748 = vadd.f32 0.0, %v3747
      %v3749 = vpop.f32.mrf.mxu0
      %3750 = vmatprep.mubr.f32.mxu0 0.0
      %3751 = vmatmul.mubr.f32.gmra.mxu0 %v3033
      %v3752 = vpop.f32.mrf.mxu0
      %v3753 = vadd.f32 0.0, %v3752
      %v3754 = vpop.f32.mrf.mxu0
      %3755 = vmatprep.mubr.f32.mxu0 0.0
      %3756 = vmatmul.mubr.f32.gmra.mxu0 %v3034
      %v3757 = vpop.f32.mrf.mxu0
      %v3758 = vadd.f32 0.0, %v3757
      %v3759 = vpop.f32.mrf.mxu0
      %3760 = vdwg.mxu0
      %v3761 = vadd.f32 %v3361, %v3603
      %v3762 = vadd.f32 %v3366, %v3608
      %v3763 = vadd.f32 %v3371, %v3613
      %v3764 = vadd.f32 %v3376, %v3618
      %v3765 = vadd.f32 %v3381, %v3623
      %v3766 = vadd.f32 %v3386, %v3628
      %v3767 = vadd.f32 %v3391, %v3633
      %v3768 = vadd.f32 %v3396, %v3638
      %v3769 = vadd.f32 %v3401, %v3643
      %v3770 = vadd.f32 %v3406, %v3648
      %v3771 = vadd.f32 %v3411, %v3653
      %v3772 = vadd.f32 %v3416, %v3658
      %v3773 = vadd.f32 %v3421, %v3663
      %v3774 = vadd.f32 %v3426, %v3668
      %v3775 = vadd.f32 %v3431, %v3673
      %v3776 = vadd.f32 %v3436, %v3678
      %v3777 = vadd.f32 %v3441, %v3683
      %v3778 = vadd.f32 %v3446, %v3688
      %v3779 = vadd.f32 %v3451, %v3693
      %v3780 = vadd.f32 %v3456, %v3698
      %v3781 = vadd.f32 %v3461, %v3703
      %v3782 = vadd.f32 %v3466, %v3708
      %v3783 = vadd.f32 %v3471, %v3713
      %v3784 = vadd.f32 %v3476, %v3718
      %v3785 = vadd.f32 %v3481, %v3723
      %v3786 = vadd.f32 %v3486, %v3728
      %v3787 = vadd.f32 %v3491, %v3733
      %v3788 = vadd.f32 %v3496, %v3738
      %v3789 = vadd.f32 %v3501, %v3743
      %v3790 = vadd.f32 %v3506, %v3748
      %v3791 = vadd.f32 %v3511, %v3753
      %v3792 = vadd.f32 %v3516, %v3758
      %v3793 = vrot.slane %v2982, 1
      %v3794 = vrot.slane %v2985, 1
      %v3795 = vrot.slane %v2988, 1
      %v3796 = vrot.slane %v2991, 1
      %v3797 = vrot.slane %v2994, 1
      %v3798 = vrot.slane %v2997, 1
      %v3799 = vrot.slane %v3000, 1
      %v3800 = vrot.slane %v3003, 1
      %v3801 = vrot.slane %v3006, 1
      %v3802 = vrot.slane %v3009, 1
      %v3803 = vrot.slane %v3012, 1
      %v3804 = vrot.slane %v3015, 1
      %v3805 = vrot.slane %v3018, 1
      %v3806 = vrot.slane %v3021, 1
      %v3807 = vrot.slane %v3024, 1
      %v3808 = vrot.slane %v3027, 1
      %v3809 = vrot.slane %v3030, 1
      %v3810 = vrot.slane %v3033, 1
      %v3811 = vrot.slane %v2983, 1
      %v3812 = vrot.slane %v2986, 1
      %v3813 = vrot.slane %v2989, 1
      %v3814 = vrot.slane %v2992, 1
      %v3815 = vrot.slane %v2995, 1
      %v3816 = vrot.slane %v2998, 1
      %v3817 = vrot.slane %v3001, 1
      %v3818 = vrot.slane %v3004, 1
      %v3819 = vrot.slane %v3007, 1
      %v3820 = vrot.slane %v3010, 1
      %v3821 = vrot.slane %v3013, 1
      %v3822 = vrot.slane %v3016, 1
      %v3823 = vrot.slane %v3019, 1
      %v3824 = vrot.slane %v3022, 1
      %v3825 = vrot.slane %v3025, 1
      %v3826 = vrot.slane %v3028, 1
      %v3827 = vrot.slane %v3031, 1
      %v3828 = vrot.slane %v3034, 1
      %v3829 = vrot.slane %v2984, 1
      %v3830 = vrot.slane %v2987, 1
      %v3831 = vrot.slane %v2990, 1
      %v3832 = vrot.slane %v2993, 1
      %v3833 = vrot.slane %v2996, 1
      %v3834 = vrot.slane %v2999, 1
      %v3835 = vrot.slane %v3002, 1
      %v3836 = vrot.slane %v3005, 1
      %v3837 = vrot.slane %v3008, 1
      %v3838 = vrot.slane %v3011, 1
      %v3839 = vrot.slane %v3014, 1
      %v3840 = vrot.slane %v3017, 1
      %v3841 = vrot.slane %v3020, 1
      %v3842 = vrot.slane %v3023, 1
      %v3843 = vrot.slane %v3026, 1
      %v3844 = vrot.slane %v3029, 1
      %v3845 = vrot.slane %v3032, 1
      %v3846 = vrot.slane %v3035, 1
      %v3847 = vsel %vm1146, %v3811, %v3829
      %v3848 = vsel %vm1146, %v3812, %v3830
      %v3849 = vsel %vm1146, %v3813, %v3831
      %v3850 = vsel %vm1146, %v3814, %v3832
      %v3851 = vsel %vm1146, %v3815, %v3833
      %v3852 = vsel %vm1146, %v3816, %v3834
      %v3853 = vsel %vm1146, %v3817, %v3835
      %v3854 = vsel %vm1146, %v3818, %v3836
      %v3855 = vsel %vm1146, %v3819, %v3837
      %v3856 = vsel %vm1146, %v3820, %v3838
      %v3857 = vsel %vm1146, %v3821, %v3839
      %v3858 = vsel %vm1146, %v3822, %v3840
      %v3859 = vsel %vm1146, %v3823, %v3841
      %v3860 = vsel %vm1146, %v3824, %v3842
      %v3861 = vsel %vm1146, %v3825, %v3843
      %v3862 = vsel %vm1146, %v3826, %v3844
      %v3863 = vsel %vm1146, %v3827, %v3845
      %v3864 = vsel %vm1146, %v3828, %v3846
      %v3865 = vsel %vm1146, %v3793, %v3811
      %v3866 = vsel %vm1146, %v3794, %v3812
      %v3867 = vsel %vm1146, %v3795, %v3813
      %v3868 = vsel %vm1146, %v3796, %v3814
      %v3869 = vsel %vm1146, %v3797, %v3815
      %v3870 = vsel %vm1146, %v3798, %v3816
      %v3871 = vsel %vm1146, %v3799, %v3817
      %v3872 = vsel %vm1146, %v3800, %v3818
      %v3873 = vsel %vm1146, %v3801, %v3819
      %v3874 = vsel %vm1146, %v3802, %v3820
      %v3875 = vsel %vm1146, %v3803, %v3821
      %v3876 = vsel %vm1146, %v3804, %v3822
      %v3877 = vsel %vm1146, %v3805, %v3823
      %v3878 = vsel %vm1146, %v3806, %v3824
      %v3879 = vsel %vm1146, %v3807, %v3825
      %v3880 = vsel %vm1146, %v3808, %v3826
      %v3881 = vsel %vm1146, %v3809, %v3827
      %v3882 = vsel %vm1146, %v3810, %v3828
      %s3883 = scalar_lea.vmem %s2, 128
      %v3884 = vld [vmem:[%s3883] sm:$0xff]
      %v3885 = vld [vmem:[%s3883 + $0x8] sm:$0xff]
      %v3886 = vld [vmem:[%s3883 + $0x10] sm:$0xff]
      %v3887 = vld [vmem:[%s3883 + $0x18] sm:$0xff]
      %v3888 = vld [vmem:[%s3883 + $0x20] sm:$0xff]
      %v3889 = vld [vmem:[%s3883 + $0x28] sm:$0xff]
      %v3890 = vld [vmem:[%s3883 + $0x30] sm:$0xff]
      %v3891 = vld [vmem:[%s3883 + $0x38] sm:$0xff]
      %v3892 = vld [vmem:[%s3883 + $0x40] sm:$0xff]
      %v3893 = vld [vmem:[%s3883 + $0x48] sm:$0xff]
      %v3894 = vld [vmem:[%s3883 + $0x50] sm:$0xff]
      %v3895 = vld [vmem:[%s3883 + $0x58] sm:$0xff]
      %v3896 = vld [vmem:[%s3883 + $0x60] sm:$0xff]
      %v3897 = vld [vmem:[%s3883 + $0x68] sm:$0xff]
      %v3898 = vld [vmem:[%s3883 + $0x70] sm:$0xff]
      %v3899 = vld [vmem:[%s3883 + $0x78] sm:$0xff]
      %3900 = vmatprep.subr.mxu0 0.0
      %3901 = vmatpush1.msra.mxu0 %v3899
      %3902 = vmatprep.subr.mxu0 0.0
      %3903 = vmatpush1.msra.mxu0 %v3898
      %3904 = vmatprep.subr.mxu0 0.0
      %3905 = vmatpush1.msra.mxu0 %v3897
      %3906 = vmatprep.subr.mxu0 0.0
      %3907 = vmatpush1.msra.mxu0 %v3896
      %3908 = vmatprep.subr.mxu0 0.0
      %3909 = vmatpush1.msra.mxu0 %v3895
      %3910 = vmatprep.subr.mxu0 0.0
      %3911 = vmatpush1.msra.mxu0 %v3894
      %3912 = vmatprep.subr.mxu0 0.0
      %3913 = vmatpush1.msra.mxu0 %v3893
      %3914 = vmatprep.subr.mxu0 0.0
      %3915 = vmatpush1.msra.mxu0 %v3892
      %3916 = vmatprep.subr.mxu0 0.0
      %3917 = vmatpush1.msra.mxu0 %v3891
      %3918 = vmatprep.subr.mxu0 0.0
      %3919 = vmatpush1.msra.mxu0 %v3890
      %3920 = vmatprep.subr.mxu0 0.0
      %3921 = vmatpush1.msra.mxu0 %v3889
      %3922 = vmatprep.subr.mxu0 0.0
      %3923 = vmatpush1.msra.mxu0 %v3888
      %3924 = vmatprep.subr.mxu0 0.0
      %3925 = vmatpush1.msra.mxu0 %v3887
      %3926 = vmatprep.subr.mxu0 0.0
      %3927 = vmatpush1.msra.mxu0 %v3886
      %3928 = vmatprep.subr.mxu0 0.0
      %3929 = vmatpush1.msra.mxu0 %v3885
      %3930 = vmatprep.subr.mxu0 0.0
      %3931 = vmatpush1.msra.mxu0 %v3884
      %3932 = vmatprep.subr.mxu0 0.0
      %3933 = vmatpush2.msra.mxu0 0.0
      %3934 = vmatprep.subr.mxu0 0.0
      %3935 = vmatpush2.msra.mxu0 0.0
      %3936 = vmatprep.subr.mxu0 0.0
      %3937 = vmatpush2.msra.mxu0 0.0
      %3938 = vmatprep.subr.mxu0 0.0
      %3939 = vmatpush2.msra.mxu0 0.0
      %3940 = vmatprep.subr.mxu0 0.0
      %3941 = vmatpush2.msra.mxu0 0.0
      %3942 = vmatprep.subr.mxu0 0.0
      %3943 = vmatpush2.msra.mxu0 0.0
      %3944 = vmatprep.subr.mxu0 0.0
      %3945 = vmatpush2.msra.mxu0 0.0
      %3946 = vmatprep.subr.mxu0 0.0
      %3947 = vmatpush2.msra.mxu0 0.0
      %3948 = vmatprep.subr.mxu0 0.0
      %3949 = vmatpush2.msra.mxu0 0.0
      %3950 = vmatprep.subr.mxu0 0.0
      %3951 = vmatpush2.msra.mxu0 0.0
      %3952 = vmatprep.subr.mxu0 0.0
      %3953 = vmatpush2.msra.mxu0 0.0
      %3954 = vmatprep.subr.mxu0 0.0
      %3955 = vmatpush2.msra.mxu0 0.0
      %3956 = vmatprep.subr.mxu0 0.0
      %3957 = vmatpush2.msra.mxu0 0.0
      %3958 = vmatprep.subr.mxu0 0.0
      %3959 = vmatpush2.msra.mxu0 0.0
      %3960 = vmatprep.subr.mxu0 0.0
      %3961 = vmatpush2.msra.mxu0 0.0
      %3962 = vmatprep.subr.mxu0 0.0
      %3963 = vmatpush2.msra.mxu0 0.0
      %3964 = vmatprep.mubr.f32.mxu0 0.0
      %3965 = vmatmul.mubr.f32.gmra.mxu0 %v3865
      %v3966 = vpop.f32.mrf.mxu0
      %v3967 = vadd.f32 0.0, %v3966
      %v3968 = vpop.f32.mrf.mxu0
      %3969 = vmatprep.mubr.f32.mxu0 0.0
      %3970 = vmatmul.mubr.f32.gmra.mxu0 %v3847
      %v3971 = vpop.f32.mrf.mxu0
      %v3972 = vadd.f32 0.0, %v3971
      %v3973 = vpop.f32.mrf.mxu0
      %3974 = vmatprep.mubr.f32.mxu0 0.0
      %3975 = vmatmul.mubr.f32.gmra.mxu0 %v3866
      %v3976 = vpop.f32.mrf.mxu0
      %v3977 = vadd.f32 0.0, %v3976
      %v3978 = vpop.f32.mrf.mxu0
      %3979 = vmatprep.mubr.f32.mxu0 0.0
      %3980 = vmatmul.mubr.f32.gmra.mxu0 %v3848
      %v3981 = vpop.f32.mrf.mxu0
      %v3982 = vadd.f32 0.0, %v3981
      %v3983 = vpop.f32.mrf.mxu0
      %3984 = vmatprep.mubr.f32.mxu0 0.0
      %3985 = vmatmul.mubr.f32.gmra.mxu0 %v3867
      %v3986 = vpop.f32.mrf.mxu0
      %v3987 = vadd.f32 0.0, %v3986
      %v3988 = vpop.f32.mrf.mxu0
      %3989 = vmatprep.mubr.f32.mxu0 0.0
      %3990 = vmatmul.mubr.f32.gmra.mxu0 %v3849
      %v3991 = vpop.f32.mrf.mxu0
      %v3992 = vadd.f32 0.0, %v3991
      %v3993 = vpop.f32.mrf.mxu0
      %3994 = vmatprep.mubr.f32.mxu0 0.0
      %3995 = vmatmul.mubr.f32.gmra.mxu0 %v3868
      %v3996 = vpop.f32.mrf.mxu0
      %v3997 = vadd.f32 0.0, %v3996
      %v3998 = vpop.f32.mrf.mxu0
      %3999 = vmatprep.mubr.f32.mxu0 0.0
      %4000 = vmatmul.mubr.f32.gmra.mxu0 %v3850
      %v4001 = vpop.f32.mrf.mxu0
      %v4002 = vadd.f32 0.0, %v4001
      %v4003 = vpop.f32.mrf.mxu0
      %4004 = vmatprep.mubr.f32.mxu0 0.0
      %4005 = vmatmul.mubr.f32.gmra.mxu0 %v3869
      %v4006 = vpop.f32.mrf.mxu0
      %v4007 = vadd.f32 0.0, %v4006
      %v4008 = vpop.f32.mrf.mxu0
      %4009 = vmatprep.mubr.f32.mxu0 0.0
      %4010 = vmatmul.mubr.f32.gmra.mxu0 %v3851
      %v4011 = vpop.f32.mrf.mxu0
      %v4012 = vadd.f32 0.0, %v4011
      %v4013 = vpop.f32.mrf.mxu0
      %4014 = vmatprep.mubr.f32.mxu0 0.0
      %4015 = vmatmul.mubr.f32.gmra.mxu0 %v3870
      %v4016 = vpop.f32.mrf.mxu0
      %v4017 = vadd.f32 0.0, %v4016
      %v4018 = vpop.f32.mrf.mxu0
      %4019 = vmatprep.mubr.f32.mxu0 0.0
      %4020 = vmatmul.mubr.f32.gmra.mxu0 %v3852
      %v4021 = vpop.f32.mrf.mxu0
      %v4022 = vadd.f32 0.0, %v4021
      %v4023 = vpop.f32.mrf.mxu0
      %4024 = vmatprep.mubr.f32.mxu0 0.0
      %4025 = vmatmul.mubr.f32.gmra.mxu0 %v3871
      %v4026 = vpop.f32.mrf.mxu0
      %v4027 = vadd.f32 0.0, %v4026
      %v4028 = vpop.f32.mrf.mxu0
      %4029 = vmatprep.mubr.f32.mxu0 0.0
      %4030 = vmatmul.mubr.f32.gmra.mxu0 %v3853
      %v4031 = vpop.f32.mrf.mxu0
      %v4032 = vadd.f32 0.0, %v4031
      %v4033 = vpop.f32.mrf.mxu0
      %4034 = vmatprep.mubr.f32.mxu0 0.0
      %4035 = vmatmul.mubr.f32.gmra.mxu0 %v3872
      %v4036 = vpop.f32.mrf.mxu0
      %v4037 = vadd.f32 0.0, %v4036
      %v4038 = vpop.f32.mrf.mxu0
      %4039 = vmatprep.mubr.f32.mxu0 0.0
      %4040 = vmatmul.mubr.f32.gmra.mxu0 %v3854
      %v4041 = vpop.f32.mrf.mxu0
      %v4042 = vadd.f32 0.0, %v4041
      %v4043 = vpop.f32.mrf.mxu0
      %4044 = vmatprep.mubr.f32.mxu0 0.0
      %4045 = vmatmul.mubr.f32.gmra.mxu0 %v3873
      %v4046 = vpop.f32.mrf.mxu0
      %v4047 = vadd.f32 0.0, %v4046
      %v4048 = vpop.f32.mrf.mxu0
      %4049 = vmatprep.mubr.f32.mxu0 0.0
      %4050 = vmatmul.mubr.f32.gmra.mxu0 %v3855
      %v4051 = vpop.f32.mrf.mxu0
      %v4052 = vadd.f32 0.0, %v4051
      %v4053 = vpop.f32.mrf.mxu0
      %4054 = vmatprep.mubr.f32.mxu0 0.0
      %4055 = vmatmul.mubr.f32.gmra.mxu0 %v3874
      %v4056 = vpop.f32.mrf.mxu0
      %v4057 = vadd.f32 0.0, %v4056
      %v4058 = vpop.f32.mrf.mxu0
      %4059 = vmatprep.mubr.f32.mxu0 0.0
      %4060 = vmatmul.mubr.f32.gmra.mxu0 %v3856
      %v4061 = vpop.f32.mrf.mxu0
      %v4062 = vadd.f32 0.0, %v4061
      %v4063 = vpop.f32.mrf.mxu0
      %4064 = vmatprep.mubr.f32.mxu0 0.0
      %4065 = vmatmul.mubr.f32.gmra.mxu0 %v3875
      %v4066 = vpop.f32.mrf.mxu0
      %v4067 = vadd.f32 0.0, %v4066
      %v4068 = vpop.f32.mrf.mxu0
      %4069 = vmatprep.mubr.f32.mxu0 0.0
      %4070 = vmatmul.mubr.f32.gmra.mxu0 %v3857
      %v4071 = vpop.f32.mrf.mxu0
      %v4072 = vadd.f32 0.0, %v4071
      %v4073 = vpop.f32.mrf.mxu0
      %4074 = vmatprep.mubr.f32.mxu0 0.0
      %4075 = vmatmul.mubr.f32.gmra.mxu0 %v3876
      %v4076 = vpop.f32.mrf.mxu0
      %v4077 = vadd.f32 0.0, %v4076
      %v4078 = vpop.f32.mrf.mxu0
      %4079 = vmatprep.mubr.f32.mxu0 0.0
      %4080 = vmatmul.mubr.f32.gmra.mxu0 %v3858
      %v4081 = vpop.f32.mrf.mxu0
      %v4082 = vadd.f32 0.0, %v4081
      %v4083 = vpop.f32.mrf.mxu0
      %4084 = vmatprep.mubr.f32.mxu0 0.0
      %4085 = vmatmul.mubr.f32.gmra.mxu0 %v3877
      %v4086 = vpop.f32.mrf.mxu0
      %v4087 = vadd.f32 0.0, %v4086
      %v4088 = vpop.f32.mrf.mxu0
      %4089 = vmatprep.mubr.f32.mxu0 0.0
      %4090 = vmatmul.mubr.f32.gmra.mxu0 %v3859
      %v4091 = vpop.f32.mrf.mxu0
      %v4092 = vadd.f32 0.0, %v4091
      %v4093 = vpop.f32.mrf.mxu0
      %4094 = vmatprep.mubr.f32.mxu0 0.0
      %4095 = vmatmul.mubr.f32.gmra.mxu0 %v3878
      %v4096 = vpop.f32.mrf.mxu0
      %v4097 = vadd.f32 0.0, %v4096
      %v4098 = vpop.f32.mrf.mxu0
      %4099 = vmatprep.mubr.f32.mxu0 0.0
      %4100 = vmatmul.mubr.f32.gmra.mxu0 %v3860
      %v4101 = vpop.f32.mrf.mxu0
      %v4102 = vadd.f32 0.0, %v4101
      %v4103 = vpop.f32.mrf.mxu0
      %4104 = vmatprep.mubr.f32.mxu0 0.0
      %4105 = vmatmul.mubr.f32.gmra.mxu0 %v3879
      %v4106 = vpop.f32.mrf.mxu0
      %v4107 = vadd.f32 0.0, %v4106
      %v4108 = vpop.f32.mrf.mxu0
      %4109 = vmatprep.mubr.f32.mxu0 0.0
      %4110 = vmatmul.mubr.f32.gmra.mxu0 %v3861
      %v4111 = vpop.f32.mrf.mxu0
      %v4112 = vadd.f32 0.0, %v4111
      %v4113 = vpop.f32.mrf.mxu0
      %4114 = vmatprep.mubr.f32.mxu0 0.0
      %4115 = vmatmul.mubr.f32.gmra.mxu0 %v3880
      %v4116 = vpop.f32.mrf.mxu0
      %v4117 = vadd.f32 0.0, %v4116
      %v4118 = vpop.f32.mrf.mxu0
      %4119 = vmatprep.mubr.f32.mxu0 0.0
      %4120 = vmatmul.mubr.f32.gmra.mxu0 %v3862
      %v4121 = vpop.f32.mrf.mxu0
      %v4122 = vadd.f32 0.0, %v4121
      %v4123 = vpop.f32.mrf.mxu0
      %4124 = vdwg.mxu0
      %v4125 = vadd.f32 %v3761, %v3967
      %v4126 = vadd.f32 %v3762, %v3972
      %v4127 = vadd.f32 %v3763, %v3977
      %v4128 = vadd.f32 %v3764, %v3982
      %v4129 = vadd.f32 %v3765, %v3987
      %v4130 = vadd.f32 %v3766, %v3992
      %v4131 = vadd.f32 %v3767, %v3997
      %v4132 = vadd.f32 %v3768, %v4002
      %v4133 = vadd.f32 %v3769, %v4007
      %v4134 = vadd.f32 %v3770, %v4012
      %v4135 = vadd.f32 %v3771, %v4017
      %v4136 = vadd.f32 %v3772, %v4022
      %v4137 = vadd.f32 %v3773, %v4027
      %v4138 = vadd.f32 %v3774, %v4032
      %v4139 = vadd.f32 %v3775, %v4037
      %v4140 = vadd.f32 %v3776, %v4042
      %v4141 = vadd.f32 %v3777, %v4047
      %v4142 = vadd.f32 %v3778, %v4052
      %v4143 = vadd.f32 %v3779, %v4057
      %v4144 = vadd.f32 %v3780, %v4062
      %v4145 = vadd.f32 %v3781, %v4067
      %v4146 = vadd.f32 %v3782, %v4072
      %v4147 = vadd.f32 %v3783, %v4077
      %v4148 = vadd.f32 %v3784, %v4082
      %v4149 = vadd.f32 %v3785, %v4087
      %v4150 = vadd.f32 %v3786, %v4092
      %v4151 = vadd.f32 %v3787, %v4097
      %v4152 = vadd.f32 %v3788, %v4102
      %v4153 = vadd.f32 %v3789, %v4107
      %v4154 = vadd.f32 %v3790, %v4112
      %v4155 = vadd.f32 %v3791, %v4117
      %v4156 = vadd.f32 %v3792, %v4122
      %s4157 = scalar_lea.vmem %s2, 512
      %v4158 = vld [vmem:[%s4157] sm:$0xff]
      %v4159 = vld [vmem:[%s4157 + $0x8] sm:$0xff]
      %v4160 = vld [vmem:[%s4157 + $0x10] sm:$0xff]
      %v4161 = vld [vmem:[%s4157 + $0x18] sm:$0xff]
      %v4162 = vld [vmem:[%s4157 + $0x20] sm:$0xff]
      %v4163 = vld [vmem:[%s4157 + $0x28] sm:$0xff]
      %v4164 = vld [vmem:[%s4157 + $0x30] sm:$0xff]
      %v4165 = vld [vmem:[%s4157 + $0x38] sm:$0xff]
      %v4166 = vld [vmem:[%s4157 + $0x40] sm:$0xff]
      %v4167 = vld [vmem:[%s4157 + $0x48] sm:$0xff]
      %v4168 = vld [vmem:[%s4157 + $0x50] sm:$0xff]
      %v4169 = vld [vmem:[%s4157 + $0x58] sm:$0xff]
      %v4170 = vld [vmem:[%s4157 + $0x60] sm:$0xff]
      %v4171 = vld [vmem:[%s4157 + $0x68] sm:$0xff]
      %v4172 = vld [vmem:[%s4157 + $0x70] sm:$0xff]
      %v4173 = vld [vmem:[%s4157 + $0x78] sm:$0xff]
      %4174 = vmatprep.subr.mxu0 0.0
      %4175 = vmatpush1.msra.mxu0 %v4173
      %4176 = vmatprep.subr.mxu0 0.0
      %4177 = vmatpush1.msra.mxu0 %v4172
      %4178 = vmatprep.subr.mxu0 0.0
      %4179 = vmatpush1.msra.mxu0 %v4171
      %4180 = vmatprep.subr.mxu0 0.0
      %4181 = vmatpush1.msra.mxu0 %v4170
      %4182 = vmatprep.subr.mxu0 0.0
      %4183 = vmatpush1.msra.mxu0 %v4169
      %4184 = vmatprep.subr.mxu0 0.0
      %4185 = vmatpush1.msra.mxu0 %v4168
      %4186 = vmatprep.subr.mxu0 0.0
      %4187 = vmatpush1.msra.mxu0 %v4167
      %4188 = vmatprep.subr.mxu0 0.0
      %4189 = vmatpush1.msra.mxu0 %v4166
      %4190 = vmatprep.subr.mxu0 0.0
      %4191 = vmatpush1.msra.mxu0 %v4165
      %4192 = vmatprep.subr.mxu0 0.0
      %4193 = vmatpush1.msra.mxu0 %v4164
      %4194 = vmatprep.subr.mxu0 0.0
      %4195 = vmatpush1.msra.mxu0 %v4163
      %4196 = vmatprep.subr.mxu0 0.0
      %4197 = vmatpush1.msra.mxu0 %v4162
      %4198 = vmatprep.subr.mxu0 0.0
      %4199 = vmatpush1.msra.mxu0 %v4161
      %4200 = vmatprep.subr.mxu0 0.0
      %4201 = vmatpush1.msra.mxu0 %v4160
      %4202 = vmatprep.subr.mxu0 0.0
      %4203 = vmatpush1.msra.mxu0 %v4159
      %4204 = vmatprep.subr.mxu0 0.0
      %4205 = vmatpush1.msra.mxu0 %v4158
      %4206 = vmatprep.subr.mxu0 0.0
      %4207 = vmatpush2.msra.mxu0 0.0
      %4208 = vmatprep.subr.mxu0 0.0
      %4209 = vmatpush2.msra.mxu0 0.0
      %4210 = vmatprep.subr.mxu0 0.0
      %4211 = vmatpush2.msra.mxu0 0.0
      %4212 = vmatprep.subr.mxu0 0.0
      %4213 = vmatpush2.msra.mxu0 0.0
      %4214 = vmatprep.subr.mxu0 0.0
      %4215 = vmatpush2.msra.mxu0 0.0
      %4216 = vmatprep.subr.mxu0 0.0
      %4217 = vmatpush2.msra.mxu0 0.0
      %4218 = vmatprep.subr.mxu0 0.0
      %4219 = vmatpush2.msra.mxu0 0.0
      %4220 = vmatprep.subr.mxu0 0.0
      %4221 = vmatpush2.msra.mxu0 0.0
      %4222 = vmatprep.subr.mxu0 0.0
      %4223 = vmatpush2.msra.mxu0 0.0
      %4224 = vmatprep.subr.mxu0 0.0
      %4225 = vmatpush2.msra.mxu0 0.0
      %4226 = vmatprep.subr.mxu0 0.0
      %4227 = vmatpush2.msra.mxu0 0.0
      %4228 = vmatprep.subr.mxu0 0.0
      %4229 = vmatpush2.msra.mxu0 0.0
      %4230 = vmatprep.subr.mxu0 0.0
      %4231 = vmatpush2.msra.mxu0 0.0
      %4232 = vmatprep.subr.mxu0 0.0
      %4233 = vmatpush2.msra.mxu0 0.0
      %4234 = vmatprep.subr.mxu0 0.0
      %4235 = vmatpush2.msra.mxu0 0.0
      %4236 = vmatprep.subr.mxu0 0.0
      %4237 = vmatpush2.msra.mxu0 0.0
      %4238 = vmatprep.mubr.f32.mxu0 0.0
      %4239 = vmatmul.mubr.f32.gmra.mxu0 %v3866
      %v4240 = vpop.f32.mrf.mxu0
      %v4241 = vadd.f32 0.0, %v4240
      %v4242 = vpop.f32.mrf.mxu0
      %4243 = vmatprep.mubr.f32.mxu0 0.0
      %4244 = vmatmul.mubr.f32.gmra.mxu0 %v3848
      %v4245 = vpop.f32.mrf.mxu0
      %v4246 = vadd.f32 0.0, %v4245
      %v4247 = vpop.f32.mrf.mxu0
      %4248 = vmatprep.mubr.f32.mxu0 0.0
      %4249 = vmatmul.mubr.f32.gmra.mxu0 %v3867
      %v4250 = vpop.f32.mrf.mxu0
      %v4251 = vadd.f32 0.0, %v4250
      %v4252 = vpop.f32.mrf.mxu0
      %4253 = vmatprep.mubr.f32.mxu0 0.0
      %4254 = vmatmul.mubr.f32.gmra.mxu0 %v3849
      %v4255 = vpop.f32.mrf.mxu0
      %v4256 = vadd.f32 0.0, %v4255
      %v4257 = vpop.f32.mrf.mxu0
      %4258 = vmatprep.mubr.f32.mxu0 0.0
      %4259 = vmatmul.mubr.f32.gmra.mxu0 %v3868
      %v4260 = vpop.f32.mrf.mxu0
      %v4261 = vadd.f32 0.0, %v4260
      %v4262 = vpop.f32.mrf.mxu0
      %4263 = vmatprep.mubr.f32.mxu0 0.0
      %4264 = vmatmul.mubr.f32.gmra.mxu0 %v3850
      %v4265 = vpop.f32.mrf.mxu0
      %v4266 = vadd.f32 0.0, %v4265
      %v4267 = vpop.f32.mrf.mxu0
      %4268 = vmatprep.mubr.f32.mxu0 0.0
      %4269 = vmatmul.mubr.f32.gmra.mxu0 %v3869
      %v4270 = vpop.f32.mrf.mxu0
      %v4271 = vadd.f32 0.0, %v4270
      %v4272 = vpop.f32.mrf.mxu0
      %4273 = vmatprep.mubr.f32.mxu0 0.0
      %4274 = vmatmul.mubr.f32.gmra.mxu0 %v3851
      %v4275 = vpop.f32.mrf.mxu0
      %v4276 = vadd.f32 0.0, %v4275
      %v4277 = vpop.f32.mrf.mxu0
      %4278 = vmatprep.mubr.f32.mxu0 0.0
      %4279 = vmatmul.mubr.f32.gmra.mxu0 %v3870
      %v4280 = vpop.f32.mrf.mxu0
      %v4281 = vadd.f32 0.0, %v4280
      %v4282 = vpop.f32.mrf.mxu0
      %4283 = vmatprep.mubr.f32.mxu0 0.0
      %4284 = vmatmul.mubr.f32.gmra.mxu0 %v3852
      %v4285 = vpop.f32.mrf.mxu0
      %v4286 = vadd.f32 0.0, %v4285
      %v4287 = vpop.f32.mrf.mxu0
      %4288 = vmatprep.mubr.f32.mxu0 0.0
      %4289 = vmatmul.mubr.f32.gmra.mxu0 %v3871
      %v4290 = vpop.f32.mrf.mxu0
      %v4291 = vadd.f32 0.0, %v4290
      %v4292 = vpop.f32.mrf.mxu0
      %4293 = vmatprep.mubr.f32.mxu0 0.0
      %4294 = vmatmul.mubr.f32.gmra.mxu0 %v3853
      %v4295 = vpop.f32.mrf.mxu0
      %v4296 = vadd.f32 0.0, %v4295
      %v4297 = vpop.f32.mrf.mxu0
      %4298 = vmatprep.mubr.f32.mxu0 0.0
      %4299 = vmatmul.mubr.f32.gmra.mxu0 %v3872
      %v4300 = vpop.f32.mrf.mxu0
      %v4301 = vadd.f32 0.0, %v4300
      %v4302 = vpop.f32.mrf.mxu0
      %4303 = vmatprep.mubr.f32.mxu0 0.0
      %4304 = vmatmul.mubr.f32.gmra.mxu0 %v3854
      %v4305 = vpop.f32.mrf.mxu0
      %v4306 = vadd.f32 0.0, %v4305
      %v4307 = vpop.f32.mrf.mxu0
      %4308 = vmatprep.mubr.f32.mxu0 0.0
      %4309 = vmatmul.mubr.f32.gmra.mxu0 %v3873
      %v4310 = vpop.f32.mrf.mxu0
      %v4311 = vadd.f32 0.0, %v4310
      %v4312 = vpop.f32.mrf.mxu0
      %4313 = vmatprep.mubr.f32.mxu0 0.0
      %4314 = vmatmul.mubr.f32.gmra.mxu0 %v3855
      %v4315 = vpop.f32.mrf.mxu0
      %v4316 = vadd.f32 0.0, %v4315
      %v4317 = vpop.f32.mrf.mxu0
      %4318 = vmatprep.mubr.f32.mxu0 0.0
      %4319 = vmatmul.mubr.f32.gmra.mxu0 %v3874
      %v4320 = vpop.f32.mrf.mxu0
      %v4321 = vadd.f32 0.0, %v4320
      %v4322 = vpop.f32.mrf.mxu0
      %4323 = vmatprep.mubr.f32.mxu0 0.0
      %4324 = vmatmul.mubr.f32.gmra.mxu0 %v3856
      %v4325 = vpop.f32.mrf.mxu0
      %v4326 = vadd.f32 0.0, %v4325
      %v4327 = vpop.f32.mrf.mxu0
      %4328 = vmatprep.mubr.f32.mxu0 0.0
      %4329 = vmatmul.mubr.f32.gmra.mxu0 %v3875
      %v4330 = vpop.f32.mrf.mxu0
      %v4331 = vadd.f32 0.0, %v4330
      %v4332 = vpop.f32.mrf.mxu0
      %4333 = vmatprep.mubr.f32.mxu0 0.0
      %4334 = vmatmul.mubr.f32.gmra.mxu0 %v3857
      %v4335 = vpop.f32.mrf.mxu0
      %v4336 = vadd.f32 0.0, %v4335
      %v4337 = vpop.f32.mrf.mxu0
      %4338 = vmatprep.mubr.f32.mxu0 0.0
      %4339 = vmatmul.mubr.f32.gmra.mxu0 %v3876
      %v4340 = vpop.f32.mrf.mxu0
      %v4341 = vadd.f32 0.0, %v4340
      %v4342 = vpop.f32.mrf.mxu0
      %4343 = vmatprep.mubr.f32.mxu0 0.0
      %4344 = vmatmul.mubr.f32.gmra.mxu0 %v3858
      %v4345 = vpop.f32.mrf.mxu0
      %v4346 = vadd.f32 0.0, %v4345
      %v4347 = vpop.f32.mrf.mxu0
      %4348 = vmatprep.mubr.f32.mxu0 0.0
      %4349 = vmatmul.mubr.f32.gmra.mxu0 %v3877
      %v4350 = vpop.f32.mrf.mxu0
      %v4351 = vadd.f32 0.0, %v4350
      %v4352 = vpop.f32.mrf.mxu0
      %4353 = vmatprep.mubr.f32.mxu0 0.0
      %4354 = vmatmul.mubr.f32.gmra.mxu0 %v3859
      %v4355 = vpop.f32.mrf.mxu0
      %v4356 = vadd.f32 0.0, %v4355
      %v4357 = vpop.f32.mrf.mxu0
      %4358 = vmatprep.mubr.f32.mxu0 0.0
      %4359 = vmatmul.mubr.f32.gmra.mxu0 %v3878
      %v4360 = vpop.f32.mrf.mxu0
      %v4361 = vadd.f32 0.0, %v4360
      %v4362 = vpop.f32.mrf.mxu0
      %4363 = vmatprep.mubr.f32.mxu0 0.0
      %4364 = vmatmul.mubr.f32.gmra.mxu0 %v3860
      %v4365 = vpop.f32.mrf.mxu0
      %v4366 = vadd.f32 0.0, %v4365
      %v4367 = vpop.f32.mrf.mxu0
      %4368 = vmatprep.mubr.f32.mxu0 0.0
      %4369 = vmatmul.mubr.f32.gmra.mxu0 %v3879
      %v4370 = vpop.f32.mrf.mxu0
      %v4371 = vadd.f32 0.0, %v4370
      %v4372 = vpop.f32.mrf.mxu0
      %4373 = vmatprep.mubr.f32.mxu0 0.0
      %4374 = vmatmul.mubr.f32.gmra.mxu0 %v3861
      %v4375 = vpop.f32.mrf.mxu0
      %v4376 = vadd.f32 0.0, %v4375
      %v4377 = vpop.f32.mrf.mxu0
      %4378 = vmatprep.mubr.f32.mxu0 0.0
      %4379 = vmatmul.mubr.f32.gmra.mxu0 %v3880
      %v4380 = vpop.f32.mrf.mxu0
      %v4381 = vadd.f32 0.0, %v4380
      %v4382 = vpop.f32.mrf.mxu0
      %4383 = vmatprep.mubr.f32.mxu0 0.0
      %4384 = vmatmul.mubr.f32.gmra.mxu0 %v3862
      %v4385 = vpop.f32.mrf.mxu0
      %v4386 = vadd.f32 0.0, %v4385
      %v4387 = vpop.f32.mrf.mxu0
      %4388 = vmatprep.mubr.f32.mxu0 0.0
      %4389 = vmatmul.mubr.f32.gmra.mxu0 %v3881
      %v4390 = vpop.f32.mrf.mxu0
      %v4391 = vadd.f32 0.0, %v4390
      %v4392 = vpop.f32.mrf.mxu0
      %4393 = vmatprep.mubr.f32.mxu0 0.0
      %4394 = vmatmul.mubr.f32.gmra.mxu0 %v3863
      %v4395 = vpop.f32.mrf.mxu0
      %v4396 = vadd.f32 0.0, %v4395
      %v4397 = vpop.f32.mrf.mxu0
      %4398 = vdwg.mxu0
      %v4399 = vadd.f32 %v4125, %v4241
      %v4400 = vadd.f32 %v4126, %v4246
      %v4401 = vadd.f32 %v4127, %v4251
      %v4402 = vadd.f32 %v4128, %v4256
      %v4403 = vadd.f32 %v4129, %v4261
      %v4404 = vadd.f32 %v4130, %v4266
      %v4405 = vadd.f32 %v4131, %v4271
      %v4406 = vadd.f32 %v4132, %v4276
      %v4407 = vadd.f32 %v4133, %v4281
      %v4408 = vadd.f32 %v4134, %v4286
      %v4409 = vadd.f32 %v4135, %v4291
      %v4410 = vadd.f32 %v4136, %v4296
      %v4411 = vadd.f32 %v4137, %v4301
      %v4412 = vadd.f32 %v4138, %v4306
      %v4413 = vadd.f32 %v4139, %v4311
      %v4414 = vadd.f32 %v4140, %v4316
      %v4415 = vadd.f32 %v4141, %v4321
      %v4416 = vadd.f32 %v4142, %v4326
      %v4417 = vadd.f32 %v4143, %v4331
      %v4418 = vadd.f32 %v4144, %v4336
      %v4419 = vadd.f32 %v4145, %v4341
      %v4420 = vadd.f32 %v4146, %v4346
      %v4421 = vadd.f32 %v4147, %v4351
      %v4422 = vadd.f32 %v4148, %v4356
      %v4423 = vadd.f32 %v4149, %v4361
      %v4424 = vadd.f32 %v4150, %v4366
      %v4425 = vadd.f32 %v4151, %v4371
      %v4426 = vadd.f32 %v4152, %v4376
      %v4427 = vadd.f32 %v4153, %v4381
      %v4428 = vadd.f32 %v4154, %v4386
      %v4429 = vadd.f32 %v4155, %v4391
      %v4430 = vadd.f32 %v4156, %v4396
      %s4431 = scalar_lea.vmem %s2, 896
      %v4432 = vld [vmem:[%s4431] sm:$0xff]
      %v4433 = vld [vmem:[%s4431 + $0x8] sm:$0xff]
      %v4434 = vld [vmem:[%s4431 + $0x10] sm:$0xff]
      %v4435 = vld [vmem:[%s4431 + $0x18] sm:$0xff]
      %v4436 = vld [vmem:[%s4431 + $0x20] sm:$0xff]
      %v4437 = vld [vmem:[%s4431 + $0x28] sm:$0xff]
      %v4438 = vld [vmem:[%s4431 + $0x30] sm:$0xff]
      %v4439 = vld [vmem:[%s4431 + $0x38] sm:$0xff]
      %v4440 = vld [vmem:[%s4431 + $0x40] sm:$0xff]
      %v4441 = vld [vmem:[%s4431 + $0x48] sm:$0xff]
      %v4442 = vld [vmem:[%s4431 + $0x50] sm:$0xff]
      %v4443 = vld [vmem:[%s4431 + $0x58] sm:$0xff]
      %v4444 = vld [vmem:[%s4431 + $0x60] sm:$0xff]
      %v4445 = vld [vmem:[%s4431 + $0x68] sm:$0xff]
      %v4446 = vld [vmem:[%s4431 + $0x70] sm:$0xff]
      %v4447 = vld [vmem:[%s4431 + $0x78] sm:$0xff]
      %4448 = vmatprep.subr.mxu0 0.0
      %4449 = vmatpush1.msra.mxu0 %v4447
      %4450 = vmatprep.subr.mxu0 0.0
      %4451 = vmatpush1.msra.mxu0 %v4446
      %4452 = vmatprep.subr.mxu0 0.0
      %4453 = vmatpush1.msra.mxu0 %v4445
      %4454 = vmatprep.subr.mxu0 0.0
      %4455 = vmatpush1.msra.mxu0 %v4444
      %4456 = vmatprep.subr.mxu0 0.0
      %4457 = vmatpush1.msra.mxu0 %v4443
      %4458 = vmatprep.subr.mxu0 0.0
      %4459 = vmatpush1.msra.mxu0 %v4442
      %4460 = vmatprep.subr.mxu0 0.0
      %4461 = vmatpush1.msra.mxu0 %v4441
      %4462 = vmatprep.subr.mxu0 0.0
      %4463 = vmatpush1.msra.mxu0 %v4440
      %4464 = vmatprep.subr.mxu0 0.0
      %4465 = vmatpush1.msra.mxu0 %v4439
      %4466 = vmatprep.subr.mxu0 0.0
      %4467 = vmatpush1.msra.mxu0 %v4438
      %4468 = vmatprep.subr.mxu0 0.0
      %4469 = vmatpush1.msra.mxu0 %v4437
      %4470 = vmatprep.subr.mxu0 0.0
      %4471 = vmatpush1.msra.mxu0 %v4436
      %4472 = vmatprep.subr.mxu0 0.0
      %4473 = vmatpush1.msra.mxu0 %v4435
      %4474 = vmatprep.subr.mxu0 0.0
      %4475 = vmatpush1.msra.mxu0 %v4434
      %4476 = vmatprep.subr.mxu0 0.0
      %4477 = vmatpush1.msra.mxu0 %v4433
      %4478 = vmatprep.subr.mxu0 0.0
      %4479 = vmatpush1.msra.mxu0 %v4432
      %4480 = vmatprep.subr.mxu0 0.0
      %4481 = vmatpush2.msra.mxu0 0.0
      %4482 = vmatprep.subr.mxu0 0.0
      %4483 = vmatpush2.msra.mxu0 0.0
      %4484 = vmatprep.subr.mxu0 0.0
      %4485 = vmatpush2.msra.mxu0 0.0
      %4486 = vmatprep.subr.mxu0 0.0
      %4487 = vmatpush2.msra.mxu0 0.0
      %4488 = vmatprep.subr.mxu0 0.0
      %4489 = vmatpush2.msra.mxu0 0.0
      %4490 = vmatprep.subr.mxu0 0.0
      %4491 = vmatpush2.msra.mxu0 0.0
      %4492 = vmatprep.subr.mxu0 0.0
      %4493 = vmatpush2.msra.mxu0 0.0
      %4494 = vmatprep.subr.mxu0 0.0
      %4495 = vmatpush2.msra.mxu0 0.0
      %4496 = vmatprep.subr.mxu0 0.0
      %4497 = vmatpush2.msra.mxu0 0.0
      %4498 = vmatprep.subr.mxu0 0.0
      %4499 = vmatpush2.msra.mxu0 0.0
      %4500 = vmatprep.subr.mxu0 0.0
      %4501 = vmatpush2.msra.mxu0 0.0
      %4502 = vmatprep.subr.mxu0 0.0
      %4503 = vmatpush2.msra.mxu0 0.0
      %4504 = vmatprep.subr.mxu0 0.0
      %4505 = vmatpush2.msra.mxu0 0.0
      %4506 = vmatprep.subr.mxu0 0.0
      %4507 = vmatpush2.msra.mxu0 0.0
      %4508 = vmatprep.subr.mxu0 0.0
      %4509 = vmatpush2.msra.mxu0 0.0
      %4510 = vmatprep.subr.mxu0 0.0
      %4511 = vmatpush2.msra.mxu0 0.0
      %4512 = vmatprep.mubr.f32.mxu0 0.0
      %4513 = vmatmul.mubr.f32.gmra.mxu0 %v3867
      %v4514 = vpop.f32.mrf.mxu0
      %v4515 = vadd.f32 0.0, %v4514
      %v4516 = vpop.f32.mrf.mxu0
      %4517 = vmatprep.mubr.f32.mxu0 0.0
      %4518 = vmatmul.mubr.f32.gmra.mxu0 %v3849
      %v4519 = vpop.f32.mrf.mxu0
      %v4520 = vadd.f32 0.0, %v4519
      %v4521 = vpop.f32.mrf.mxu0
      %4522 = vmatprep.mubr.f32.mxu0 0.0
      %4523 = vmatmul.mubr.f32.gmra.mxu0 %v3868
      %v4524 = vpop.f32.mrf.mxu0
      %v4525 = vadd.f32 0.0, %v4524
      %v4526 = vpop.f32.mrf.mxu0
      %4527 = vmatprep.mubr.f32.mxu0 0.0
      %4528 = vmatmul.mubr.f32.gmra.mxu0 %v3850
      %v4529 = vpop.f32.mrf.mxu0
      %v4530 = vadd.f32 0.0, %v4529
      %v4531 = vpop.f32.mrf.mxu0
      %4532 = vmatprep.mubr.f32.mxu0 0.0
      %4533 = vmatmul.mubr.f32.gmra.mxu0 %v3869
      %v4534 = vpop.f32.mrf.mxu0
      %v4535 = vadd.f32 0.0, %v4534
      %v4536 = vpop.f32.mrf.mxu0
      %4537 = vmatprep.mubr.f32.mxu0 0.0
      %4538 = vmatmul.mubr.f32.gmra.mxu0 %v3851
      %v4539 = vpop.f32.mrf.mxu0
      %v4540 = vadd.f32 0.0, %v4539
      %v4541 = vpop.f32.mrf.mxu0
      %4542 = vmatprep.mubr.f32.mxu0 0.0
      %4543 = vmatmul.mubr.f32.gmra.mxu0 %v3870
      %v4544 = vpop.f32.mrf.mxu0
      %v4545 = vadd.f32 0.0, %v4544
      %v4546 = vpop.f32.mrf.mxu0
      %4547 = vmatprep.mubr.f32.mxu0 0.0
      %4548 = vmatmul.mubr.f32.gmra.mxu0 %v3852
      %v4549 = vpop.f32.mrf.mxu0
      %v4550 = vadd.f32 0.0, %v4549
      %v4551 = vpop.f32.mrf.mxu0
      %4552 = vmatprep.mubr.f32.mxu0 0.0
      %4553 = vmatmul.mubr.f32.gmra.mxu0 %v3871
      %v4554 = vpop.f32.mrf.mxu0
      %v4555 = vadd.f32 0.0, %v4554
      %v4556 = vpop.f32.mrf.mxu0
      %4557 = vmatprep.mubr.f32.mxu0 0.0
      %4558 = vmatmul.mubr.f32.gmra.mxu0 %v3853
      %v4559 = vpop.f32.mrf.mxu0
      %v4560 = vadd.f32 0.0, %v4559
      %v4561 = vpop.f32.mrf.mxu0
      %4562 = vmatprep.mubr.f32.mxu0 0.0
      %4563 = vmatmul.mubr.f32.gmra.mxu0 %v3872
      %v4564 = vpop.f32.mrf.mxu0
      %v4565 = vadd.f32 0.0, %v4564
      %v4566 = vpop.f32.mrf.mxu0
      %4567 = vmatprep.mubr.f32.mxu0 0.0
      %4568 = vmatmul.mubr.f32.gmra.mxu0 %v3854
      %v4569 = vpop.f32.mrf.mxu0
      %v4570 = vadd.f32 0.0, %v4569
      %v4571 = vpop.f32.mrf.mxu0
      %4572 = vmatprep.mubr.f32.mxu0 0.0
      %4573 = vmatmul.mubr.f32.gmra.mxu0 %v3873
      %v4574 = vpop.f32.mrf.mxu0
      %v4575 = vadd.f32 0.0, %v4574
      %v4576 = vpop.f32.mrf.mxu0
      %4577 = vmatprep.mubr.f32.mxu0 0.0
      %4578 = vmatmul.mubr.f32.gmra.mxu0 %v3855
      %v4579 = vpop.f32.mrf.mxu0
      %v4580 = vadd.f32 0.0, %v4579
      %v4581 = vpop.f32.mrf.mxu0
      %4582 = vmatprep.mubr.f32.mxu0 0.0
      %4583 = vmatmul.mubr.f32.gmra.mxu0 %v3874
      %v4584 = vpop.f32.mrf.mxu0
      %v4585 = vadd.f32 0.0, %v4584
      %v4586 = vpop.f32.mrf.mxu0
      %4587 = vmatprep.mubr.f32.mxu0 0.0
      %4588 = vmatmul.mubr.f32.gmra.mxu0 %v3856
      %v4589 = vpop.f32.mrf.mxu0
      %v4590 = vadd.f32 0.0, %v4589
      %v4591 = vpop.f32.mrf.mxu0
      %4592 = vmatprep.mubr.f32.mxu0 0.0
      %4593 = vmatmul.mubr.f32.gmra.mxu0 %v3875
      %v4594 = vpop.f32.mrf.mxu0
      %v4595 = vadd.f32 0.0, %v4594
      %v4596 = vpop.f32.mrf.mxu0
      %4597 = vmatprep.mubr.f32.mxu0 0.0
      %4598 = vmatmul.mubr.f32.gmra.mxu0 %v3857
      %v4599 = vpop.f32.mrf.mxu0
      %v4600 = vadd.f32 0.0, %v4599
      %v4601 = vpop.f32.mrf.mxu0
      %4602 = vmatprep.mubr.f32.mxu0 0.0
      %4603 = vmatmul.mubr.f32.gmra.mxu0 %v3876
      %v4604 = vpop.f32.mrf.mxu0
      %v4605 = vadd.f32 0.0, %v4604
      %v4606 = vpop.f32.mrf.mxu0
      %4607 = vmatprep.mubr.f32.mxu0 0.0
      %4608 = vmatmul.mubr.f32.gmra.mxu0 %v3858
      %v4609 = vpop.f32.mrf.mxu0
      %v4610 = vadd.f32 0.0, %v4609
      %v4611 = vpop.f32.mrf.mxu0
      %4612 = vmatprep.mubr.f32.mxu0 0.0
      %4613 = vmatmul.mubr.f32.gmra.mxu0 %v3877
      %v4614 = vpop.f32.mrf.mxu0
      %v4615 = vadd.f32 0.0, %v4614
      %v4616 = vpop.f32.mrf.mxu0
      %4617 = vmatprep.mubr.f32.mxu0 0.0
      %4618 = vmatmul.mubr.f32.gmra.mxu0 %v3859
      %v4619 = vpop.f32.mrf.mxu0
      %v4620 = vadd.f32 0.0, %v4619
      %v4621 = vpop.f32.mrf.mxu0
      %4622 = vmatprep.mubr.f32.mxu0 0.0
      %4623 = vmatmul.mubr.f32.gmra.mxu0 %v3878
      %v4624 = vpop.f32.mrf.mxu0
      %v4625 = vadd.f32 0.0, %v4624
      %v4626 = vpop.f32.mrf.mxu0
      %4627 = vmatprep.mubr.f32.mxu0 0.0
      %4628 = vmatmul.mubr.f32.gmra.mxu0 %v3860
      %v4629 = vpop.f32.mrf.mxu0
      %v4630 = vadd.f32 0.0, %v4629
      %v4631 = vpop.f32.mrf.mxu0
      %4632 = vmatprep.mubr.f32.mxu0 0.0
      %4633 = vmatmul.mubr.f32.gmra.mxu0 %v3879
      %v4634 = vpop.f32.mrf.mxu0
      %v4635 = vadd.f32 0.0, %v4634
      %v4636 = vpop.f32.mrf.mxu0
      %4637 = vmatprep.mubr.f32.mxu0 0.0
      %4638 = vmatmul.mubr.f32.gmra.mxu0 %v3861
      %v4639 = vpop.f32.mrf.mxu0
      %v4640 = vadd.f32 0.0, %v4639
      %v4641 = vpop.f32.mrf.mxu0
      %4642 = vmatprep.mubr.f32.mxu0 0.0
      %4643 = vmatmul.mubr.f32.gmra.mxu0 %v3880
      %v4644 = vpop.f32.mrf.mxu0
      %v4645 = vadd.f32 0.0, %v4644
      %v4646 = vpop.f32.mrf.mxu0
      %4647 = vmatprep.mubr.f32.mxu0 0.0
      %4648 = vmatmul.mubr.f32.gmra.mxu0 %v3862
      %v4649 = vpop.f32.mrf.mxu0
      %v4650 = vadd.f32 0.0, %v4649
      %v4651 = vpop.f32.mrf.mxu0
      %4652 = vmatprep.mubr.f32.mxu0 0.0
      %4653 = vmatmul.mubr.f32.gmra.mxu0 %v3881
      %v4654 = vpop.f32.mrf.mxu0
      %v4655 = vadd.f32 0.0, %v4654
      %v4656 = vpop.f32.mrf.mxu0
      %4657 = vmatprep.mubr.f32.mxu0 0.0
      %4658 = vmatmul.mubr.f32.gmra.mxu0 %v3863
      %v4659 = vpop.f32.mrf.mxu0
      %v4660 = vadd.f32 0.0, %v4659
      %v4661 = vpop.f32.mrf.mxu0
      %4662 = vmatprep.mubr.f32.mxu0 0.0
      %4663 = vmatmul.mubr.f32.gmra.mxu0 %v3882
      %v4664 = vpop.f32.mrf.mxu0
      %v4665 = vadd.f32 0.0, %v4664
      %v4666 = vpop.f32.mrf.mxu0
      %4667 = vmatprep.mubr.f32.mxu0 0.0
      %4668 = vmatmul.mubr.f32.gmra.mxu0 %v3864
      %v4669 = vpop.f32.mrf.mxu0
      %v4670 = vadd.f32 0.0, %v4669
      %v4671 = vpop.f32.mrf.mxu0
      %4672 = vdwg.mxu0
      %v4673 = vadd.f32 %v4399, %v4515
      %v4674 = vadd.f32 %v4400, %v4520
      %v4675 = vadd.f32 %v4401, %v4525
      %v4676 = vadd.f32 %v4402, %v4530
      %v4677 = vadd.f32 %v4403, %v4535
      %v4678 = vadd.f32 %v4404, %v4540
      %v4679 = vadd.f32 %v4405, %v4545
      %v4680 = vadd.f32 %v4406, %v4550
      %v4681 = vadd.f32 %v4407, %v4555
      %v4682 = vadd.f32 %v4408, %v4560
      %v4683 = vadd.f32 %v4409, %v4565
      %v4684 = vadd.f32 %v4410, %v4570
      %v4685 = vadd.f32 %v4411, %v4575
      %v4686 = vadd.f32 %v4412, %v4580
      %v4687 = vadd.f32 %v4413, %v4585
      %v4688 = vadd.f32 %v4414, %v4590
      %v4689 = vadd.f32 %v4415, %v4595
      %v4690 = vadd.f32 %v4416, %v4600
      %v4691 = vadd.f32 %v4417, %v4605
      %v4692 = vadd.f32 %v4418, %v4610
      %v4693 = vadd.f32 %v4419, %v4615
      %v4694 = vadd.f32 %v4420, %v4620
      %v4695 = vadd.f32 %v4421, %v4625
      %v4696 = vadd.f32 %v4422, %v4630
      %v4697 = vadd.f32 %v4423, %v4635
      %v4698 = vadd.f32 %v4424, %v4640
      %v4699 = vadd.f32 %v4425, %v4645
      %v4700 = vadd.f32 %v4426, %v4650
      %v4701 = vadd.f32 %v4427, %v4655
      %v4702 = vadd.f32 %v4428, %v4660
      %v4703 = vadd.f32 %v4429, %v4665
      %v4704 = vadd.f32 %v4430, %v4670
      %v4705 = vrot.slane %v2982, 2
      %v4706 = vrot.slane %v2985, 2
      %v4707 = vrot.slane %v2988, 2
      %v4708 = vrot.slane %v2991, 2
      %v4709 = vrot.slane %v2994, 2
      %v4710 = vrot.slane %v2997, 2
      %v4711 = vrot.slane %v3000, 2
      %v4712 = vrot.slane %v3003, 2
      %v4713 = vrot.slane %v3006, 2
      %v4714 = vrot.slane %v3009, 2
      %v4715 = vrot.slane %v3012, 2
      %v4716 = vrot.slane %v3015, 2
      %v4717 = vrot.slane %v3018, 2
      %v4718 = vrot.slane %v3021, 2
      %v4719 = vrot.slane %v3024, 2
      %v4720 = vrot.slane %v3027, 2
      %v4721 = vrot.slane %v3030, 2
      %v4722 = vrot.slane %v3033, 2
      %v4723 = vrot.slane %v2983, 2
      %v4724 = vrot.slane %v2986, 2
      %v4725 = vrot.slane %v2989, 2
      %v4726 = vrot.slane %v2992, 2
      %v4727 = vrot.slane %v2995, 2
      %v4728 = vrot.slane %v2998, 2
      %v4729 = vrot.slane %v3001, 2
      %v4730 = vrot.slane %v3004, 2
      %v4731 = vrot.slane %v3007, 2
      %v4732 = vrot.slane %v3010, 2
      %v4733 = vrot.slane %v3013, 2
      %v4734 = vrot.slane %v3016, 2
      %v4735 = vrot.slane %v3019, 2
      %v4736 = vrot.slane %v3022, 2
      %v4737 = vrot.slane %v3025, 2
      %v4738 = vrot.slane %v3028, 2
      %v4739 = vrot.slane %v3031, 2
      %v4740 = vrot.slane %v3034, 2
      %v4741 = vrot.slane %v2984, 2
      %v4742 = vrot.slane %v2987, 2
      %v4743 = vrot.slane %v2990, 2
      %v4744 = vrot.slane %v2993, 2
      %v4745 = vrot.slane %v2996, 2
      %v4746 = vrot.slane %v2999, 2
      %v4747 = vrot.slane %v3002, 2
      %v4748 = vrot.slane %v3005, 2
      %v4749 = vrot.slane %v3008, 2
      %v4750 = vrot.slane %v3011, 2
      %v4751 = vrot.slane %v3014, 2
      %v4752 = vrot.slane %v3017, 2
      %v4753 = vrot.slane %v3020, 2
      %v4754 = vrot.slane %v3023, 2
      %v4755 = vrot.slane %v3026, 2
      %v4756 = vrot.slane %v3029, 2
      %v4757 = vrot.slane %v3032, 2
      %v4758 = vrot.slane %v3035, 2
      %v4759 = vsel %vm2059, %v4723, %v4741
      %v4760 = vsel %vm2059, %v4724, %v4742
      %v4761 = vsel %vm2059, %v4725, %v4743
      %v4762 = vsel %vm2059, %v4726, %v4744
      %v4763 = vsel %vm2059, %v4727, %v4745
      %v4764 = vsel %vm2059, %v4728, %v4746
      %v4765 = vsel %vm2059, %v4729, %v4747
      %v4766 = vsel %vm2059, %v4730, %v4748
      %v4767 = vsel %vm2059, %v4731, %v4749
      %v4768 = vsel %vm2059, %v4732, %v4750
      %v4769 = vsel %vm2059, %v4733, %v4751
      %v4770 = vsel %vm2059, %v4734, %v4752
      %v4771 = vsel %vm2059, %v4735, %v4753
      %v4772 = vsel %vm2059, %v4736, %v4754
      %v4773 = vsel %vm2059, %v4737, %v4755
      %v4774 = vsel %vm2059, %v4738, %v4756
      %v4775 = vsel %vm2059, %v4739, %v4757
      %v4776 = vsel %vm2059, %v4740, %v4758
      %v4777 = vsel %vm2059, %v4705, %v4723
      %v4778 = vsel %vm2059, %v4706, %v4724
      %v4779 = vsel %vm2059, %v4707, %v4725
      %v4780 = vsel %vm2059, %v4708, %v4726
      %v4781 = vsel %vm2059, %v4709, %v4727
      %v4782 = vsel %vm2059, %v4710, %v4728
      %v4783 = vsel %vm2059, %v4711, %v4729
      %v4784 = vsel %vm2059, %v4712, %v4730
      %v4785 = vsel %vm2059, %v4713, %v4731
      %v4786 = vsel %vm2059, %v4714, %v4732
      %v4787 = vsel %vm2059, %v4715, %v4733
      %v4788 = vsel %vm2059, %v4716, %v4734
      %v4789 = vsel %vm2059, %v4717, %v4735
      %v4790 = vsel %vm2059, %v4718, %v4736
      %v4791 = vsel %vm2059, %v4719, %v4737
      %v4792 = vsel %vm2059, %v4720, %v4738
      %v4793 = vsel %vm2059, %v4721, %v4739
      %v4794 = vsel %vm2059, %v4722, %v4740
      %s4795 = scalar_lea.vmem %s2, 256
      %v4796 = vld [vmem:[%s4795] sm:$0xff]
      %v4797 = vld [vmem:[%s4795 + $0x8] sm:$0xff]
      %v4798 = vld [vmem:[%s4795 + $0x10] sm:$0xff]
      %v4799 = vld [vmem:[%s4795 + $0x18] sm:$0xff]
      %v4800 = vld [vmem:[%s4795 + $0x20] sm:$0xff]
      %v4801 = vld [vmem:[%s4795 + $0x28] sm:$0xff]
      %v4802 = vld [vmem:[%s4795 + $0x30] sm:$0xff]
      %v4803 = vld [vmem:[%s4795 + $0x38] sm:$0xff]
      %v4804 = vld [vmem:[%s4795 + $0x40] sm:$0xff]
      %v4805 = vld [vmem:[%s4795 + $0x48] sm:$0xff]
      %v4806 = vld [vmem:[%s4795 + $0x50] sm:$0xff]
      %v4807 = vld [vmem:[%s4795 + $0x58] sm:$0xff]
      %v4808 = vld [vmem:[%s4795 + $0x60] sm:$0xff]
      %v4809 = vld [vmem:[%s4795 + $0x68] sm:$0xff]
      %v4810 = vld [vmem:[%s4795 + $0x70] sm:$0xff]
      %v4811 = vld [vmem:[%s4795 + $0x78] sm:$0xff]
      %4812 = vmatprep.subr.mxu0 0.0
      %4813 = vmatpush1.msra.mxu0 %v4811
      %4814 = vmatprep.subr.mxu0 0.0
      %4815 = vmatpush1.msra.mxu0 %v4810
      %4816 = vmatprep.subr.mxu0 0.0
      %4817 = vmatpush1.msra.mxu0 %v4809
      %4818 = vmatprep.subr.mxu0 0.0
      %4819 = vmatpush1.msra.mxu0 %v4808
      %4820 = vmatprep.subr.mxu0 0.0
      %4821 = vmatpush1.msra.mxu0 %v4807
      %4822 = vmatprep.subr.mxu0 0.0
      %4823 = vmatpush1.msra.mxu0 %v4806
      %4824 = vmatprep.subr.mxu0 0.0
      %4825 = vmatpush1.msra.mxu0 %v4805
      %4826 = vmatprep.subr.mxu0 0.0
      %4827 = vmatpush1.msra.mxu0 %v4804
      %4828 = vmatprep.subr.mxu0 0.0
      %4829 = vmatpush1.msra.mxu0 %v4803
      %4830 = vmatprep.subr.mxu0 0.0
      %4831 = vmatpush1.msra.mxu0 %v4802
      %4832 = vmatprep.subr.mxu0 0.0
      %4833 = vmatpush1.msra.mxu0 %v4801
      %4834 = vmatprep.subr.mxu0 0.0
      %4835 = vmatpush1.msra.mxu0 %v4800
      %4836 = vmatprep.subr.mxu0 0.0
      %4837 = vmatpush1.msra.mxu0 %v4799
      %4838 = vmatprep.subr.mxu0 0.0
      %4839 = vmatpush1.msra.mxu0 %v4798
      %4840 = vmatprep.subr.mxu0 0.0
      %4841 = vmatpush1.msra.mxu0 %v4797
      %4842 = vmatprep.subr.mxu0 0.0
      %4843 = vmatpush1.msra.mxu0 %v4796
      %4844 = vmatprep.subr.mxu0 0.0
      %4845 = vmatpush2.msra.mxu0 0.0
      %4846 = vmatprep.subr.mxu0 0.0
      %4847 = vmatpush2.msra.mxu0 0.0
      %4848 = vmatprep.subr.mxu0 0.0
      %4849 = vmatpush2.msra.mxu0 0.0
      %4850 = vmatprep.subr.mxu0 0.0
      %4851 = vmatpush2.msra.mxu0 0.0
      %4852 = vmatprep.subr.mxu0 0.0
      %4853 = vmatpush2.msra.mxu0 0.0
      %4854 = vmatprep.subr.mxu0 0.0
      %4855 = vmatpush2.msra.mxu0 0.0
      %4856 = vmatprep.subr.mxu0 0.0
      %4857 = vmatpush2.msra.mxu0 0.0
      %4858 = vmatprep.subr.mxu0 0.0
      %4859 = vmatpush2.msra.mxu0 0.0
      %4860 = vmatprep.subr.mxu0 0.0
      %4861 = vmatpush2.msra.mxu0 0.0
      %4862 = vmatprep.subr.mxu0 0.0
      %4863 = vmatpush2.msra.mxu0 0.0
      %4864 = vmatprep.subr.mxu0 0.0
      %4865 = vmatpush2.msra.mxu0 0.0
      %4866 = vmatprep.subr.mxu0 0.0
      %4867 = vmatpush2.msra.mxu0 0.0
      %4868 = vmatprep.subr.mxu0 0.0
      %4869 = vmatpush2.msra.mxu0 0.0
      %4870 = vmatprep.subr.mxu0 0.0
      %4871 = vmatpush2.msra.mxu0 0.0
      %4872 = vmatprep.subr.mxu0 0.0
      %4873 = vmatpush2.msra.mxu0 0.0
      %4874 = vmatprep.subr.mxu0 0.0
      %4875 = vmatpush2.msra.mxu0 0.0
      %4876 = vmatprep.mubr.f32.mxu0 0.0
      %4877 = vmatmul.mubr.f32.gmra.mxu0 %v4777
      %v4878 = vpop.f32.mrf.mxu0
      %v4879 = vadd.f32 0.0, %v4878
      %v4880 = vpop.f32.mrf.mxu0
      %4881 = vmatprep.mubr.f32.mxu0 0.0
      %4882 = vmatmul.mubr.f32.gmra.mxu0 %v4759
      %v4883 = vpop.f32.mrf.mxu0
      %v4884 = vadd.f32 0.0, %v4883
      %v4885 = vpop.f32.mrf.mxu0
      %4886 = vmatprep.mubr.f32.mxu0 0.0
      %4887 = vmatmul.mubr.f32.gmra.mxu0 %v4778
      %v4888 = vpop.f32.mrf.mxu0
      %v4889 = vadd.f32 0.0, %v4888
      %v4890 = vpop.f32.mrf.mxu0
      %4891 = vmatprep.mubr.f32.mxu0 0.0
      %4892 = vmatmul.mubr.f32.gmra.mxu0 %v4760
      %v4893 = vpop.f32.mrf.mxu0
      %v4894 = vadd.f32 0.0, %v4893
      %v4895 = vpop.f32.mrf.mxu0
      %4896 = vmatprep.mubr.f32.mxu0 0.0
      %4897 = vmatmul.mubr.f32.gmra.mxu0 %v4779
      %v4898 = vpop.f32.mrf.mxu0
      %v4899 = vadd.f32 0.0, %v4898
      %v4900 = vpop.f32.mrf.mxu0
      %4901 = vmatprep.mubr.f32.mxu0 0.0
      %4902 = vmatmul.mubr.f32.gmra.mxu0 %v4761
      %v4903 = vpop.f32.mrf.mxu0
      %v4904 = vadd.f32 0.0, %v4903
      %v4905 = vpop.f32.mrf.mxu0
      %4906 = vmatprep.mubr.f32.mxu0 0.0
      %4907 = vmatmul.mubr.f32.gmra.mxu0 %v4780
      %v4908 = vpop.f32.mrf.mxu0
      %v4909 = vadd.f32 0.0, %v4908
      %v4910 = vpop.f32.mrf.mxu0
      %4911 = vmatprep.mubr.f32.mxu0 0.0
      %4912 = vmatmul.mubr.f32.gmra.mxu0 %v4762
      %v4913 = vpop.f32.mrf.mxu0
      %v4914 = vadd.f32 0.0, %v4913
      %v4915 = vpop.f32.mrf.mxu0
      %4916 = vmatprep.mubr.f32.mxu0 0.0
      %4917 = vmatmul.mubr.f32.gmra.mxu0 %v4781
      %v4918 = vpop.f32.mrf.mxu0
      %v4919 = vadd.f32 0.0, %v4918
      %v4920 = vpop.f32.mrf.mxu0
      %4921 = vmatprep.mubr.f32.mxu0 0.0
      %4922 = vmatmul.mubr.f32.gmra.mxu0 %v4763
      %v4923 = vpop.f32.mrf.mxu0
      %v4924 = vadd.f32 0.0, %v4923
      %v4925 = vpop.f32.mrf.mxu0
      %4926 = vmatprep.mubr.f32.mxu0 0.0
      %4927 = vmatmul.mubr.f32.gmra.mxu0 %v4782
      %v4928 = vpop.f32.mrf.mxu0
      %v4929 = vadd.f32 0.0, %v4928
      %v4930 = vpop.f32.mrf.mxu0
      %4931 = vmatprep.mubr.f32.mxu0 0.0
      %4932 = vmatmul.mubr.f32.gmra.mxu0 %v4764
      %v4933 = vpop.f32.mrf.mxu0
      %v4934 = vadd.f32 0.0, %v4933
      %v4935 = vpop.f32.mrf.mxu0
      %4936 = vmatprep.mubr.f32.mxu0 0.0
      %4937 = vmatmul.mubr.f32.gmra.mxu0 %v4783
      %v4938 = vpop.f32.mrf.mxu0
      %v4939 = vadd.f32 0.0, %v4938
      %v4940 = vpop.f32.mrf.mxu0
      %4941 = vmatprep.mubr.f32.mxu0 0.0
      %4942 = vmatmul.mubr.f32.gmra.mxu0 %v4765
      %v4943 = vpop.f32.mrf.mxu0
      %v4944 = vadd.f32 0.0, %v4943
      %v4945 = vpop.f32.mrf.mxu0
      %4946 = vmatprep.mubr.f32.mxu0 0.0
      %4947 = vmatmul.mubr.f32.gmra.mxu0 %v4784
      %v4948 = vpop.f32.mrf.mxu0
      %v4949 = vadd.f32 0.0, %v4948
      %v4950 = vpop.f32.mrf.mxu0
      %4951 = vmatprep.mubr.f32.mxu0 0.0
      %4952 = vmatmul.mubr.f32.gmra.mxu0 %v4766
      %v4953 = vpop.f32.mrf.mxu0
      %v4954 = vadd.f32 0.0, %v4953
      %v4955 = vpop.f32.mrf.mxu0
      %4956 = vmatprep.mubr.f32.mxu0 0.0
      %4957 = vmatmul.mubr.f32.gmra.mxu0 %v4785
      %v4958 = vpop.f32.mrf.mxu0
      %v4959 = vadd.f32 0.0, %v4958
      %v4960 = vpop.f32.mrf.mxu0
      %4961 = vmatprep.mubr.f32.mxu0 0.0
      %4962 = vmatmul.mubr.f32.gmra.mxu0 %v4767
      %v4963 = vpop.f32.mrf.mxu0
      %v4964 = vadd.f32 0.0, %v4963
      %v4965 = vpop.f32.mrf.mxu0
      %4966 = vmatprep.mubr.f32.mxu0 0.0
      %4967 = vmatmul.mubr.f32.gmra.mxu0 %v4786
      %v4968 = vpop.f32.mrf.mxu0
      %v4969 = vadd.f32 0.0, %v4968
      %v4970 = vpop.f32.mrf.mxu0
      %4971 = vmatprep.mubr.f32.mxu0 0.0
      %4972 = vmatmul.mubr.f32.gmra.mxu0 %v4768
      %v4973 = vpop.f32.mrf.mxu0
      %v4974 = vadd.f32 0.0, %v4973
      %v4975 = vpop.f32.mrf.mxu0
      %4976 = vmatprep.mubr.f32.mxu0 0.0
      %4977 = vmatmul.mubr.f32.gmra.mxu0 %v4787
      %v4978 = vpop.f32.mrf.mxu0
      %v4979 = vadd.f32 0.0, %v4978
      %v4980 = vpop.f32.mrf.mxu0
      %4981 = vmatprep.mubr.f32.mxu0 0.0
      %4982 = vmatmul.mubr.f32.gmra.mxu0 %v4769
      %v4983 = vpop.f32.mrf.mxu0
      %v4984 = vadd.f32 0.0, %v4983
      %v4985 = vpop.f32.mrf.mxu0
      %4986 = vmatprep.mubr.f32.mxu0 0.0
      %4987 = vmatmul.mubr.f32.gmra.mxu0 %v4788
      %v4988 = vpop.f32.mrf.mxu0
      %v4989 = vadd.f32 0.0, %v4988
      %v4990 = vpop.f32.mrf.mxu0
      %4991 = vmatprep.mubr.f32.mxu0 0.0
      %4992 = vmatmul.mubr.f32.gmra.mxu0 %v4770
      %v4993 = vpop.f32.mrf.mxu0
      %v4994 = vadd.f32 0.0, %v4993
      %v4995 = vpop.f32.mrf.mxu0
      %4996 = vmatprep.mubr.f32.mxu0 0.0
      %4997 = vmatmul.mubr.f32.gmra.mxu0 %v4789
      %v4998 = vpop.f32.mrf.mxu0
      %v4999 = vadd.f32 0.0, %v4998
      %v5000 = vpop.f32.mrf.mxu0
      %5001 = vmatprep.mubr.f32.mxu0 0.0
      %5002 = vmatmul.mubr.f32.gmra.mxu0 %v4771
      %v5003 = vpop.f32.mrf.mxu0
      %v5004 = vadd.f32 0.0, %v5003
      %v5005 = vpop.f32.mrf.mxu0
      %5006 = vmatprep.mubr.f32.mxu0 0.0
      %5007 = vmatmul.mubr.f32.gmra.mxu0 %v4790
      %v5008 = vpop.f32.mrf.mxu0
      %v5009 = vadd.f32 0.0, %v5008
      %v5010 = vpop.f32.mrf.mxu0
      %5011 = vmatprep.mubr.f32.mxu0 0.0
      %5012 = vmatmul.mubr.f32.gmra.mxu0 %v4772
      %v5013 = vpop.f32.mrf.mxu0
      %v5014 = vadd.f32 0.0, %v5013
      %v5015 = vpop.f32.mrf.mxu0
      %5016 = vmatprep.mubr.f32.mxu0 0.0
      %5017 = vmatmul.mubr.f32.gmra.mxu0 %v4791
      %v5018 = vpop.f32.mrf.mxu0
      %v5019 = vadd.f32 0.0, %v5018
      %v5020 = vpop.f32.mrf.mxu0
      %5021 = vmatprep.mubr.f32.mxu0 0.0
      %5022 = vmatmul.mubr.f32.gmra.mxu0 %v4773
      %v5023 = vpop.f32.mrf.mxu0
      %v5024 = vadd.f32 0.0, %v5023
      %v5025 = vpop.f32.mrf.mxu0
      %5026 = vmatprep.mubr.f32.mxu0 0.0
      %5027 = vmatmul.mubr.f32.gmra.mxu0 %v4792
      %v5028 = vpop.f32.mrf.mxu0
      %v5029 = vadd.f32 0.0, %v5028
      %v5030 = vpop.f32.mrf.mxu0
      %5031 = vmatprep.mubr.f32.mxu0 0.0
      %5032 = vmatmul.mubr.f32.gmra.mxu0 %v4774
      %v5033 = vpop.f32.mrf.mxu0
      %v5034 = vadd.f32 0.0, %v5033
      %v5035 = vpop.f32.mrf.mxu0
      %5036 = vdwg.mxu0
      %v5037 = vadd.f32 %v4673, %v4879
      %v5038 = vadd.f32 %v4674, %v4884
      %v5039 = vadd.f32 %v4675, %v4889
      %v5040 = vadd.f32 %v4676, %v4894
      %v5041 = vadd.f32 %v4677, %v4899
      %v5042 = vadd.f32 %v4678, %v4904
      %v5043 = vadd.f32 %v4679, %v4909
      %v5044 = vadd.f32 %v4680, %v4914
      %v5045 = vadd.f32 %v4681, %v4919
      %v5046 = vadd.f32 %v4682, %v4924
      %v5047 = vadd.f32 %v4683, %v4929
      %v5048 = vadd.f32 %v4684, %v4934
      %v5049 = vadd.f32 %v4685, %v4939
      %v5050 = vadd.f32 %v4686, %v4944
      %v5051 = vadd.f32 %v4687, %v4949
      %v5052 = vadd.f32 %v4688, %v4954
      %v5053 = vadd.f32 %v4689, %v4959
      %v5054 = vadd.f32 %v4690, %v4964
      %v5055 = vadd.f32 %v4691, %v4969
      %v5056 = vadd.f32 %v4692, %v4974
      %v5057 = vadd.f32 %v4693, %v4979
      %v5058 = vadd.f32 %v4694, %v4984
      %v5059 = vadd.f32 %v4695, %v4989
      %v5060 = vadd.f32 %v4696, %v4994
      %v5061 = vadd.f32 %v4697, %v4999
      %v5062 = vadd.f32 %v4698, %v5004
      %v5063 = vadd.f32 %v4699, %v5009
      %v5064 = vadd.f32 %v4700, %v5014
      %v5065 = vadd.f32 %v4701, %v5019
      %v5066 = vadd.f32 %v4702, %v5024
      %v5067 = vadd.f32 %v4703, %v5029
      %v5068 = vadd.f32 %v4704, %v5034
      %s5069 = scalar_lea.vmem %s2, 640
      %v5070 = vld [vmem:[%s5069] sm:$0xff]
      %v5071 = vld [vmem:[%s5069 + $0x8] sm:$0xff]
      %v5072 = vld [vmem:[%s5069 + $0x10] sm:$0xff]
      %v5073 = vld [vmem:[%s5069 + $0x18] sm:$0xff]
      %v5074 = vld [vmem:[%s5069 + $0x20] sm:$0xff]
      %v5075 = vld [vmem:[%s5069 + $0x28] sm:$0xff]
      %v5076 = vld [vmem:[%s5069 + $0x30] sm:$0xff]
      %v5077 = vld [vmem:[%s5069 + $0x38] sm:$0xff]
      %v5078 = vld [vmem:[%s5069 + $0x40] sm:$0xff]
      %v5079 = vld [vmem:[%s5069 + $0x48] sm:$0xff]
      %v5080 = vld [vmem:[%s5069 + $0x50] sm:$0xff]
      %v5081 = vld [vmem:[%s5069 + $0x58] sm:$0xff]
      %v5082 = vld [vmem:[%s5069 + $0x60] sm:$0xff]
      %v5083 = vld [vmem:[%s5069 + $0x68] sm:$0xff]
      %v5084 = vld [vmem:[%s5069 + $0x70] sm:$0xff]
      %v5085 = vld [vmem:[%s5069 + $0x78] sm:$0xff]
      %5086 = vmatprep.subr.mxu0 0.0
      %5087 = vmatpush1.msra.mxu0 %v5085
      %5088 = vmatprep.subr.mxu0 0.0
      %5089 = vmatpush1.msra.mxu0 %v5084
      %5090 = vmatprep.subr.mxu0 0.0
      %5091 = vmatpush1.msra.mxu0 %v5083
      %5092 = vmatprep.subr.mxu0 0.0
      %5093 = vmatpush1.msra.mxu0 %v5082
      %5094 = vmatprep.subr.mxu0 0.0
      %5095 = vmatpush1.msra.mxu0 %v5081
      %5096 = vmatprep.subr.mxu0 0.0
      %5097 = vmatpush1.msra.mxu0 %v5080
      %5098 = vmatprep.subr.mxu0 0.0
      %5099 = vmatpush1.msra.mxu0 %v5079
      %5100 = vmatprep.subr.mxu0 0.0
      %5101 = vmatpush1.msra.mxu0 %v5078
      %5102 = vmatprep.subr.mxu0 0.0
      %5103 = vmatpush1.msra.mxu0 %v5077
      %5104 = vmatprep.subr.mxu0 0.0
      %5105 = vmatpush1.msra.mxu0 %v5076
      %5106 = vmatprep.subr.mxu0 0.0
      %5107 = vmatpush1.msra.mxu0 %v5075
      %5108 = vmatprep.subr.mxu0 0.0
      %5109 = vmatpush1.msra.mxu0 %v5074
      %5110 = vmatprep.subr.mxu0 0.0
      %5111 = vmatpush1.msra.mxu0 %v5073
      %5112 = vmatprep.subr.mxu0 0.0
      %5113 = vmatpush1.msra.mxu0 %v5072
      %5114 = vmatprep.subr.mxu0 0.0
      %5115 = vmatpush1.msra.mxu0 %v5071
      %5116 = vmatprep.subr.mxu0 0.0
      %5117 = vmatpush1.msra.mxu0 %v5070
      %5118 = vmatprep.subr.mxu0 0.0
      %5119 = vmatpush2.msra.mxu0 0.0
      %5120 = vmatprep.subr.mxu0 0.0
      %5121 = vmatpush2.msra.mxu0 0.0
      %5122 = vmatprep.subr.mxu0 0.0
      %5123 = vmatpush2.msra.mxu0 0.0
      %5124 = vmatprep.subr.mxu0 0.0
      %5125 = vmatpush2.msra.mxu0 0.0
      %5126 = vmatprep.subr.mxu0 0.0
      %5127 = vmatpush2.msra.mxu0 0.0
      %5128 = vmatprep.subr.mxu0 0.0
      %5129 = vmatpush2.msra.mxu0 0.0
      %5130 = vmatprep.subr.mxu0 0.0
      %5131 = vmatpush2.msra.mxu0 0.0
      %5132 = vmatprep.subr.mxu0 0.0
      %5133 = vmatpush2.msra.mxu0 0.0
      %5134 = vmatprep.subr.mxu0 0.0
      %5135 = vmatpush2.msra.mxu0 0.0
      %5136 = vmatprep.subr.mxu0 0.0
      %5137 = vmatpush2.msra.mxu0 0.0
      %5138 = vmatprep.subr.mxu0 0.0
      %5139 = vmatpush2.msra.mxu0 0.0
      %5140 = vmatprep.subr.mxu0 0.0
      %5141 = vmatpush2.msra.mxu0 0.0
      %5142 = vmatprep.subr.mxu0 0.0
      %5143 = vmatpush2.msra.mxu0 0.0
      %5144 = vmatprep.subr.mxu0 0.0
      %5145 = vmatpush2.msra.mxu0 0.0
      %5146 = vmatprep.subr.mxu0 0.0
      %5147 = vmatpush2.msra.mxu0 0.0
      %5148 = vmatprep.subr.mxu0 0.0
      %5149 = vmatpush2.msra.mxu0 0.0
      %5150 = vmatprep.mubr.f32.mxu0 0.0
      %5151 = vmatmul.mubr.f32.gmra.mxu0 %v4778
      %v5152 = vpop.f32.mrf.mxu0
      %v5153 = vadd.f32 0.0, %v5152
      %v5154 = vpop.f32.mrf.mxu0
      %5155 = vmatprep.mubr.f32.mxu0 0.0
      %5156 = vmatmul.mubr.f32.gmra.mxu0 %v4760
      %v5157 = vpop.f32.mrf.mxu0
      %v5158 = vadd.f32 0.0, %v5157
      %v5159 = vpop.f32.mrf.mxu0
      %5160 = vmatprep.mubr.f32.mxu0 0.0
      %5161 = vmatmul.mubr.f32.gmra.mxu0 %v4779
      %v5162 = vpop.f32.mrf.mxu0
      %v5163 = vadd.f32 0.0, %v5162
      %v5164 = vpop.f32.mrf.mxu0
      %5165 = vmatprep.mubr.f32.mxu0 0.0
      %5166 = vmatmul.mubr.f32.gmra.mxu0 %v4761
      %v5167 = vpop.f32.mrf.mxu0
      %v5168 = vadd.f32 0.0, %v5167
      %v5169 = vpop.f32.mrf.mxu0
      %5170 = vmatprep.mubr.f32.mxu0 0.0
      %5171 = vmatmul.mubr.f32.gmra.mxu0 %v4780
      %v5172 = vpop.f32.mrf.mxu0
      %v5173 = vadd.f32 0.0, %v5172
      %v5174 = vpop.f32.mrf.mxu0
      %5175 = vmatprep.mubr.f32.mxu0 0.0
      %5176 = vmatmul.mubr.f32.gmra.mxu0 %v4762
      %v5177 = vpop.f32.mrf.mxu0
      %v5178 = vadd.f32 0.0, %v5177
      %v5179 = vpop.f32.mrf.mxu0
      %5180 = vmatprep.mubr.f32.mxu0 0.0
      %5181 = vmatmul.mubr.f32.gmra.mxu0 %v4781
      %v5182 = vpop.f32.mrf.mxu0
      %v5183 = vadd.f32 0.0, %v5182
      %v5184 = vpop.f32.mrf.mxu0
      %5185 = vmatprep.mubr.f32.mxu0 0.0
      %5186 = vmatmul.mubr.f32.gmra.mxu0 %v4763
      %v5187 = vpop.f32.mrf.mxu0
      %v5188 = vadd.f32 0.0, %v5187
      %v5189 = vpop.f32.mrf.mxu0
      %5190 = vmatprep.mubr.f32.mxu0 0.0
      %5191 = vmatmul.mubr.f32.gmra.mxu0 %v4782
      %v5192 = vpop.f32.mrf.mxu0
      %v5193 = vadd.f32 0.0, %v5192
      %v5194 = vpop.f32.mrf.mxu0
      %5195 = vmatprep.mubr.f32.mxu0 0.0
      %5196 = vmatmul.mubr.f32.gmra.mxu0 %v4764
      %v5197 = vpop.f32.mrf.mxu0
      %v5198 = vadd.f32 0.0, %v5197
      %v5199 = vpop.f32.mrf.mxu0
      %5200 = vmatprep.mubr.f32.mxu0 0.0
      %5201 = vmatmul.mubr.f32.gmra.mxu0 %v4783
      %v5202 = vpop.f32.mrf.mxu0
      %v5203 = vadd.f32 0.0, %v5202
      %v5204 = vpop.f32.mrf.mxu0
      %5205 = vmatprep.mubr.f32.mxu0 0.0
      %5206 = vmatmul.mubr.f32.gmra.mxu0 %v4765
      %v5207 = vpop.f32.mrf.mxu0
      %v5208 = vadd.f32 0.0, %v5207
      %v5209 = vpop.f32.mrf.mxu0
      %5210 = vmatprep.mubr.f32.mxu0 0.0
      %5211 = vmatmul.mubr.f32.gmra.mxu0 %v4784
      %v5212 = vpop.f32.mrf.mxu0
      %v5213 = vadd.f32 0.0, %v5212
      %v5214 = vpop.f32.mrf.mxu0
      %5215 = vmatprep.mubr.f32.mxu0 0.0
      %5216 = vmatmul.mubr.f32.gmra.mxu0 %v4766
      %v5217 = vpop.f32.mrf.mxu0
      %v5218 = vadd.f32 0.0, %v5217
      %v5219 = vpop.f32.mrf.mxu0
      %5220 = vmatprep.mubr.f32.mxu0 0.0
      %5221 = vmatmul.mubr.f32.gmra.mxu0 %v4785
      %v5222 = vpop.f32.mrf.mxu0
      %v5223 = vadd.f32 0.0, %v5222
      %v5224 = vpop.f32.mrf.mxu0
      %5225 = vmatprep.mubr.f32.mxu0 0.0
      %5226 = vmatmul.mubr.f32.gmra.mxu0 %v4767
      %v5227 = vpop.f32.mrf.mxu0
      %v5228 = vadd.f32 0.0, %v5227
      %v5229 = vpop.f32.mrf.mxu0
      %5230 = vmatprep.mubr.f32.mxu0 0.0
      %5231 = vmatmul.mubr.f32.gmra.mxu0 %v4786
      %v5232 = vpop.f32.mrf.mxu0
      %v5233 = vadd.f32 0.0, %v5232
      %v5234 = vpop.f32.mrf.mxu0
      %5235 = vmatprep.mubr.f32.mxu0 0.0
      %5236 = vmatmul.mubr.f32.gmra.mxu0 %v4768
      %v5237 = vpop.f32.mrf.mxu0
      %v5238 = vadd.f32 0.0, %v5237
      %v5239 = vpop.f32.mrf.mxu0
      %5240 = vmatprep.mubr.f32.mxu0 0.0
      %5241 = vmatmul.mubr.f32.gmra.mxu0 %v4787
      %v5242 = vpop.f32.mrf.mxu0
      %v5243 = vadd.f32 0.0, %v5242
      %v5244 = vpop.f32.mrf.mxu0
      %5245 = vmatprep.mubr.f32.mxu0 0.0
      %5246 = vmatmul.mubr.f32.gmra.mxu0 %v4769
      %v5247 = vpop.f32.mrf.mxu0
      %v5248 = vadd.f32 0.0, %v5247
      %v5249 = vpop.f32.mrf.mxu0
      %5250 = vmatprep.mubr.f32.mxu0 0.0
      %5251 = vmatmul.mubr.f32.gmra.mxu0 %v4788
      %v5252 = vpop.f32.mrf.mxu0
      %v5253 = vadd.f32 0.0, %v5252
      %v5254 = vpop.f32.mrf.mxu0
      %5255 = vmatprep.mubr.f32.mxu0 0.0
      %5256 = vmatmul.mubr.f32.gmra.mxu0 %v4770
      %v5257 = vpop.f32.mrf.mxu0
      %v5258 = vadd.f32 0.0, %v5257
      %v5259 = vpop.f32.mrf.mxu0
      %5260 = vmatprep.mubr.f32.mxu0 0.0
      %5261 = vmatmul.mubr.f32.gmra.mxu0 %v4789
      %v5262 = vpop.f32.mrf.mxu0
      %v5263 = vadd.f32 0.0, %v5262
      %v5264 = vpop.f32.mrf.mxu0
      %5265 = vmatprep.mubr.f32.mxu0 0.0
      %5266 = vmatmul.mubr.f32.gmra.mxu0 %v4771
      %v5267 = vpop.f32.mrf.mxu0
      %v5268 = vadd.f32 0.0, %v5267
      %v5269 = vpop.f32.mrf.mxu0
      %5270 = vmatprep.mubr.f32.mxu0 0.0
      %5271 = vmatmul.mubr.f32.gmra.mxu0 %v4790
      %v5272 = vpop.f32.mrf.mxu0
      %v5273 = vadd.f32 0.0, %v5272
      %v5274 = vpop.f32.mrf.mxu0
      %5275 = vmatprep.mubr.f32.mxu0 0.0
      %5276 = vmatmul.mubr.f32.gmra.mxu0 %v4772
      %v5277 = vpop.f32.mrf.mxu0
      %v5278 = vadd.f32 0.0, %v5277
      %v5279 = vpop.f32.mrf.mxu0
      %5280 = vmatprep.mubr.f32.mxu0 0.0
      %5281 = vmatmul.mubr.f32.gmra.mxu0 %v4791
      %v5282 = vpop.f32.mrf.mxu0
      %v5283 = vadd.f32 0.0, %v5282
      %v5284 = vpop.f32.mrf.mxu0
      %5285 = vmatprep.mubr.f32.mxu0 0.0
      %5286 = vmatmul.mubr.f32.gmra.mxu0 %v4773
      %v5287 = vpop.f32.mrf.mxu0
      %v5288 = vadd.f32 0.0, %v5287
      %v5289 = vpop.f32.mrf.mxu0
      %5290 = vmatprep.mubr.f32.mxu0 0.0
      %5291 = vmatmul.mubr.f32.gmra.mxu0 %v4792
      %v5292 = vpop.f32.mrf.mxu0
      %v5293 = vadd.f32 0.0, %v5292
      %v5294 = vpop.f32.mrf.mxu0
      %5295 = vmatprep.mubr.f32.mxu0 0.0
      %5296 = vmatmul.mubr.f32.gmra.mxu0 %v4774
      %v5297 = vpop.f32.mrf.mxu0
      %v5298 = vadd.f32 0.0, %v5297
      %v5299 = vpop.f32.mrf.mxu0
      %5300 = vmatprep.mubr.f32.mxu0 0.0
      %5301 = vmatmul.mubr.f32.gmra.mxu0 %v4793
      %v5302 = vpop.f32.mrf.mxu0
      %v5303 = vadd.f32 0.0, %v5302
      %v5304 = vpop.f32.mrf.mxu0
      %5305 = vmatprep.mubr.f32.mxu0 0.0
      %5306 = vmatmul.mubr.f32.gmra.mxu0 %v4775
      %v5307 = vpop.f32.mrf.mxu0
      %v5308 = vadd.f32 0.0, %v5307
      %v5309 = vpop.f32.mrf.mxu0
      %5310 = vdwg.mxu0
      %v5311 = vadd.f32 %v5037, %v5153
      %v5312 = vadd.f32 %v5038, %v5158
      %v5313 = vadd.f32 %v5039, %v5163
      %v5314 = vadd.f32 %v5040, %v5168
      %v5315 = vadd.f32 %v5041, %v5173
      %v5316 = vadd.f32 %v5042, %v5178
      %v5317 = vadd.f32 %v5043, %v5183
      %v5318 = vadd.f32 %v5044, %v5188
      %v5319 = vadd.f32 %v5045, %v5193
      %v5320 = vadd.f32 %v5046, %v5198
      %v5321 = vadd.f32 %v5047, %v5203
      %v5322 = vadd.f32 %v5048, %v5208
      %v5323 = vadd.f32 %v5049, %v5213
      %v5324 = vadd.f32 %v5050, %v5218
      %v5325 = vadd.f32 %v5051, %v5223
      %v5326 = vadd.f32 %v5052, %v5228
      %v5327 = vadd.f32 %v5053, %v5233
      %v5328 = vadd.f32 %v5054, %v5238
      %v5329 = vadd.f32 %v5055, %v5243
      %v5330 = vadd.f32 %v5056, %v5248
      %v5331 = vadd.f32 %v5057, %v5253
      %v5332 = vadd.f32 %v5058, %v5258
      %v5333 = vadd.f32 %v5059, %v5263
      %v5334 = vadd.f32 %v5060, %v5268
      %v5335 = vadd.f32 %v5061, %v5273
      %v5336 = vadd.f32 %v5062, %v5278
      %v5337 = vadd.f32 %v5063, %v5283
      %v5338 = vadd.f32 %v5064, %v5288
      %v5339 = vadd.f32 %v5065, %v5293
      %v5340 = vadd.f32 %v5066, %v5298
      %v5341 = vadd.f32 %v5067, %v5303
      %v5342 = vadd.f32 %v5068, %v5308
      %s5343 = scalar_lea.vmem %s2, 1024
      %v5344 = vld [vmem:[%s5343] sm:$0xff]
      %v5345 = vld [vmem:[%s5343 + $0x8] sm:$0xff]
      %v5346 = vld [vmem:[%s5343 + $0x10] sm:$0xff]
      %v5347 = vld [vmem:[%s5343 + $0x18] sm:$0xff]
      %v5348 = vld [vmem:[%s5343 + $0x20] sm:$0xff]
      %v5349 = vld [vmem:[%s5343 + $0x28] sm:$0xff]
      %v5350 = vld [vmem:[%s5343 + $0x30] sm:$0xff]
      %v5351 = vld [vmem:[%s5343 + $0x38] sm:$0xff]
      %v5352 = vld [vmem:[%s5343 + $0x40] sm:$0xff]
      %v5353 = vld [vmem:[%s5343 + $0x48] sm:$0xff]
      %v5354 = vld [vmem:[%s5343 + $0x50] sm:$0xff]
      %v5355 = vld [vmem:[%s5343 + $0x58] sm:$0xff]
      %v5356 = vld [vmem:[%s5343 + $0x60] sm:$0xff]
      %v5357 = vld [vmem:[%s5343 + $0x68] sm:$0xff]
      %v5358 = vld [vmem:[%s5343 + $0x70] sm:$0xff]
      %v5359 = vld [vmem:[%s5343 + $0x78] sm:$0xff]
      %5360 = vmatprep.subr.mxu0 0.0
      %5361 = vmatpush1.msra.mxu0 %v5359
      %5362 = vmatprep.subr.mxu0 0.0
      %5363 = vmatpush1.msra.mxu0 %v5358
      %5364 = vmatprep.subr.mxu0 0.0
      %5365 = vmatpush1.msra.mxu0 %v5357
      %5366 = vmatprep.subr.mxu0 0.0
      %5367 = vmatpush1.msra.mxu0 %v5356
      %5368 = vmatprep.subr.mxu0 0.0
      %5369 = vmatpush1.msra.mxu0 %v5355
      %5370 = vmatprep.subr.mxu0 0.0
      %5371 = vmatpush1.msra.mxu0 %v5354
      %5372 = vmatprep.subr.mxu0 0.0
      %5373 = vmatpush1.msra.mxu0 %v5353
      %5374 = vmatprep.subr.mxu0 0.0
      %5375 = vmatpush1.msra.mxu0 %v5352
      %5376 = vmatprep.subr.mxu0 0.0
      %5377 = vmatpush1.msra.mxu0 %v5351
      %5378 = vmatprep.subr.mxu0 0.0
      %5379 = vmatpush1.msra.mxu0 %v5350
      %5380 = vmatprep.subr.mxu0 0.0
      %5381 = vmatpush1.msra.mxu0 %v5349
      %5382 = vmatprep.subr.mxu0 0.0
      %5383 = vmatpush1.msra.mxu0 %v5348
      %5384 = vmatprep.subr.mxu0 0.0
      %5385 = vmatpush1.msra.mxu0 %v5347
      %5386 = vmatprep.subr.mxu0 0.0
      %5387 = vmatpush1.msra.mxu0 %v5346
      %5388 = vmatprep.subr.mxu0 0.0
      %5389 = vmatpush1.msra.mxu0 %v5345
      %5390 = vmatprep.subr.mxu0 0.0
      %5391 = vmatpush1.msra.mxu0 %v5344
      %5392 = vmatprep.subr.mxu0 0.0
      %5393 = vmatpush2.msra.mxu0 0.0
      %5394 = vmatprep.subr.mxu0 0.0
      %5395 = vmatpush2.msra.mxu0 0.0
      %5396 = vmatprep.subr.mxu0 0.0
      %5397 = vmatpush2.msra.mxu0 0.0
      %5398 = vmatprep.subr.mxu0 0.0
      %5399 = vmatpush2.msra.mxu0 0.0
      %5400 = vmatprep.subr.mxu0 0.0
      %5401 = vmatpush2.msra.mxu0 0.0
      %5402 = vmatprep.subr.mxu0 0.0
      %5403 = vmatpush2.msra.mxu0 0.0
      %5404 = vmatprep.subr.mxu0 0.0
      %5405 = vmatpush2.msra.mxu0 0.0
      %5406 = vmatprep.subr.mxu0 0.0
      %5407 = vmatpush2.msra.mxu0 0.0
      %5408 = vmatprep.subr.mxu0 0.0
      %5409 = vmatpush2.msra.mxu0 0.0
      %5410 = vmatprep.subr.mxu0 0.0
      %5411 = vmatpush2.msra.mxu0 0.0
      %5412 = vmatprep.subr.mxu0 0.0
      %5413 = vmatpush2.msra.mxu0 0.0
      %5414 = vmatprep.subr.mxu0 0.0
      %5415 = vmatpush2.msra.mxu0 0.0
      %5416 = vmatprep.subr.mxu0 0.0
      %5417 = vmatpush2.msra.mxu0 0.0
      %5418 = vmatprep.subr.mxu0 0.0
      %5419 = vmatpush2.msra.mxu0 0.0
      %5420 = vmatprep.subr.mxu0 0.0
      %5421 = vmatpush2.msra.mxu0 0.0
      %5422 = vmatprep.subr.mxu0 0.0
      %5423 = vmatpush2.msra.mxu0 0.0
      %5424 = vmatprep.mubr.f32.mxu0 0.0
      %5425 = vmatmul.mubr.f32.gmra.mxu0 %v4779
      %v5426 = vpop.f32.mrf.mxu0
      %v5427 = vadd.f32 0.0, %v5426
      %v5428 = vpop.f32.mrf.mxu0
      %5429 = vmatprep.mubr.f32.mxu0 0.0
      %5430 = vmatmul.mubr.f32.gmra.mxu0 %v4761
      %v5431 = vpop.f32.mrf.mxu0
      %v5432 = vadd.f32 0.0, %v5431
      %v5433 = vpop.f32.mrf.mxu0
      %5434 = vmatprep.mubr.f32.mxu0 0.0
      %5435 = vmatmul.mubr.f32.gmra.mxu0 %v4780
      %v5436 = vpop.f32.mrf.mxu0
      %v5437 = vadd.f32 0.0, %v5436
      %v5438 = vpop.f32.mrf.mxu0
      %5439 = vmatprep.mubr.f32.mxu0 0.0
      %5440 = vmatmul.mubr.f32.gmra.mxu0 %v4762
      %v5441 = vpop.f32.mrf.mxu0
      %v5442 = vadd.f32 0.0, %v5441
      %v5443 = vpop.f32.mrf.mxu0
      %5444 = vmatprep.mubr.f32.mxu0 0.0
      %5445 = vmatmul.mubr.f32.gmra.mxu0 %v4781
      %v5446 = vpop.f32.mrf.mxu0
      %v5447 = vadd.f32 0.0, %v5446
      %v5448 = vpop.f32.mrf.mxu0
      %5449 = vmatprep.mubr.f32.mxu0 0.0
      %5450 = vmatmul.mubr.f32.gmra.mxu0 %v4763
      %v5451 = vpop.f32.mrf.mxu0
      %v5452 = vadd.f32 0.0, %v5451
      %v5453 = vpop.f32.mrf.mxu0
      %5454 = vmatprep.mubr.f32.mxu0 0.0
      %5455 = vmatmul.mubr.f32.gmra.mxu0 %v4782
      %v5456 = vpop.f32.mrf.mxu0
      %v5457 = vadd.f32 0.0, %v5456
      %v5458 = vpop.f32.mrf.mxu0
      %5459 = vmatprep.mubr.f32.mxu0 0.0
      %5460 = vmatmul.mubr.f32.gmra.mxu0 %v4764
      %v5461 = vpop.f32.mrf.mxu0
      %v5462 = vadd.f32 0.0, %v5461
      %v5463 = vpop.f32.mrf.mxu0
      %5464 = vmatprep.mubr.f32.mxu0 0.0
      %5465 = vmatmul.mubr.f32.gmra.mxu0 %v4783
      %v5466 = vpop.f32.mrf.mxu0
      %v5467 = vadd.f32 0.0, %v5466
      %v5468 = vpop.f32.mrf.mxu0
      %5469 = vmatprep.mubr.f32.mxu0 0.0
      %5470 = vmatmul.mubr.f32.gmra.mxu0 %v4765
      %v5471 = vpop.f32.mrf.mxu0
      %v5472 = vadd.f32 0.0, %v5471
      %v5473 = vpop.f32.mrf.mxu0
      %5474 = vmatprep.mubr.f32.mxu0 0.0
      %5475 = vmatmul.mubr.f32.gmra.mxu0 %v4784
      %v5476 = vpop.f32.mrf.mxu0
      %v5477 = vadd.f32 0.0, %v5476
      %v5478 = vpop.f32.mrf.mxu0
      %5479 = vmatprep.mubr.f32.mxu0 0.0
      %5480 = vmatmul.mubr.f32.gmra.mxu0 %v4766
      %v5481 = vpop.f32.mrf.mxu0
      %v5482 = vadd.f32 0.0, %v5481
      %v5483 = vpop.f32.mrf.mxu0
      %5484 = vmatprep.mubr.f32.mxu0 0.0
      %5485 = vmatmul.mubr.f32.gmra.mxu0 %v4785
      %v5486 = vpop.f32.mrf.mxu0
      %v5487 = vadd.f32 0.0, %v5486
      %v5488 = vpop.f32.mrf.mxu0
      %5489 = vmatprep.mubr.f32.mxu0 0.0
      %5490 = vmatmul.mubr.f32.gmra.mxu0 %v4767
      %v5491 = vpop.f32.mrf.mxu0
      %v5492 = vadd.f32 0.0, %v5491
      %v5493 = vpop.f32.mrf.mxu0
      %5494 = vmatprep.mubr.f32.mxu0 0.0
      %5495 = vmatmul.mubr.f32.gmra.mxu0 %v4786
      %v5496 = vpop.f32.mrf.mxu0
      %v5497 = vadd.f32 0.0, %v5496
      %v5498 = vpop.f32.mrf.mxu0
      %5499 = vmatprep.mubr.f32.mxu0 0.0
      %5500 = vmatmul.mubr.f32.gmra.mxu0 %v4768
      %v5501 = vpop.f32.mrf.mxu0
      %v5502 = vadd.f32 0.0, %v5501
      %v5503 = vpop.f32.mrf.mxu0
      %5504 = vmatprep.mubr.f32.mxu0 0.0
      %5505 = vmatmul.mubr.f32.gmra.mxu0 %v4787
      %v5506 = vpop.f32.mrf.mxu0
      %v5507 = vadd.f32 0.0, %v5506
      %v5508 = vpop.f32.mrf.mxu0
      %5509 = vmatprep.mubr.f32.mxu0 0.0
      %5510 = vmatmul.mubr.f32.gmra.mxu0 %v4769
      %v5511 = vpop.f32.mrf.mxu0
      %v5512 = vadd.f32 0.0, %v5511
      %v5513 = vpop.f32.mrf.mxu0
      %5514 = vmatprep.mubr.f32.mxu0 0.0
      %5515 = vmatmul.mubr.f32.gmra.mxu0 %v4788
      %v5516 = vpop.f32.mrf.mxu0
      %v5517 = vadd.f32 0.0, %v5516
      %v5518 = vpop.f32.mrf.mxu0
      %5519 = vmatprep.mubr.f32.mxu0 0.0
      %5520 = vmatmul.mubr.f32.gmra.mxu0 %v4770
      %v5521 = vpop.f32.mrf.mxu0
      %v5522 = vadd.f32 0.0, %v5521
      %v5523 = vpop.f32.mrf.mxu0
      %5524 = vmatprep.mubr.f32.mxu0 0.0
      %5525 = vmatmul.mubr.f32.gmra.mxu0 %v4789
      %v5526 = vpop.f32.mrf.mxu0
      %v5527 = vadd.f32 0.0, %v5526
      %v5528 = vpop.f32.mrf.mxu0
      %5529 = vmatprep.mubr.f32.mxu0 0.0
      %5530 = vmatmul.mubr.f32.gmra.mxu0 %v4771
      %v5531 = vpop.f32.mrf.mxu0
      %v5532 = vadd.f32 0.0, %v5531
      %v5533 = vpop.f32.mrf.mxu0
      %5534 = vmatprep.mubr.f32.mxu0 0.0
      %5535 = vmatmul.mubr.f32.gmra.mxu0 %v4790
      %v5536 = vpop.f32.mrf.mxu0
      %v5537 = vadd.f32 0.0, %v5536
      %v5538 = vpop.f32.mrf.mxu0
      %5539 = vmatprep.mubr.f32.mxu0 0.0
      %5540 = vmatmul.mubr.f32.gmra.mxu0 %v4772
      %v5541 = vpop.f32.mrf.mxu0
      %v5542 = vadd.f32 0.0, %v5541
      %v5543 = vpop.f32.mrf.mxu0
      %5544 = vmatprep.mubr.f32.mxu0 0.0
      %5545 = vmatmul.mubr.f32.gmra.mxu0 %v4791
      %v5546 = vpop.f32.mrf.mxu0
      %v5547 = vadd.f32 0.0, %v5546
      %v5548 = vpop.f32.mrf.mxu0
      %5549 = vmatprep.mubr.f32.mxu0 0.0
      %5550 = vmatmul.mubr.f32.gmra.mxu0 %v4773
      %v5551 = vpop.f32.mrf.mxu0
      %v5552 = vadd.f32 0.0, %v5551
      %v5553 = vpop.f32.mrf.mxu0
      %5554 = vmatprep.mubr.f32.mxu0 0.0
      %5555 = vmatmul.mubr.f32.gmra.mxu0 %v4792
      %v5556 = vpop.f32.mrf.mxu0
      %v5557 = vadd.f32 0.0, %v5556
      %v5558 = vpop.f32.mrf.mxu0
      %5559 = vmatprep.mubr.f32.mxu0 0.0
      %5560 = vmatmul.mubr.f32.gmra.mxu0 %v4774
      %v5561 = vpop.f32.mrf.mxu0
      %v5562 = vadd.f32 0.0, %v5561
      %v5563 = vpop.f32.mrf.mxu0
      %5564 = vmatprep.mubr.f32.mxu0 0.0
      %5565 = vmatmul.mubr.f32.gmra.mxu0 %v4793
      %v5566 = vpop.f32.mrf.mxu0
      %v5567 = vadd.f32 0.0, %v5566
      %v5568 = vpop.f32.mrf.mxu0
      %5569 = vmatprep.mubr.f32.mxu0 0.0
      %5570 = vmatmul.mubr.f32.gmra.mxu0 %v4775
      %v5571 = vpop.f32.mrf.mxu0
      %v5572 = vadd.f32 0.0, %v5571
      %v5573 = vpop.f32.mrf.mxu0
      %5574 = vmatprep.mubr.f32.mxu0 0.0
      %5575 = vmatmul.mubr.f32.gmra.mxu0 %v4794
      %v5576 = vpop.f32.mrf.mxu0
      %v5577 = vadd.f32 0.0, %v5576
      %v5578 = vpop.f32.mrf.mxu0
      %5579 = vmatprep.mubr.f32.mxu0 0.0
      %5580 = vmatmul.mubr.f32.gmra.mxu0 %v4776
      %v5581 = vpop.f32.mrf.mxu0
      %v5582 = vadd.f32 0.0, %v5581
      %v5583 = vpop.f32.mrf.mxu0
      %5584 = vdwg.mxu0
      %v5585 = vadd.f32 %v5311, %v5427
      %v5586 = vadd.f32 %v5312, %v5432
      %v5587 = vadd.f32 %v5313, %v5437
      %v5588 = vadd.f32 %v5314, %v5442
      %v5589 = vadd.f32 %v5315, %v5447
      %v5590 = vadd.f32 %v5316, %v5452
      %v5591 = vadd.f32 %v5317, %v5457
      %v5592 = vadd.f32 %v5318, %v5462
      %v5593 = vadd.f32 %v5319, %v5467
      %v5594 = vadd.f32 %v5320, %v5472
      %v5595 = vadd.f32 %v5321, %v5477
      %v5596 = vadd.f32 %v5322, %v5482
      %v5597 = vadd.f32 %v5323, %v5487
      %v5598 = vadd.f32 %v5324, %v5492
      %v5599 = vadd.f32 %v5325, %v5497
      %v5600 = vadd.f32 %v5326, %v5502
      %v5601 = vadd.f32 %v5327, %v5507
      %v5602 = vadd.f32 %v5328, %v5512
      %v5603 = vadd.f32 %v5329, %v5517
      %v5604 = vadd.f32 %v5330, %v5522
      %v5605 = vadd.f32 %v5331, %v5527
      %v5606 = vadd.f32 %v5332, %v5532
      %v5607 = vadd.f32 %v5333, %v5537
      %v5608 = vadd.f32 %v5334, %v5542
      %v5609 = vadd.f32 %v5335, %v5547
      %v5610 = vadd.f32 %v5336, %v5552
      %v5611 = vadd.f32 %v5337, %v5557
      %v5612 = vadd.f32 %v5338, %v5562
      %v5613 = vadd.f32 %v5339, %v5567
      %v5614 = vadd.f32 %v5340, %v5572
      %v5615 = vadd.f32 %v5341, %v5577
      %v5616 = vadd.f32 %v5342, %v5582
      %v5617 = vld [vmem:[%s165] sm:$0xff]
      %v5618 = vld [vmem:[%s165 + $0x8] sm:$0xff]
      %v5619 = vld [vmem:[%s165 + $0x10] sm:$0xff]
      %v5620 = vld [vmem:[%s165 + $0x18] sm:$0xff]
      %v5621 = vld [vmem:[%s165 + $0x20] sm:$0xff]
      %v5622 = vld [vmem:[%s165 + $0x28] sm:$0xff]
      %v5623 = vld [vmem:[%s165 + $0x30] sm:$0xff]
      %v5624 = vld [vmem:[%s165 + $0x38] sm:$0xff]
      %v5625 = vld [vmem:[%s165 + $0x40] sm:$0xff]
      %v5626 = vld [vmem:[%s165 + $0x48] sm:$0xff]
      %v5627 = vld [vmem:[%s165 + $0x50] sm:$0xff]
      %v5628 = vld [vmem:[%s165 + $0x58] sm:$0xff]
      %v5629 = vld [vmem:[%s165 + $0x60] sm:$0xff]
      %v5630 = vld [vmem:[%s165 + $0x68] sm:$0xff]
      %v5631 = vld [vmem:[%s165 + $0x70] sm:$0xff]
      %v5632 = vld [vmem:[%s165 + $0x78] sm:$0xff]
      %v5633 = vld [vmem:[%s165 + $0x80] sm:$0xff]
      %v5634 = vld [vmem:[%s165 + $0x88] sm:$0xff]
      %v5635 = vld [vmem:[%s165 + $0x90] sm:$0xff]
      %v5636 = vld [vmem:[%s165 + $0x98] sm:$0xff]
      %v5637 = vld [vmem:[%s165 + $0xa0] sm:$0xff]
      %v5638 = vld [vmem:[%s165 + $0xa8] sm:$0xff]
      %v5639 = vld [vmem:[%s165 + $0xb0] sm:$0xff]
      %v5640 = vld [vmem:[%s165 + $0xb8] sm:$0xff]
      %v5641 = vld [vmem:[%s165 + $0xc0] sm:$0xff]
      %v5642 = vld [vmem:[%s165 + $0xc8] sm:$0xff]
      %v5643 = vld [vmem:[%s165 + $0xd0] sm:$0xff]
      %v5644 = vld [vmem:[%s165 + $0xd8] sm:$0xff]
      %v5645 = vld [vmem:[%s165 + $0xe0] sm:$0xff]
      %v5646 = vld [vmem:[%s165 + $0xe8] sm:$0xff]
      %v5647 = vld [vmem:[%s165 + $0xf0] sm:$0xff]
      %v5648 = vld [vmem:[%s165 + $0xf8] sm:$0xff]
      %v5649 = vadd.f32 %v5585, %v5617
      %v5650 = vadd.f32 %v5586, %v5618
      %v5651 = vadd.f32 %v5587, %v5619
      %v5652 = vadd.f32 %v5588, %v5620
      %v5653 = vadd.f32 %v5589, %v5621
      %v5654 = vadd.f32 %v5590, %v5622
      %v5655 = vadd.f32 %v5591, %v5623
      %v5656 = vadd.f32 %v5592, %v5624
      %v5657 = vadd.f32 %v5593, %v5625
      %v5658 = vadd.f32 %v5594, %v5626
      %v5659 = vadd.f32 %v5595, %v5627
      %v5660 = vadd.f32 %v5596, %v5628
      %v5661 = vadd.f32 %v5597, %v5629
      %v5662 = vadd.f32 %v5598, %v5630
      %v5663 = vadd.f32 %v5599, %v5631
      %v5664 = vadd.f32 %v5600, %v5632
      %v5665 = vadd.f32 %v5601, %v5633
      %v5666 = vadd.f32 %v5602, %v5634
      %v5667 = vadd.f32 %v5603, %v5635
      %v5668 = vadd.f32 %v5604, %v5636
      %v5669 = vadd.f32 %v5605, %v5637
      %v5670 = vadd.f32 %v5606, %v5638
      %v5671 = vadd.f32 %v5607, %v5639
      %v5672 = vadd.f32 %v5608, %v5640
      %v5673 = vadd.f32 %v5609, %v5641
      %v5674 = vadd.f32 %v5610, %v5642
      %v5675 = vadd.f32 %v5611, %v5643
      %v5676 = vadd.f32 %v5612, %v5644
      %v5677 = vadd.f32 %v5613, %v5645
      %v5678 = vadd.f32 %v5614, %v5646
      %v5679 = vadd.f32 %v5615, %v5647
      %v5680 = vadd.f32 %v5616, %v5648
      %v5681 = vmax.f32 %v5649, 0.0
      %v5682 = vmax.f32 %v5650, 0.0
      %v5683 = vmax.f32 %v5651, 0.0
      %v5684 = vmax.f32 %v5652, 0.0
      %v5685 = vmax.f32 %v5653, 0.0
      %v5686 = vmax.f32 %v5654, 0.0
      %v5687 = vmax.f32 %v5655, 0.0
      %v5688 = vmax.f32 %v5656, 0.0
      %v5689 = vmax.f32 %v5657, 0.0
      %v5690 = vmax.f32 %v5658, 0.0
      %v5691 = vmax.f32 %v5659, 0.0
      %v5692 = vmax.f32 %v5660, 0.0
      %v5693 = vmax.f32 %v5661, 0.0
      %v5694 = vmax.f32 %v5662, 0.0
      %v5695 = vmax.f32 %v5663, 0.0
      %v5696 = vmax.f32 %v5664, 0.0
      %v5697 = vmax.f32 %v5665, 0.0
      %v5698 = vmax.f32 %v5666, 0.0
      %v5699 = vmax.f32 %v5667, 0.0
      %v5700 = vmax.f32 %v5668, 0.0
      %v5701 = vmax.f32 %v5669, 0.0
      %v5702 = vmax.f32 %v5670, 0.0
      %v5703 = vmax.f32 %v5671, 0.0
      %v5704 = vmax.f32 %v5672, 0.0
      %v5705 = vmax.f32 %v5673, 0.0
      %v5706 = vmax.f32 %v5674, 0.0
      %v5707 = vmax.f32 %v5675, 0.0
      %v5708 = vmax.f32 %v5676, 0.0
      %v5709 = vmax.f32 %v5677, 0.0
      %v5710 = vmax.f32 %v5678, 0.0
      %v5711 = vmax.f32 %v5679, 0.0
      %v5712 = vmax.f32 %v5680, 0.0
      %5713 = vst [vmem:[%s170] sm:$0xff] %v5681
      %5714 = vst [vmem:[%s170 + $0x8] sm:$0xff] %v5682
      %5715 = vst [vmem:[%s170 + $0x10] sm:$0xff] %v5683
      %5716 = vst [vmem:[%s170 + $0x18] sm:$0xff] %v5684
      %5717 = vst [vmem:[%s170 + $0x20] sm:$0xff] %v5685
      %5718 = vst [vmem:[%s170 + $0x28] sm:$0xff] %v5686
      %5719 = vst [vmem:[%s170 + $0x30] sm:$0xff] %v5687
      %5720 = vst [vmem:[%s170 + $0x38] sm:$0xff] %v5688
      %5721 = vst [vmem:[%s170 + $0x40] sm:$0xff] %v5689
      %5722 = vst [vmem:[%s170 + $0x48] sm:$0xff] %v5690
      %5723 = vst [vmem:[%s170 + $0x50] sm:$0xff] %v5691
      %5724 = vst [vmem:[%s170 + $0x58] sm:$0xff] %v5692
      %5725 = vst [vmem:[%s170 + $0x60] sm:$0xff] %v5693
      %5726 = vst [vmem:[%s170 + $0x68] sm:$0xff] %v5694
      %5727 = vst [vmem:[%s170 + $0x70] sm:$0xff] %v5695
      %5728 = vst [vmem:[%s170 + $0x78] sm:$0xff] %v5696
      %5729 = vst [vmem:[%s170 + $0x80] sm:$0xff] %v5697
      %5730 = vst [vmem:[%s170 + $0x88] sm:$0xff] %v5698
      %5731 = vst [vmem:[%s170 + $0x90] sm:$0xff] %v5699
      %5732 = vst [vmem:[%s170 + $0x98] sm:$0xff] %v5700
      %5733 = vst [vmem:[%s170 + $0xa0] sm:$0xff] %v5701
      %5734 = vst [vmem:[%s170 + $0xa8] sm:$0xff] %v5702
      %5735 = vst [vmem:[%s170 + $0xb0] sm:$0xff] %v5703
      %5736 = vst [vmem:[%s170 + $0xb8] sm:$0xff] %v5704
      %5737 = vst [vmem:[%s170 + $0xc0] sm:$0xff] %v5705
      %5738 = vst [vmem:[%s170 + $0xc8] sm:$0xff] %v5706
      %5739 = vst [vmem:[%s170 + $0xd0] sm:$0xff] %v5707
      %5740 = vst [vmem:[%s170 + $0xd8] sm:$0xff] %v5708
      %5741 = vst [vmem:[%s170 + $0xe0] sm:$0xff] %v5709
      %5742 = vst [vmem:[%s170 + $0xe8] sm:$0xff] %v5710
      %5743 = vst [vmem:[%s170 + $0xf0] sm:$0xff] %v5711
      %5744 = vst [vmem:[%s170 + $0xf8] sm:$0xff] %v5712
      %p5745 = scmp.lt.s32.totalorder %s14, 1
      %s5746 = scalar_select %p5745, %s14, 1
      %s5747 = smul.addr %s5746, 32
      %s5748 = smul.addr %s5747, 8
      %s5749 = scalar_lea.vmem %s3, %s5748
      // Predicated region
      $region33: #{residual_unit.1} parent=31 // pred_check
        %p5750 = pneg %p100
      $region34: #{residual_unit.1} parent=31 // pred_check_branch
        %5752 = sbr.rel (%p5750) target = $region36
      $region35: #{residual_unit.1} parent=31 // pred_region
        _
      $region36: #{residual_unit.1} parent=31 // pred_fallthru
        _
    $region32: #{residual_unit.1} parent=5 // pred_fallthru
      _
    %p5753 = scmp.le.s32.totalorder 2, %s9
    // Predicated region
    $region37: #{residual_unit.1} parent=5 // pred_check
      %p5754 = pneg %p5753
    $region38: #{residual_unit.1} parent=5 // pred_check_branch
      %5756 = sbr.rel (%p5754) target = $region40
    $region39: #{residual_unit.1} parent=5 // pred_region
      %s5757 = ssub.s32 %s9, 2
      // Predicated region
      $region41: #{residual_unit.1} parent=39 // pred_check
        %p5758 = pneg %p106
      $region42: #{residual_unit.1} parent=39 // pred_check_branch
        %5760 = sbr.rel (%p5758) target = $region44
      $region43: #{residual_unit.1} parent=39 // pred_region
        %p5761 = scmp.lt.s32.totalorder %s15, 1
        %s5762 = scalar_select %p5761, %s15, 1
        %s5763 = smul.addr %s5762, 32
        %s5764 = smul.addr %s5763, 8
        %s5765 = scalar_lea.vmem %s3, %s5764
      $region44: #{residual_unit.1} parent=39 // pred_fallthru
        _
    $region40: #{residual_unit.1} parent=5 // pred_fallthru
      _
  $region6: #{residual_unit.1} parent=0 // loop_footer
    %s13 = sadd.s32 1, %s9
  $region7: #{residual_unit.1} parent=0 // loop_footer_branch
    %8 = sbr.rel target = $region3
  $region8: #{residual_unit.1} parent=0 // loop_exit
    _

</llo_original>
